<compile_context>
chip_gen: v7x
topology: tpu7x:2x2x1
jax: 0.10.0
libtpu: 0.0.40
codegen_flags: <defaults>
</compile_context>

<pallas_src>
import functools

import jax
import jax.numpy as jnp
import numpy as np
from jax.experimental import pallas as pl
from jax.experimental.pallas import tpu as pltpu


# ----------------------------------------------------------------------------
# Pallas kernel: one (direction, batch-tile) per grid step, time loop inside.
# ----------------------------------------------------------------------------
def _brits_kernel(H,
                  x_ref, m_ref, d_ref,
                  Wdh_ref, bdh_ref, wdx_ref, bdx_ref,
                  Whall_ref, bhr_ref, Wfr_ref, bfr_ref,
                  Wwcg_ref, Wmall_ref, bwc_ref,
                  Wihx_ref, blstm_ref,
                  out_ref,
                  gh_scr, alpha_scr, gm_scr):
    direction = pl.program_id(0)            # 0 = forward, 1 = backward
    S, Bt, F = x_ref.shape
    H4 = 4 * H

    # -------- pre-pass: all recurrence-independent work as big matmuls -------
    d_flat = d_ref[...].reshape(S * Bt, F)
    m_flat = m_ref[...].reshape(S * Bt, F)

    gamma_h = jnp.exp(-jax.nn.relu(
        jnp.dot(d_flat, Wdh_ref[...], preferred_element_type=jnp.float32)
        + bdh_ref[...]))
    gamma_x = jnp.exp(-jax.nn.relu(d_flat * wdx_ref[...] + bdx_ref[...]))

    # fused mask matmul: [Wihm | Wwcm] -> LSTM mask gates (4H) + wc mask term (F)
    mcat = jnp.dot(m_flat, Wmall_ref[...], preferred_element_type=jnp.float32)
    # alpha = sigmoid(weight_combine([gamma_x, m])) is fully precomputable.
    alpha = jax.nn.sigmoid(
        jnp.dot(gamma_x, Wwcg_ref[...], preferred_element_type=jnp.float32)
        + mcat[:, H4:] + bwc_ref[...])

    gh_scr[...] = gamma_h.reshape(S, Bt, H)
    alpha_scr[...] = alpha.reshape(S, Bt, F)
    gm_scr[...] = (mcat[:, :H4] + blstm_ref[...]).reshape(S, Bt, H4)

    # -------- hoisted loads / broadcasts (NOT re-emitted per unrolled step) --
    Whall = Whall_ref[...]
    Wfr = Wfr_ref[...]
    Wihx = Wihx_ref[...]
    bhr = jnp.broadcast_to(bhr_ref[...], (Bt, F))
    bfr = jnp.broadcast_to(bfr_ref[...], (Bt, F))
    lane = jax.lax.broadcasted_iota(jnp.int32, (Bt, H4), 1)
    is_g = jnp.logical_and(lane >= 2 * H, lane < 3 * H)   # tanh block of i,f,g,o

    # -------- serial recurrence: 3 MXU issues per step ------------------------
    def step(t, carry):
        h, c = carry
        # Backward direction walks the sequence in reverse and writes its
        # outputs back at the original time index (no host-side reverse).
        idx = jnp.where(direction == 0, t, S - 1 - t)
        x = x_ref[idx]                       # (Bt, F)
        m = m_ref[idx]

        h = h * gh_scr[idx]                  # temporal decay on hidden state

        # fused h matmul: [Whh | Whr] (4H first -> lane-aligned split for H%32==0)
        hcat = jnp.dot(h, Whall, preferred_element_type=jnp.float32)
        gates_h = hcat[:, :H4]
        x_h = hcat[:, H4:] + bhr

        obs = m > 0.0
        x_c = jnp.where(obs, x, x_h)         # NaN-safe masked fill (keep as-is)

        # Feature regression (zero-diagonal weight applied on host side).
        z_h = jnp.dot(x_c, Wfr, preferred_element_type=jnp.float32) + bfr

        a = alpha_scr[idx]
        c_h = a * z_h + (1.0 - a) * x_h
        c_c = jnp.where(obs, x, c_h)

        # LSTMCell on [c_c, m]; mask gates + combined biases precomputed in gm_scr.
        gates = (jnp.dot(c_c, Wihx, preferred_element_type=jnp.float32)
                 + gm_scr[idx] + gates_h)
        act = jnp.where(is_g, jnp.tanh(gates), jax.nn.sigmoid(gates))
        i_g = act[:, 0 * H:1 * H]
        f_g = act[:, 1 * H:2 * H]
        g_g = act[:, 2 * H:3 * H]
        o_g = act[:, 3 * H:4 * H]
        c_new = f_g * c + i_g * g_g
        h_new = o_g * jnp.tanh(c_new)

        # one packed store per step: [c_c | x_h | z_h | c_h]
        out_ref[idx] = jnp.concatenate([c_c, x_h, z_h, c_h], axis=-1)
        return h_new, c_new

    h0 = jnp.zeros((Bt, H), jnp.float32)
    c0 = jnp.zeros((Bt, H), jnp.float32)
    unroll = True if S <= 16 else 8          # full unroll only for short seqs
    jax.lax.fori_loop(0, S, step, (h0, c0), unroll=unroll)


# ----------------------------------------------------------------------------
# Parameters (deterministic, PyTorch-shaped).
# ----------------------------------------------------------------------------
def init_rits_params(key, F, H):
    ks = jax.random.split(key, 14)
    u = lambda k, shape, s: jax.random.uniform(k, shape, jnp.float32, -s, s)
    s_h = 1.0 / np.sqrt(H)
    s_f = 1.0 / np.sqrt(F)
    s_2f = 1.0 / np.sqrt(2 * F)
    return dict(
        W_dh=u(ks[0], (H, F), s_f), b_dh=u(ks[1], (H,), s_f),        # temp_decay_h
        w_dx=u(ks[2], (F,), s_f), b_dx=u(ks[3], (F,), s_f),          # temp_decay_x (diag)
        W_hr=u(ks[4], (F, H), s_h), b_hr=u(ks[5], (F,), s_h),        # hist_reg
        W_fr=u(ks[6], (F, F), s_f), b_fr=u(ks[7], (F,), s_f),        # feat_reg
        W_wc=u(ks[8], (F, 2 * F), s_2f), b_wc=u(ks[9], (F,), s_2f),  # weight_combine
        W_ih=u(ks[10], (4 * H, 2 * F), s_h),                         # LSTMCell
        W_hh=u(ks[11], (4 * H, H), s_h),
        b_ih=u(ks[12], (4 * H,), s_h),
        b_hh=u(ks[13], (4 * H,), s_h),
    )


def _prep_kernel_weights(params, F):
    eye = jnp.eye(F, dtype=jnp.float32)
    Wfr = (params['W_fr'] * (1.0 - eye)).T          # zero-diag FeatureRegression
    Whh = params['W_hh'].T                          # (H, 4H)
    Whr = params['W_hr'].T                          # (H, F)
    Wihm = params['W_ih'][:, F:].T                  # (F, 4H)
    Wwcm = params['W_wc'][:, F:].T                  # (F, F)
    return [
        params['W_dh'].T,                            # Wdh   (F, H)
        params['b_dh'][None, :],                     # bdh   (1, H)
        params['w_dx'][None, :],                     # wdx   (1, F)
        params['b_dx'][None, :],                     # bdx   (1, F)
        jnp.concatenate([Whh, Whr], axis=1),         # Whall (H, 4H+F)  [Whh|Whr]
        params['b_hr'][None, :],                     # bhr   (1, F)
        Wfr,                                         # Wfr   (F, F)
        params['b_fr'][None, :],                     # bfr   (1, F)
        params['W_wc'][:, :F].T,                     # Wwcg  (F, F)
        jnp.concatenate([Wihm, Wwcm], axis=1),       # Wmall (F, 4H+F)  [Wihm|Wwcm]
        params['b_wc'][None, :],                     # bwc   (1, F)
        params['W_ih'][:, :F].T,                     # Wihx  (F, 4H)
        (params['b_ih'] + params['b_hh'])[None, :],  # blstm (1, 4H)
    ]


def _delta_scan(ms):
    """Delta (gap since last observation) used at each step; ms is (S, B, F)."""
    def step(d, m_t):
        return m_t + (1.0 - m_t) * (d + 1.0), d
    _, deltas = jax.lax.scan(step, jnp.zeros_like(ms[0]), ms)
    return deltas                               # deltas[t] = delta used at step t


def _padded_bytes(shape, itemsize=4):
    s = list(shape)
    s[-1] = -(-s[-1] // 128) * 128
    if len(s) >= 2:
        s[-2] = -(-s[-2] // 8) * 8
    n = 1
    for v in s:
        n *= v
    return n * itemsize


# ----------------------------------------------------------------------------
# BRITS forward: one fused pallas_call for both directions (+ batch tiling).
# ----------------------------------------------------------------------------
def brits_forward(x, mask, params_fwd, params_bwd, n_nodes, hidden_size):
    b, s, n, c = x.shape
    assert n == n_nodes
    F = n * c
    H = hidden_size

    xf = x.reshape(b, s, F).astype(jnp.float32)
    mf = mask.reshape(b, s, F).astype(jnp.float32)

    # batch tiling (keeps VMEM residency bounded; extra parallel grid work)
    Bp0 = max(8, ((b + 7) // 8) * 8)
    tile_b = min(Bp0, 128)
    Bp = ((Bp0 + tile_b - 1) // tile_b) * tile_b
    nb = Bp // tile_b

    # time-major, batch padded to a sublane multiple
    xs = jnp.transpose(xf, (1, 0, 2))               # (S, B, F)
    ms = jnp.transpose(mf, (1, 0, 2))
    if Bp != b:
        pad = ((0, 0), (0, Bp - b), (0, 0))
        xs = jnp.pad(xs, pad)
        ms = jnp.pad(ms, pad)

    # delta is recurrence-independent: precompute in XLA for both directions;
    # backward deltas are stored back at original time indices.
    d_fwd = _delta_scan(ms)
    d_bwd = _delta_scan(ms[::-1])[::-1]
    deltas = jnp.stack([d_fwd, d_bwd], axis=0)      # (2, S, Bp, F)

    w_fwd = _prep_kernel_weights(params_fwd, F)
    w_bwd = _prep_kernel_weights(params_bwd, F)
    weights = [jnp.stack([wf, wb], axis=0) for wf, wb in zip(w_fwd, w_bwd)]

    seq_spec = pl.BlockSpec((s, tile_b, F), lambda di, bi: (0, bi, 0))
    dlt_spec = pl.BlockSpec((None, s, tile_b, F), lambda di, bi: (di, 0, bi, 0))

    def dir_spec(arr):
        tail = arr.shape[1:]
        nd = len(tail)
        return pl.BlockSpec((None,) + tail,
                            lambda di, bi, _nd=nd: (di,) + (0,) * _nd)

    in_specs = [seq_spec, seq_spec, dlt_spec] + [dir_spec(w) for w in weights]
    out_spec = pl.BlockSpec((None, s, tile_b, 4 * F), lambda di, bi: (di, 0, bi, 0))
    out_shape = jax.ShapeDtypeStruct((2, s, Bp, 4 * F), jnp.float32)

    scratch_shapes = [pltpu.VMEM((s, tile_b, H), jnp.float32),       # gamma_h
                      pltpu.VMEM((s, tile_b, F), jnp.float32),       # alpha
                      pltpu.VMEM((s, tile_b, 4 * H), jnp.float32)]   # mask gates

    # explicit VMEM budget (v5e default scoped is 16 MiB; v7x physical is 64 MiB)
    blocks = ([(s, tile_b, F)] * 3 + [(s, tile_b, 4 * F)]
              + [w.shape[1:] for w in weights])
    est = 2 * sum(_padded_bytes(bs) for bs in blocks)        # double-buffered IO
    est += sum(_padded_bytes(ss.shape) for ss in scratch_shapes)
    vmem_limit = int(min(64 * 1024 * 1024, max(32 * 1024 * 1024, 1.5 * est)))

    kernel = functools.partial(_brits_kernel, H)
    out = pl.pallas_call(
        kernel,
        out_shape=out_shape,
        grid_spec=pltpu.PrefetchScalarGridSpec(
            num_scalar_prefetch=0,
            grid=(2, nb),                            # (direction, batch tile)
            in_specs=in_specs,
            out_specs=out_spec,
            scratch_shapes=scratch_shapes),
        compiler_params=pltpu.CompilerParams(
            dimension_semantics=("parallel", "parallel"),
            vmem_limit_bytes=vmem_limit),
    )(xs, ms, deltas, *weights)

    # (2, S, Bp, 4F): drop pad rows, back to batch-major — one slab touched.
    out = jnp.transpose(out[:, :, :b, :], (0, 2, 1, 3))      # (2, b, S, 4F)
    c_c = out[..., 0 * F:1 * F]
    x_h = out[..., 1 * F:2 * F]
    z_h = out[..., 2 * F:3 * F]
    c_h = out[..., 3 * F:4 * F]

    imp_fwd, imp_bwd = c_c[0], c_c[1]
    imputation = 0.5 * (imp_fwd + imp_bwd)
    predictions = [imp_fwd, imp_bwd,
                   x_h[0], z_h[0], c_h[0],
                   x_h[1], z_h[1], c_h[1]]

    to4d = lambda a: a.reshape(b, s, n, c)
    return to4d(imputation), [to4d(p) for p in predictions]


# ----------------------------------------------------------------------------
# Pure-numpy reference (float64) for a correctness sanity check.
# ----------------------------------------------------------------------------
def brits_reference(x, mask, params_fwd, params_bwd, n_nodes, hidden_size):
    b, s, n, c = x.shape
    F = n * c
    H = hidden_size
    xf = np.asarray(x, np.float64).reshape(b, s, F)
    mf = np.asarray(mask, np.float64).reshape(b, s, F)

    def sig(v):
        return 1.0 / (1.0 + np.exp(-v))

    def rits(xs, ms, params):
        p = {k: np.asarray(v, np.float64) for k, v in params.items()}
        Wfr = p['W_fr'] * (1.0 - np.eye(F))
        h = np.zeros((b, H)); cst = np.zeros((b, H)); d = np.zeros((b, F))
        imp = np.zeros((b, s, F)); xh_o = np.zeros((b, s, F))
        zh_o = np.zeros((b, s, F)); ch_o = np.zeros((b, s, F))
        for t in range(s):
            x_t, m_t = xs[:, t], ms[:, t]
            gamma_h = np.exp(-np.maximum(d @ p['W_dh'].T + p['b_dh'], 0.0))
            gamma_x = np.exp(-np.maximum(d * p['w_dx'] + p['b_dx'], 0.0))
            h = h * gamma_h
            x_h = h @ p['W_hr'].T + p['b_hr']
            x_c = np.where(m_t > 0, x_t, x_h)
            z_h = x_c @ Wfr.T + p['b_fr']
            alpha = sig(np.concatenate([gamma_x, m_t], -1) @ p['W_wc'].T + p['b_wc'])
            c_h = alpha * z_h + (1.0 - alpha) * x_h
            c_c = np.where(m_t > 0, x_t, c_h)
            inp = np.concatenate([c_c, m_t], -1)
            gates = inp @ p['W_ih'].T + p['b_ih'] + h @ p['W_hh'].T + p['b_hh']
            i_g = sig(gates[:, 0 * H:1 * H]); f_g = sig(gates[:, 1 * H:2 * H])
            g_g = np.tanh(gates[:, 2 * H:3 * H]); o_g = sig(gates[:, 3 * H:4 * H])
            cst = f_g * cst + i_g * g_g
            h = o_g * np.tanh(cst)
            imp[:, t], xh_o[:, t], zh_o[:, t], ch_o[:, t] = c_c, x_h, z_h, c_h
            d = m_t + (1.0 - m_t) * (d + 1.0)
        return imp, [xh_o, zh_o, ch_o]

    imp_f, pred_f = rits(xf, mf, params_fwd)
    imp_b_rev, pred_b_rev = rits(xf[:, ::-1], mf[:, ::-1], params_bwd)
    imp_b = imp_b_rev[:, ::-1]
    pred_b = [pp[:, ::-1] for pp in pred_b_rev]
    imputation = 0.5 * (imp_f + imp_b)
    preds = [imp_f, imp_b] + pred_f + pred_b
    r4 = lambda a: a.reshape(b, s, n, c)
    return r4(imputation), [r4(pp) for pp in preds]


if __name__ == "__main__":
    # Small shapes: batch=2, seq=8, n_nodes=8, channels(input_size)=2, hidden=32
    B, S, N, C = 2, 8, 8, 2
    H = 32
    F = N * C

    key = jax.random.PRNGKey(0)
    k1, k2, k3, k4 = jax.random.split(key, 4)
    x = jax.random.normal(k1, (B, S, N, C), jnp.float32)
    mask = (jax.random.uniform(k2, (B, S, N, C)) > 0.2).astype(jnp.float32)

    params_fwd = init_rits_params(k3, F, H)
    params_bwd = init_rits_params(k4, F, H)

    imputation, predictions = brits_forward(x, mask, params_fwd, params_bwd, N, H)
    jax.block_until_ready(imputation)
    for p in predictions:
        jax.block_until_ready(p)

    assert imputation.shape == (B, S, N, C)
    assert len(predictions) == 8  # [imp_fwd, imp_bwd] + 3 fwd preds + 3 bwd preds

    # Numerical sanity check against a float64 numpy reference.
    ref_imp, ref_preds = brits_reference(x, mask, params_fwd, params_bwd, N, H)
    np.testing.assert_allclose(np.asarray(imputation), ref_imp, rtol=5e-3, atol=5e-3)
    for got, want in zip(predictions, ref_preds):
        np.testing.assert_allclose(np.asarray(got), want, rtol=5e-3, atol=5e-3)

    print("KERNEL_OK")
</pallas_src>

<mosaic_0001>
module attributes {stable_mosaic.version = 11 : i64} {
  func.func @_brits_kernel(%arg0: i32, %arg1: i32, %arg2: memref<8x8x16xf32, #tpu.memory_space<vmem>>, %arg3: memref<8x8x16xf32, #tpu.memory_space<vmem>>, %arg4: memref<1x8x8x16xf32, #tpu.memory_space<vmem>>, %arg5: memref<1x16x32xf32, #tpu.memory_space<vmem>>, %arg6: memref<1x1x32xf32, #tpu.memory_space<vmem>>, %arg7: memref<1x1x16xf32, #tpu.memory_space<vmem>>, %arg8: memref<1x1x16xf32, #tpu.memory_space<vmem>>, %arg9: memref<1x32x144xf32, #tpu.memory_space<vmem>>, %arg10: memref<1x1x16xf32, #tpu.memory_space<vmem>>, %arg11: memref<1x16x16xf32, #tpu.memory_space<vmem>>, %arg12: memref<1x1x16xf32, #tpu.memory_space<vmem>>, %arg13: memref<1x16x16xf32, #tpu.memory_space<vmem>>, %arg14: memref<1x16x144xf32, #tpu.memory_space<vmem>>, %arg15: memref<1x1x16xf32, #tpu.memory_space<vmem>>, %arg16: memref<1x16x128xf32, #tpu.memory_space<vmem>>, %arg17: memref<1x1x128xf32, #tpu.memory_space<vmem>>, %arg18: memref<1x8x8x64xf32, #tpu.memory_space<vmem>>, %arg19: memref<8x8x32xf32, #tpu.memory_space<vmem>>, %arg20: memref<8x8x16xf32, #tpu.memory_space<vmem>>, %arg21: memref<8x8x128xf32, #tpu.memory_space<vmem>>) attributes {dimension_semantics = [#tpu.dimension_semantics<parallel>, #tpu.dimension_semantics<parallel>], iteration_bounds = array<i64: 2, 1>, scalar_prefetch = 0 : i64, scratch_operands = 3 : i64, tpu.core_type = #tpu.core_type<tc>, window_params = [{transform_indices = @transform_0, window_bounds = array<i64: 8, 8, 16>}, {transform_indices = @transform_1, window_bounds = array<i64: 8, 8, 16>}, {transform_indices = @transform_2, window_bounds = array<i64: 1, 8, 8, 16>}, {transform_indices = @transform_3, window_bounds = array<i64: 1, 16, 32>}, {transform_indices = @transform_4, window_bounds = array<i64: 1, 1, 32>}, {transform_indices = @transform_5, window_bounds = array<i64: 1, 1, 16>}, {transform_indices = @transform_6, window_bounds = array<i64: 1, 1, 16>}, {transform_indices = @transform_7, window_bounds = array<i64: 1, 32, 144>}, {transform_indices = @transform_8, window_bounds = array<i64: 1, 1, 16>}, {transform_indices = @transform_9, window_bounds = array<i64: 1, 16, 16>}, {transform_indices = @transform_10, window_bounds = array<i64: 1, 1, 16>}, {transform_indices = @transform_11, window_bounds = array<i64: 1, 16, 16>}, {transform_indices = @transform_12, window_bounds = array<i64: 1, 16, 144>}, {transform_indices = @transform_13, window_bounds = array<i64: 1, 1, 16>}, {transform_indices = @transform_14, window_bounds = array<i64: 1, 16, 128>}, {transform_indices = @transform_15, window_bounds = array<i64: 1, 1, 128>}, {transform_indices = @transform_16, window_bounds = array<i64: 1, 8, 8, 64>}]} {
    %c0 = arith.constant 0 : index
    %c0_0 = arith.constant 0 : index
    %c0_1 = arith.constant 0 : index
    %c0_2 = arith.constant 0 : index
    %0 = vector.load %arg4[%c0, %c0_0, %c0_1, %c0_2] : memref<1x8x8x16xf32, #tpu.memory_space<vmem>>, vector<1x8x8x16xf32>
    %1 = vector.shape_cast %0 : vector<1x8x8x16xf32> to vector<8x8x16xf32>
    %2 = vector.shape_cast %1 : vector<8x8x16xf32> to vector<64x16xf32>
    %c0_3 = arith.constant 0 : index
    %c0_4 = arith.constant 0 : index
    %c0_5 = arith.constant 0 : index
    %3 = vector.load %arg3[%c0_3, %c0_4, %c0_5] : memref<8x8x16xf32, #tpu.memory_space<vmem>>, vector<8x8x16xf32>
    %4 = vector.shape_cast %3 : vector<8x8x16xf32> to vector<64x16xf32>
    %c0_6 = arith.constant 0 : index
    %c0_7 = arith.constant 0 : index
    %c0_8 = arith.constant 0 : index
    %5 = vector.load %arg5[%c0_6, %c0_7, %c0_8] : memref<1x16x32xf32, #tpu.memory_space<vmem>>, vector<1x16x32xf32>
    %6 = vector.shape_cast %5 : vector<1x16x32xf32> to vector<16x32xf32>
    %cst = arith.constant dense<0.000000e+00> : vector<64x32xf32>
    %7 = tpu.matmul %2, %6, %cst {dimension_numbers = #tpu.dot_dimension_numbers<[1], [0], [0], [1], [0, 0, 1, 1], [], []>} : vector<64x16xf32>, vector<16x32xf32>, vector<64x32xf32> -> vector<64x32xf32>
    %c0_9 = arith.constant 0 : index
    %c0_10 = arith.constant 0 : index
    %c0_11 = arith.constant 0 : index
    %8 = vector.load %arg6[%c0_9, %c0_10, %c0_11] : memref<1x1x32xf32, #tpu.memory_space<vmem>>, vector<1x1x32xf32>
    %9 = vector.shape_cast %8 : vector<1x1x32xf32> to vector<1x32xf32>
    %10 = vector.broadcast %9 : vector<1x32xf32> to vector<64x32xf32>
    %11 = arith.addf %7, %10 : vector<64x32xf32>
    %cst_12 = arith.constant 0.000000e+00 : f32
    %12 = vector.broadcast %cst_12 : f32 to vector<64x32xf32>
    %13 = arith.maximumf %11, %12 : vector<64x32xf32>
    %cst_13 = arith.constant 0.000000e+00 : f32
    %14 = vector.broadcast %cst_13 : f32 to vector<64x32xf32>
    %15 = arith.subf %14, %13 : vector<64x32xf32>
    %16 = math.exp %15 : vector<64x32xf32>
    %c0_14 = arith.constant 0 : index
    %c0_15 = arith.constant 0 : index
    %c0_16 = arith.constant 0 : index
    %17 = vector.load %arg7[%c0_14, %c0_15, %c0_16] : memref<1x1x16xf32, #tpu.memory_space<vmem>>, vector<1x1x16xf32>
    %18 = vector.shape_cast %17 : vector<1x1x16xf32> to vector<1x16xf32>
    %19 = vector.broadcast %18 : vector<1x16xf32> to vector<64x16xf32>
    %20 = arith.mulf %2, %19 : vector<64x16xf32>
    %c0_17 = arith.constant 0 : index
    %c0_18 = arith.constant 0 : index
    %c0_19 = arith.constant 0 : index
    %21 = vector.load %arg8[%c0_17, %c0_18, %c0_19] : memref<1x1x16xf32, #tpu.memory_space<vmem>>, vector<1x1x16xf32>
    %22 = vector.shape_cast %21 : vector<1x1x16xf32> to vector<1x16xf32>
    %23 = vector.broadcast %22 : vector<1x16xf32> to vector<64x16xf32>
    %24 = arith.addf %20, %23 : vector<64x16xf32>
    %cst_20 = arith.constant 0.000000e+00 : f32
    %25 = vector.broadcast %cst_20 : f32 to vector<64x16xf32>
    %26 = arith.maximumf %24, %25 : vector<64x16xf32>
    %cst_21 = arith.constant 0.000000e+00 : f32
    %27 = vector.broadcast %cst_21 : f32 to vector<64x16xf32>
    %28 = arith.subf %27, %26 : vector<64x16xf32>
    %29 = math.exp %28 : vector<64x16xf32>
    %c0_22 = arith.constant 0 : index
    %c0_23 = arith.constant 0 : index
    %c0_24 = arith.constant 0 : index
    %30 = vector.load %arg14[%c0_22, %c0_23, %c0_24] : memref<1x16x144xf32, #tpu.memory_space<vmem>>, vector<1x16x144xf32>
    %31 = vector.shape_cast %30 : vector<1x16x144xf32> to vector<16x144xf32>
    %cst_25 = arith.constant dense<0.000000e+00> : vector<64x144xf32>
    %32 = tpu.matmul %4, %31, %cst_25 {dimension_numbers = #tpu.dot_dimension_numbers<[1], [0], [0], [1], [0, 0, 1, 1], [], []>} : vector<64x16xf32>, vector<16x144xf32>, vector<64x144xf32> -> vector<64x144xf32>
    %c0_26 = arith.constant 0 : index
    %c0_27 = arith.constant 0 : index
    %c0_28 = arith.constant 0 : index
    %33 = vector.load %arg13[%c0_26, %c0_27, %c0_28] : memref<1x16x16xf32, #tpu.memory_space<vmem>>, vector<1x16x16xf32>
    %34 = vector.shape_cast %33 : vector<1x16x16xf32> to vector<16x16xf32>
    %cst_29 = arith.constant dense<0.000000e+00> : vector<64x16xf32>
    %35 = tpu.matmul %29, %34, %cst_29 {dimension_numbers = #tpu.dot_dimension_numbers<[1], [0], [0], [1], [0, 0, 1, 1], [], []>} : vector<64x16xf32>, vector<16x16xf32>, vector<64x16xf32> -> vector<64x16xf32>
    %36 = vector.extract_strided_slice %32 {offsets = [0, 128], sizes = [64, 16], strides = [1, 1]} : vector<64x144xf32> to vector<64x16xf32>
    %37 = arith.addf %35, %36 : vector<64x16xf32>
    %c0_30 = arith.constant 0 : index
    %c0_31 = arith.constant 0 : index
    %c0_32 = arith.constant 0 : index
    %38 = vector.load %arg15[%c0_30, %c0_31, %c0_32] : memref<1x1x16xf32, #tpu.memory_space<vmem>>, vector<1x1x16xf32>
    %39 = vector.shape_cast %38 : vector<1x1x16xf32> to vector<1x16xf32>
    %40 = vector.broadcast %39 : vector<1x16xf32> to vector<64x16xf32>
    %41 = arith.addf %37, %40 : vector<64x16xf32>
    %42 = arith.negf %41 : vector<64x16xf32>
    %43 = math.exp %42 : vector<64x16xf32>
    %cst_33 = arith.constant 1.000000e+00 : f32
    %44 = vector.broadcast %cst_33 : f32 to vector<64x16xf32>
    %45 = arith.addf %44, %43 : vector<64x16xf32>
    %46 = arith.divf %44, %45 : vector<64x16xf32>
    %47 = vector.shape_cast %16 : vector<64x32xf32> to vector<8x8x32xf32>
    %c0_34 = arith.constant 0 : index
    %c0_35 = arith.constant 0 : index
    %c0_36 = arith.constant 0 : index
    %48 = vector.load %arg19[%c0_34, %c0_35, %c0_36] : memref<8x8x32xf32, #tpu.memory_space<vmem>>, vector<8x8x32xf32>
    tpu.vector_store %arg19[%c0_34, %c0_35, %c0_36], %47 {strides = array<i32>} : memref<8x8x32xf32, #tpu.memory_space<vmem>>, vector<8x8x32xf32>,
    %49 = vector.shape_cast %46 : vector<64x16xf32> to vector<8x8x16xf32>
    %c0_37 = arith.constant 0 : index
    %c0_38 = arith.constant 0 : index
    %c0_39 = arith.constant 0 : index
    %50 = vector.load %arg20[%c0_37, %c0_38, %c0_39] : memref<8x8x16xf32, #tpu.memory_space<vmem>>, vector<8x8x16xf32>
    tpu.vector_store %arg20[%c0_37, %c0_38, %c0_39], %49 {strides = array<i32>} : memref<8x8x16xf32, #tpu.memory_space<vmem>>, vector<8x8x16xf32>,
    %51 = vector.extract_strided_slice %32 {offsets = [0, 0], sizes = [64, 128], strides = [1, 1]} : vector<64x144xf32> to vector<64x128xf32>
    %c0_40 = arith.constant 0 : index
    %c0_41 = arith.constant 0 : index
    %c0_42 = arith.constant 0 : index
    %52 = vector.load %arg17[%c0_40, %c0_41, %c0_42] : memref<1x1x128xf32, #tpu.memory_space<vmem>>, vector<1x1x128xf32>
    %53 = vector.shape_cast %52 : vector<1x1x128xf32> to vector<1x128xf32>
    %54 = vector.broadcast %53 : vector<1x128xf32> to vector<64x128xf32>
    %55 = arith.addf %51, %54 : vector<64x128xf32>
    %56 = vector.shape_cast %55 : vector<64x128xf32> to vector<8x8x128xf32>
    %c0_43 = arith.constant 0 : index
    %c0_44 = arith.constant 0 : index
    %c0_45 = arith.constant 0 : index
    %57 = vector.load %arg21[%c0_43, %c0_44, %c0_45] : memref<8x8x128xf32, #tpu.memory_space<vmem>>, vector<8x8x128xf32>
    tpu.vector_store %arg21[%c0_43, %c0_44, %c0_45], %56 {strides = array<i32>} : memref<8x8x128xf32, #tpu.memory_space<vmem>>, vector<8x8x128xf32>,
    %c0_46 = arith.constant 0 : index
    %c0_47 = arith.constant 0 : index
    %c0_48 = arith.constant 0 : index
    %58 = vector.load %arg9[%c0_46, %c0_47, %c0_48] : memref<1x32x144xf32, #tpu.memory_space<vmem>>, vector<1x32x144xf32>
    %59 = vector.shape_cast %58 : vector<1x32x144xf32> to vector<32x144xf32>
    %c0_49 = arith.constant 0 : index
    %c0_50 = arith.constant 0 : index
    %c0_51 = arith.constant 0 : index
    %60 = vector.load %arg11[%c0_49, %c0_50, %c0_51] : memref<1x16x16xf32, #tpu.memory_space<vmem>>, vector<1x16x16xf32>
    %61 = vector.shape_cast %60 : vector<1x16x16xf32> to vector<16x16xf32>
    %c0_52 = arith.constant 0 : index
    %c0_53 = arith.constant 0 : index
    %c0_54 = arith.constant 0 : index
    %62 = vector.load %arg16[%c0_52, %c0_53, %c0_54] : memref<1x16x128xf32, #tpu.memory_space<vmem>>, vector<1x16x128xf32>
    %63 = vector.shape_cast %62 : vector<1x16x128xf32> to vector<16x128xf32>
    %c0_55 = arith.constant 0 : index
    %c0_56 = arith.constant 0 : index
    %c0_57 = arith.constant 0 : index
    %64 = vector.load %arg10[%c0_55, %c0_56, %c0_57] : memref<1x1x16xf32, #tpu.memory_space<vmem>>, vector<1x1x16xf32>
    %65 = vector.shape_cast %64 : vector<1x1x16xf32> to vector<1x16xf32>
    %66 = vector.shape_cast %65 : vector<1x16xf32> to vector<1x16xf32>
    %67 = vector.broadcast %66 : vector<1x16xf32> to vector<8x16xf32>
    %c0_58 = arith.constant 0 : index
    %c0_59 = arith.constant 0 : index
    %c0_60 = arith.constant 0 : index
    %68 = vector.load %arg12[%c0_58, %c0_59, %c0_60] : memref<1x1x16xf32, #tpu.memory_space<vmem>>, vector<1x1x16xf32>
    %69 = vector.shape_cast %68 : vector<1x1x16xf32> to vector<1x16xf32>
    %70 = vector.shape_cast %69 : vector<1x16xf32> to vector<1x16xf32>
    %71 = vector.broadcast %70 : vector<1x16xf32> to vector<8x16xf32>
    %72 = tpu.iota {dimensions = array<i32: 1>} : vector<8x128xi32>
    %c64_i32 = arith.constant 64 : i32
    %73 = vector.broadcast %c64_i32 : i32 to vector<8x128xi32>
    %74 = arith.cmpi sge, %72, %73 : vector<8x128xi32>
    %c96_i32 = arith.constant 96 : i32
    %75 = vector.broadcast %c96_i32 : i32 to vector<8x128xi32>
    %76 = arith.cmpi slt, %72, %75 : vector<8x128xi32>
    %77 = arith.andi %74, %76 : vector<8x128xi1>
    %cst_61 = arith.constant 0.000000e+00 : f32
    %78 = vector.broadcast %cst_61 : f32 to vector<8x32xf32>
    %cst_62 = arith.constant 0.000000e+00 : f32
    %79 = vector.broadcast %cst_62 : f32 to vector<8x32xf32>
    %c0_i32 = arith.constant 0 : i32
    %c0_i32_63 = arith.constant 0 : i32
    %80 = arith.cmpi eq, %arg0, %c0_i32_63 : i32
    %c7_i32 = arith.constant 7 : i32
    %81 = arith.subi %c7_i32, %c0_i32 : i32
    %82 = arith.select %80, %c0_i32, %81 : i32
    %83 = arith.index_cast %82 : i32 to index
    %c0_64 = arith.constant 0 : index
    %c0_65 = arith.constant 0 : index
    %84 = vector.load %arg2[%83, %c0_64, %c0_65] : memref<8x8x16xf32, #tpu.memory_space<vmem>>, vector<1x8x16xf32>
    %85 = vector.shape_cast %84 : vector<1x8x16xf32> to vector<8x16xf32>
    %86 = arith.index_cast %82 : i32 to index
    %c0_66 = arith.constant 0 : index
    %c0_67 = arith.constant 0 : index
    %87 = vector.load %arg3[%86, %c0_66, %c0_67] : memref<8x8x16xf32, #tpu.memory_space<vmem>>, vector<1x8x16xf32>
    %88 = vector.shape_cast %87 : vector<1x8x16xf32> to vector<8x16xf32>
    %89 = arith.index_cast %82 : i32 to index
    %c0_68 = arith.constant 0 : index
    %c0_69 = arith.constant 0 : index
    %90 = vector.load %arg19[%89, %c0_68, %c0_69] : memref<8x8x32xf32, #tpu.memory_space<vmem>>, vector<1x8x32xf32>
    %91 = vector.shape_cast %90 : vector<1x8x32xf32> to vector<8x32xf32>
    %92 = arith.mulf %78, %91 : vector<8x32xf32>
    %cst_70 = arith.constant dense<0.000000e+00> : vector<8x144xf32>
    %93 = tpu.matmul %92, %59, %cst_70 {dimension_numbers = #tpu.dot_dimension_numbers<[1], [0], [0], [1], [0, 0, 1, 1], [], []>} : vector<8x32xf32>, vector<32x144xf32>, vector<8x144xf32> -> vector<8x144xf32>
    %94 = vector.extract_strided_slice %93 {offsets = [0, 0], sizes = [8, 128], strides = [1, 1]} : vector<8x144xf32> to vector<8x128xf32>
    %95 = vector.extract_strided_slice %93 {offsets = [0, 128], sizes = [8, 16], strides = [1, 1]} : vector<8x144xf32> to vector<8x16xf32>
    %96 = arith.addf %95, %67 : vector<8x16xf32>
    %cst_71 = arith.constant 0.000000e+00 : f32
    %97 = vector.broadcast %cst_71 : f32 to vector<8x16xf32>
    %98 = arith.cmpf ogt, %88, %97 : vector<8x16xf32>
    %99 = arith.select %98, %85, %96 : vector<8x16xi1>, vector<8x16xf32>
    %cst_72 = arith.constant dense<0.000000e+00> : vector<8x16xf32>
    %100 = tpu.matmul %99, %61, %cst_72 {dimension_numbers = #tpu.dot_dimension_numbers<[1], [0], [0], [1], [0, 0, 1, 1], [], []>} : vector<8x16xf32>, vector<16x16xf32>, vector<8x16xf32> -> vector<8x16xf32>
    %101 = arith.addf %100, %71 : vector<8x16xf32>
    %102 = arith.index_cast %82 : i32 to index
    %c0_73 = arith.constant 0 : index
    %c0_74 = arith.constant 0 : index
    %103 = vector.load %arg20[%102, %c0_73, %c0_74] : memref<8x8x16xf32, #tpu.memory_space<vmem>>, vector<1x8x16xf32>
    %104 = vector.shape_cast %103 : vector<1x8x16xf32> to vector<8x16xf32>
    %105 = arith.mulf %104, %101 : vector<8x16xf32>
    %cst_75 = arith.constant 1.000000e+00 : f32
    %106 = vector.broadcast %cst_75 : f32 to vector<8x16xf32>
    %107 = arith.subf %106, %104 : vector<8x16xf32>
    %108 = arith.mulf %107, %96 : vector<8x16xf32>
    %109 = arith.addf %105, %108 : vector<8x16xf32>
    %110 = arith.select %98, %85, %109 : vector<8x16xi1>, vector<8x16xf32>
    %cst_76 = arith.constant dense<0.000000e+00> : vector<8x128xf32>
    %111 = tpu.matmul %110, %63, %cst_76 {dimension_numbers = #tpu.dot_dimension_numbers<[1], [0], [0], [1], [0, 0, 1, 1], [], []>} : vector<8x16xf32>, vector<16x128xf32>, vector<8x128xf32> -> vector<8x128xf32>
    %112 = arith.index_cast %82 : i32 to index
    %c0_77 = arith.constant 0 : index
    %c0_78 = arith.constant 0 : index
    %113 = vector.load %arg21[%112, %c0_77, %c0_78] : memref<8x8x128xf32, #tpu.memory_space<vmem>>, vector<1x8x128xf32>
    %114 = vector.shape_cast %113 : vector<1x8x128xf32> to vector<8x128xf32>
    %115 = arith.addf %111, %114 : vector<8x128xf32>
    %116 = arith.addf %115, %94 : vector<8x128xf32>
    %117 = math.tanh %116 : vector<8x128xf32>
    %118 = arith.negf %116 : vector<8x128xf32>
    %119 = math.exp %118 : vector<8x128xf32>
    %cst_79 = arith.constant 1.000000e+00 : f32
    %120 = vector.broadcast %cst_79 : f32 to vector<8x128xf32>
    %121 = arith.addf %120, %119 : vector<8x128xf32>
    %122 = arith.divf %120, %121 : vector<8x128xf32>
    %123 = arith.select %77, %117, %122 : vector<8x128xi1>, vector<8x128xf32>
    %124 = vector.extract_strided_slice %123 {offsets = [0, 0], sizes = [8, 32], strides = [1, 1]} : vector<8x128xf32> to vector<8x32xf32>
    %125 = vector.extract_strided_slice %123 {offsets = [0, 32], sizes = [8, 32], strides = [1, 1]} : vector<8x128xf32> to vector<8x32xf32>
    %126 = vector.extract_strided_slice %123 {offsets = [0, 64], sizes = [8, 32], strides = [1, 1]} : vector<8x128xf32> to vector<8x32xf32>
    %127 = vector.extract_strided_slice %123 {offsets = [0, 96], sizes = [8, 32], strides = [1, 1]} : vector<8x128xf32> to vector<8x32xf32>
    %128 = arith.mulf %125, %79 : vector<8x32xf32>
    %129 = arith.mulf %124, %126 : vector<8x32xf32>
    %130 = arith.addf %128, %129 : vector<8x32xf32>
    %131 = math.tanh %130 : vector<8x32xf32>
    %132 = arith.mulf %127, %131 : vector<8x32xf32>
    %133 = tpu.concatenate %110, %96, %101, %109 in 1 : vector<8x16xf32>, vector<8x16xf32>, vector<8x16xf32>, vector<8x16xf32> -> vector<8x64xf32>
    %c0_80 = arith.constant 0 : index
    %134 = arith.index_cast %82 : i32 to index
    %c0_81 = arith.constant 0 : index
    %c0_82 = arith.constant 0 : index
    %135 = vector.load %arg18[%c0_80, %134, %c0_81, %c0_82] : memref<1x8x8x64xf32, #tpu.memory_space<vmem>>, vector<1x1x8x64xf32>
    %136 = vector.shape_cast %135 : vector<1x1x8x64xf32> to vector<8x64xf32>
    %137 = vector.shape_cast %133 : vector<8x64xf32> to vector<1x1x8x64xf32>
    tpu.vector_store %arg18[%c0_80, %134, %c0_81, %c0_82], %137 {strides = array<i32>} : memref<1x8x8x64xf32, #tpu.memory_space<vmem>>, vector<1x1x8x64xf32>,
    %c1_i32 = arith.constant 1 : i32
    %c0_i32_83 = arith.constant 0 : i32
    %138 = arith.cmpi eq, %arg0, %c0_i32_83 : i32
    %c7_i32_84 = arith.constant 7 : i32
    %139 = arith.subi %c7_i32_84, %c1_i32 : i32
    %140 = arith.select %138, %c1_i32, %139 : i32
    %141 = arith.index_cast %140 : i32 to index
    %c0_85 = arith.constant 0 : index
    %c0_86 = arith.constant 0 : index
    %142 = vector.load %arg2[%141, %c0_85, %c0_86] : memref<8x8x16xf32, #tpu.memory_space<vmem>>, vector<1x8x16xf32>
    %143 = vector.shape_cast %142 : vector<1x8x16xf32> to vector<8x16xf32>
    %144 = arith.index_cast %140 : i32 to index
    %c0_87 = arith.constant 0 : index
    %c0_88 = arith.constant 0 : index
    %145 = vector.load %arg3[%144, %c0_87, %c0_88] : memref<8x8x16xf32, #tpu.memory_space<vmem>>, vector<1x8x16xf32>
    %146 = vector.shape_cast %145 : vector<1x8x16xf32> to vector<8x16xf32>
    %147 = arith.index_cast %140 : i32 to index
    %c0_89 = arith.constant 0 : index
    %c0_90 = arith.constant 0 : index
    %148 = vector.load %arg19[%147, %c0_89, %c0_90] : memref<8x8x32xf32, #tpu.memory_space<vmem>>, vector<1x8x32xf32>
    %149 = vector.shape_cast %148 : vector<1x8x32xf32> to vector<8x32xf32>
    %150 = arith.mulf %132, %149 : vector<8x32xf32>
    %cst_91 = arith.constant dense<0.000000e+00> : vector<8x144xf32>
    %151 = tpu.matmul %150, %59, %cst_91 {dimension_numbers = #tpu.dot_dimension_numbers<[1], [0], [0], [1], [0, 0, 1, 1], [], []>} : vector<8x32xf32>, vector<32x144xf32>, vector<8x144xf32> -> vector<8x144xf32>
    %152 = vector.extract_strided_slice %151 {offsets = [0, 0], sizes = [8, 128], strides = [1, 1]} : vector<8x144xf32> to vector<8x128xf32>
    %153 = vector.extract_strided_slice %151 {offsets = [0, 128], sizes = [8, 16], strides = [1, 1]} : vector<8x144xf32> to vector<8x16xf32>
    %154 = arith.addf %153, %67 : vector<8x16xf32>
    %cst_92 = arith.constant 0.000000e+00 : f32
    %155 = vector.broadcast %cst_92 : f32 to vector<8x16xf32>
    %156 = arith.cmpf ogt, %146, %155 : vector<8x16xf32>
    %157 = arith.select %156, %143, %154 : vector<8x16xi1>, vector<8x16xf32>
    %cst_93 = arith.constant dense<0.000000e+00> : vector<8x16xf32>
    %158 = tpu.matmul %157, %61, %cst_93 {dimension_numbers = #tpu.dot_dimension_numbers<[1], [0], [0], [1], [0, 0, 1, 1], [], []>} : vector<8x16xf32>, vector<16x16xf32>, vector<8x16xf32> -> vector<8x16xf32>
    %159 = arith.addf %158, %71 : vector<8x16xf32>
    %160 = arith.index_cast %140 : i32 to index
    %c0_94 = arith.constant 0 : index
    %c0_95 = arith.constant 0 : index
    %161 = vector.load %arg20[%160, %c0_94, %c0_95] : memref<8x8x16xf32, #tpu.memory_space<vmem>>, vector<1x8x16xf32>
    %162 = vector.shape_cast %161 : vector<1x8x16xf32> to vector<8x16xf32>
    %163 = arith.mulf %162, %159 : vector<8x16xf32>
    %cst_96 = arith.constant 1.000000e+00 : f32
    %164 = vector.broadcast %cst_96 : f32 to vector<8x16xf32>
    %165 = arith.subf %164, %162 : vector<8x16xf32>
    %166 = arith.mulf %165, %154 : vector<8x16xf32>
    %167 = arith.addf %163, %166 : vector<8x16xf32>
    %168 = arith.select %156, %143, %167 : vector<8x16xi1>, vector<8x16xf32>
    %cst_97 = arith.constant dense<0.000000e+00> : vector<8x128xf32>
    %169 = tpu.matmul %168, %63, %cst_97 {dimension_numbers = #tpu.dot_dimension_numbers<[1], [0], [0], [1], [0, 0, 1, 1], [], []>} : vector<8x16xf32>, vector<16x128xf32>, vector<8x128xf32> -> vector<8x128xf32>
    %170 = arith.index_cast %140 : i32 to index
    %c0_98 = arith.constant 0 : index
    %c0_99 = arith.constant 0 : index
    %171 = vector.load %arg21[%170, %c0_98, %c0_99] : memref<8x8x128xf32, #tpu.memory_space<vmem>>, vector<1x8x128xf32>
    %172 = vector.shape_cast %171 : vector<1x8x128xf32> to vector<8x128xf32>
    %173 = arith.addf %169, %172 : vector<8x128xf32>
    %174 = arith.addf %173, %152 : vector<8x128xf32>
    %175 = math.tanh %174 : vector<8x128xf32>
    %176 = arith.negf %174 : vector<8x128xf32>
    %177 = math.exp %176 : vector<8x128xf32>
    %cst_100 = arith.constant 1.000000e+00 : f32
    %178 = vector.broadcast %cst_100 : f32 to vector<8x128xf32>
    %179 = arith.addf %178, %177 : vector<8x128xf32>
    %180 = arith.divf %178, %179 : vector<8x128xf32>
    %181 = arith.select %77, %175, %180 : vector<8x128xi1>, vector<8x128xf32>
    %182 = vector.extract_strided_slice %181 {offsets = [0, 0], sizes = [8, 32], strides = [1, 1]} : vector<8x128xf32> to vector<8x32xf32>
    %183 = vector.extract_strided_slice %181 {offsets = [0, 32], sizes = [8, 32], strides = [1, 1]} : vector<8x128xf32> to vector<8x32xf32>
    %184 = vector.extract_strided_slice %181 {offsets = [0, 64], sizes = [8, 32], strides = [1, 1]} : vector<8x128xf32> to vector<8x32xf32>
    %185 = vector.extract_strided_slice %181 {offsets = [0, 96], sizes = [8, 32], strides = [1, 1]} : vector<8x128xf32> to vector<8x32xf32>
    %186 = arith.mulf %183, %130 : vector<8x32xf32>
    %187 = arith.mulf %182, %184 : vector<8x32xf32>
    %188 = arith.addf %186, %187 : vector<8x32xf32>
    %189 = math.tanh %188 : vector<8x32xf32>
    %190 = arith.mulf %185, %189 : vector<8x32xf32>
    %191 = tpu.concatenate %168, %154, %159, %167 in 1 : vector<8x16xf32>, vector<8x16xf32>, vector<8x16xf32>, vector<8x16xf32> -> vector<8x64xf32>
    %c0_101 = arith.constant 0 : index
    %192 = arith.index_cast %140 : i32 to index
    %c0_102 = arith.constant 0 : index
    %c0_103 = arith.constant 0 : index
    %193 = vector.load %arg18[%c0_101, %192, %c0_102, %c0_103] : memref<1x8x8x64xf32, #tpu.memory_space<vmem>>, vector<1x1x8x64xf32>
    %194 = vector.shape_cast %193 : vector<1x1x8x64xf32> to vector<8x64xf32>
    %195 = vector.shape_cast %191 : vector<8x64xf32> to vector<1x1x8x64xf32>
    tpu.vector_store %arg18[%c0_101, %192, %c0_102, %c0_103], %195 {strides = array<i32>} : memref<1x8x8x64xf32, #tpu.memory_space<vmem>>, vector<1x1x8x64xf32>,
    %c2_i32 = arith.constant 2 : i32
    %c0_i32_104 = arith.constant 0 : i32
    %196 = arith.cmpi eq, %arg0, %c0_i32_104 : i32
    %c7_i32_105 = arith.constant 7 : i32
    %197 = arith.subi %c7_i32_105, %c2_i32 : i32
    %198 = arith.select %196, %c2_i32, %197 : i32
    %199 = arith.index_cast %198 : i32 to index
    %c0_106 = arith.constant 0 : index
    %c0_107 = arith.constant 0 : index
    %200 = vector.load %arg2[%199, %c0_106, %c0_107] : memref<8x8x16xf32, #tpu.memory_space<vmem>>, vector<1x8x16xf32>
    %201 = vector.shape_cast %200 : vector<1x8x16xf32> to vector<8x16xf32>
    %202 = arith.index_cast %198 : i32 to index
    %c0_108 = arith.constant 0 : index
    %c0_109 = arith.constant 0 : index
    %203 = vector.load %arg3[%202, %c0_108, %c0_109] : memref<8x8x16xf32, #tpu.memory_space<vmem>>, vector<1x8x16xf32>
    %204 = vector.shape_cast %203 : vector<1x8x16xf32> to vector<8x16xf32>
    %205 = arith.index_cast %198 : i32 to index
    %c0_110 = arith.constant 0 : index
    %c0_111 = arith.constant 0 : index
    %206 = vector.load %arg19[%205, %c0_110, %c0_111] : memref<8x8x32xf32, #tpu.memory_space<vmem>>, vector<1x8x32xf32>
    %207 = vector.shape_cast %206 : vector<1x8x32xf32> to vector<8x32xf32>
    %208 = arith.mulf %190, %207 : vector<8x32xf32>
    %cst_112 = arith.constant dense<0.000000e+00> : vector<8x144xf32>
    %209 = tpu.matmul %208, %59, %cst_112 {dimension_numbers = #tpu.dot_dimension_numbers<[1], [0], [0], [1], [0, 0, 1, 1], [], []>} : vector<8x32xf32>, vector<32x144xf32>, vector<8x144xf32> -> vector<8x144xf32>
    %210 = vector.extract_strided_slice %209 {offsets = [0, 0], sizes = [8, 128], strides = [1, 1]} : vector<8x144xf32> to vector<8x128xf32>
    %211 = vector.extract_strided_slice %209 {offsets = [0, 128], sizes = [8, 16], strides = [1, 1]} : vector<8x144xf32> to vector<8x16xf32>
    %212 = arith.addf %211, %67 : vector<8x16xf32>
    %cst_113 = arith.constant 0.000000e+00 : f32
    %213 = vector.broadcast %cst_113 : f32 to vector<8x16xf32>
    %214 = arith.cmpf ogt, %204, %213 : vector<8x16xf32>
    %215 = arith.select %214, %201, %212 : vector<8x16xi1>, vector<8x16xf32>
    %cst_114 = arith.constant dense<0.000000e+00> : vector<8x16xf32>
    %216 = tpu.matmul %215, %61, %cst_114 {dimension_numbers = #tpu.dot_dimension_numbers<[1], [0], [0], [1], [0, 0, 1, 1], [], []>} : vector<8x16xf32>, vector<16x16xf32>, vector<8x16xf32> -> vector<8x16xf32>
    %217 = arith.addf %216, %71 : vector<8x16xf32>
    %218 = arith.index_cast %198 : i32 to index
    %c0_115 = arith.constant 0 : index
    %c0_116 = arith.constant 0 : index
    %219 = vector.load %arg20[%218, %c0_115, %c0_116] : memref<8x8x16xf32, #tpu.memory_space<vmem>>, vector<1x8x16xf32>
    %220 = vector.shape_cast %219 : vector<1x8x16xf32> to vector<8x16xf32>
    %221 = arith.mulf %220, %217 : vector<8x16xf32>
    %cst_117 = arith.constant 1.000000e+00 : f32
    %222 = vector.broadcast %cst_117 : f32 to vector<8x16xf32>
    %223 = arith.subf %222, %220 : vector<8x16xf32>
    %224 = arith.mulf %223, %212 : vector<8x16xf32>
    %225 = arith.addf %221, %224 : vector<8x16xf32>
    %226 = arith.select %214, %201, %225 : vector<8x16xi1>, vector<8x16xf32>
    %cst_118 = arith.constant dense<0.000000e+00> : vector<8x128xf32>
    %227 = tpu.matmul %226, %63, %cst_118 {dimension_numbers = #tpu.dot_dimension_numbers<[1], [0], [0], [1], [0, 0, 1, 1], [], []>} : vector<8x16xf32>, vector<16x128xf32>, vector<8x128xf32> -> vector<8x128xf32>
    %228 = arith.index_cast %198 : i32 to index
    %c0_119 = arith.constant 0 : index
    %c0_120 = arith.constant 0 : index
    %229 = vector.load %arg21[%228, %c0_119, %c0_120] : memref<8x8x128xf32, #tpu.memory_space<vmem>>, vector<1x8x128xf32>
    %230 = vector.shape_cast %229 : vector<1x8x128xf32> to vector<8x128xf32>
    %231 = arith.addf %227, %230 : vector<8x128xf32>
    %232 = arith.addf %231, %210 : vector<8x128xf32>
    %233 = math.tanh %232 : vector<8x128xf32>
    %234 = arith.negf %232 : vector<8x128xf32>
    %235 = math.exp %234 : vector<8x128xf32>
    %cst_121 = arith.constant 1.000000e+00 : f32
    %236 = vector.broadcast %cst_121 : f32 to vector<8x128xf32>
    %237 = arith.addf %236, %235 : vector<8x128xf32>
    %238 = arith.divf %236, %237 : vector<8x128xf32>
    %239 = arith.select %77, %233, %238 : vector<8x128xi1>, vector<8x128xf32>
    %240 = vector.extract_strided_slice %239 {offsets = [0, 0], sizes = [8, 32], strides = [1, 1]} : vector<8x128xf32> to vector<8x32xf32>
    %241 = vector.extract_strided_slice %239 {offsets = [0, 32], sizes = [8, 32], strides = [1, 1]} : vector<8x128xf32> to vector<8x32xf32>
    %242 = vector.extract_strided_slice %239 {offsets = [0, 64], sizes = [8, 32], strides = [1, 1]} : vector<8x128xf32> to vector<8x32xf32>
    %243 = vector.extract_strided_slice %239 {offsets = [0, 96], sizes = [8, 32], strides = [1, 1]} : vector<8x128xf32> to vector<8x32xf32>
    %244 = arith.mulf %241, %188 : vector<8x32xf32>
    %245 = arith.mulf %240, %242 : vector<8x32xf32>
    %246 = arith.addf %244, %245 : vector<8x32xf32>
    %247 = math.tanh %246 : vector<8x32xf32>
    %248 = arith.mulf %243, %247 : vector<8x32xf32>
    %249 = tpu.concatenate %226, %212, %217, %225 in 1 : vector<8x16xf32>, vector<8x16xf32>, vector<8x16xf32>, vector<8x16xf32> -> vector<8x64xf32>
    %c0_122 = arith.constant 0 : index
    %250 = arith.index_cast %198 : i32 to index
    %c0_123 = arith.constant 0 : index
    %c0_124 = arith.constant 0 : index
    %251 = vector.load %arg18[%c0_122, %250, %c0_123, %c0_124] : memref<1x8x8x64xf32, #tpu.memory_space<vmem>>, vector<1x1x8x64xf32>
    %252 = vector.shape_cast %251 : vector<1x1x8x64xf32> to vector<8x64xf32>
    %253 = vector.shape_cast %249 : vector<8x64xf32> to vector<1x1x8x64xf32>
    tpu.vector_store %arg18[%c0_122, %250, %c0_123, %c0_124], %253 {strides = array<i32>} : memref<1x8x8x64xf32, #tpu.memory_space<vmem>>, vector<1x1x8x64xf32>,
    %c3_i32 = arith.constant 3 : i32
    %c0_i32_125 = arith.constant 0 : i32
    %254 = arith.cmpi eq, %arg0, %c0_i32_125 : i32
    %c7_i32_126 = arith.constant 7 : i32
    %255 = arith.subi %c7_i32_126, %c3_i32 : i32
    %256 = arith.select %254, %c3_i32, %255 : i32
    %257 = arith.index_cast %256 : i32 to index
    %c0_127 = arith.constant 0 : index
    %c0_128 = arith.constant 0 : index
    %258 = vector.load %arg2[%257, %c0_127, %c0_128] : memref<8x8x16xf32, #tpu.memory_space<vmem>>, vector<1x8x16xf32>
    %259 = vector.shape_cast %258 : vector<1x8x16xf32> to vector<8x16xf32>
    %260 = arith.index_cast %256 : i32 to index
    %c0_129 = arith.constant 0 : index
    %c0_130 = arith.constant 0 : index
    %261 = vector.load %arg3[%260, %c0_129, %c0_130] : memref<8x8x16xf32, #tpu.memory_space<vmem>>, vector<1x8x16xf32>
    %262 = vector.shape_cast %261 : vector<1x8x16xf32> to vector<8x16xf32>
    %263 = arith.index_cast %256 : i32 to index
    %c0_131 = arith.constant 0 : index
    %c0_132 = arith.constant 0 : index
    %264 = vector.load %arg19[%263, %c0_131, %c0_132] : memref<8x8x32xf32, #tpu.memory_space<vmem>>, vector<1x8x32xf32>
    %265 = vector.shape_cast %264 : vector<1x8x32xf32> to vector<8x32xf32>
    %266 = arith.mulf %248, %265 : vector<8x32xf32>
    %cst_133 = arith.constant dense<0.000000e+00> : vector<8x144xf32>
    %267 = tpu.matmul %266, %59, %cst_133 {dimension_numbers = #tpu.dot_dimension_numbers<[1], [0], [0], [1], [0, 0, 1, 1], [], []>} : vector<8x32xf32>, vector<32x144xf32>, vector<8x144xf32> -> vector<8x144xf32>
    %268 = vector.extract_strided_slice %267 {offsets = [0, 0], sizes = [8, 128], strides = [1, 1]} : vector<8x144xf32> to vector<8x128xf32>
    %269 = vector.extract_strided_slice %267 {offsets = [0, 128], sizes = [8, 16], strides = [1, 1]} : vector<8x144xf32> to vector<8x16xf32>
    %270 = arith.addf %269, %67 : vector<8x16xf32>
    %cst_134 = arith.constant 0.000000e+00 : f32
    %271 = vector.broadcast %cst_134 : f32 to vector<8x16xf32>
    %272 = arith.cmpf ogt, %262, %271 : vector<8x16xf32>
    %273 = arith.select %272, %259, %270 : vector<8x16xi1>, vector<8x16xf32>
    %cst_135 = arith.constant dense<0.000000e+00> : vector<8x16xf32>
    %274 = tpu.matmul %273, %61, %cst_135 {dimension_numbers = #tpu.dot_dimension_numbers<[1], [0], [0], [1], [0, 0, 1, 1], [], []>} : vector<8x16xf32>, vector<16x16xf32>, vector<8x16xf32> -> vector<8x16xf32>
    %275 = arith.addf %274, %71 : vector<8x16xf32>
    %276 = arith.index_cast %256 : i32 to index
    %c0_136 = arith.constant 0 : index
    %c0_137 = arith.constant 0 : index
    %277 = vector.load %arg20[%276, %c0_136, %c0_137] : memref<8x8x16xf32, #tpu.memory_space<vmem>>, vector<1x8x16xf32>
    %278 = vector.shape_cast %277 : vector<1x8x16xf32> to vector<8x16xf32>
    %279 = arith.mulf %278, %275 : vector<8x16xf32>
    %cst_138 = arith.constant 1.000000e+00 : f32
    %280 = vector.broadcast %cst_138 : f32 to vector<8x16xf32>
    %281 = arith.subf %280, %278 : vector<8x16xf32>
    %282 = arith.mulf %281, %270 : vector<8x16xf32>
    %283 = arith.addf %279, %282 : vector<8x16xf32>
    %284 = arith.select %272, %259, %283 : vector<8x16xi1>, vector<8x16xf32>
    %cst_139 = arith.constant dense<0.000000e+00> : vector<8x128xf32>
    %285 = tpu.matmul %284, %63, %cst_139 {dimension_numbers = #tpu.dot_dimension_numbers<[1], [0], [0], [1], [0, 0, 1, 1], [], []>} : vector<8x16xf32>, vector<16x128xf32>, vector<8x128xf32> -> vector<8x128xf32>
    %286 = arith.index_cast %256 : i32 to index
    %c0_140 = arith.constant 0 : index
    %c0_141 = arith.constant 0 : index
    %287 = vector.load %arg21[%286, %c0_140, %c0_141] : memref<8x8x128xf32, #tpu.memory_space<vmem>>, vector<1x8x128xf32>
    %288 = vector.shape_cast %287 : vector<1x8x128xf32> to vector<8x128xf32>
    %289 = arith.addf %285, %288 : vector<8x128xf32>
    %290 = arith.addf %289, %268 : vector<8x128xf32>
    %291 = math.tanh %290 : vector<8x128xf32>
    %292 = arith.negf %290 : vector<8x128xf32>
    %293 = math.exp %292 : vector<8x128xf32>
    %cst_142 = arith.constant 1.000000e+00 : f32
    %294 = vector.broadcast %cst_142 : f32 to vector<8x128xf32>
    %295 = arith.addf %294, %293 : vector<8x128xf32>
    %296 = arith.divf %294, %295 : vector<8x128xf32>
    %297 = arith.select %77, %291, %296 : vector<8x128xi1>, vector<8x128xf32>
    %298 = vector.extract_strided_slice %297 {offsets = [0, 0], sizes = [8, 32], strides = [1, 1]} : vector<8x128xf32> to vector<8x32xf32>
    %299 = vector.extract_strided_slice %297 {offsets = [0, 32], sizes = [8, 32], strides = [1, 1]} : vector<8x128xf32> to vector<8x32xf32>
    %300 = vector.extract_strided_slice %297 {offsets = [0, 64], sizes = [8, 32], strides = [1, 1]} : vector<8x128xf32> to vector<8x32xf32>
    %301 = vector.extract_strided_slice %297 {offsets = [0, 96], sizes = [8, 32], strides = [1, 1]} : vector<8x128xf32> to vector<8x32xf32>
    %302 = arith.mulf %299, %246 : vector<8x32xf32>
    %303 = arith.mulf %298, %300 : vector<8x32xf32>
    %304 = arith.addf %302, %303 : vector<8x32xf32>
    %305 = math.tanh %304 : vector<8x32xf32>
    %306 = arith.mulf %301, %305 : vector<8x32xf32>
    %307 = tpu.concatenate %284, %270, %275, %283 in 1 : vector<8x16xf32>, vector<8x16xf32>, vector<8x16xf32>, vector<8x16xf32> -> vector<8x64xf32>
    %c0_143 = arith.constant 0 : index
    %308 = arith.index_cast %256 : i32 to index
    %c0_144 = arith.constant 0 : index
    %c0_145 = arith.constant 0 : index
    %309 = vector.load %arg18[%c0_143, %308, %c0_144, %c0_145] : memref<1x8x8x64xf32, #tpu.memory_space<vmem>>, vector<1x1x8x64xf32>
    %310 = vector.shape_cast %309 : vector<1x1x8x64xf32> to vector<8x64xf32>
    %311 = vector.shape_cast %307 : vector<8x64xf32> to vector<1x1x8x64xf32>
    tpu.vector_store %arg18[%c0_143, %308, %c0_144, %c0_145], %311 {strides = array<i32>} : memref<1x8x8x64xf32, #tpu.memory_space<vmem>>, vector<1x1x8x64xf32>,
    %c4_i32 = arith.constant 4 : i32
    %c0_i32_146 = arith.constant 0 : i32
    %312 = arith.cmpi eq, %arg0, %c0_i32_146 : i32
    %c7_i32_147 = arith.constant 7 : i32
    %313 = arith.subi %c7_i32_147, %c4_i32 : i32
    %314 = arith.select %312, %c4_i32, %313 : i32
    %315 = arith.index_cast %314 : i32 to index
    %c0_148 = arith.constant 0 : index
    %c0_149 = arith.constant 0 : index
    %316 = vector.load %arg2[%315, %c0_148, %c0_149] : memref<8x8x16xf32, #tpu.memory_space<vmem>>, vector<1x8x16xf32>
    %317 = vector.shape_cast %316 : vector<1x8x16xf32> to vector<8x16xf32>
    %318 = arith.index_cast %314 : i32 to index
    %c0_150 = arith.constant 0 : index
    %c0_151 = arith.constant 0 : index
    %319 = vector.load %arg3[%318, %c0_150, %c0_151] : memref<8x8x16xf32, #tpu.memory_space<vmem>>, vector<1x8x16xf32>
    %320 = vector.shape_cast %319 : vector<1x8x16xf32> to vector<8x16xf32>
    %321 = arith.index_cast %314 : i32 to index
    %c0_152 = arith.constant 0 : index
    %c0_153 = arith.constant 0 : index
    %322 = vector.load %arg19[%321, %c0_152, %c0_153] : memref<8x8x32xf32, #tpu.memory_space<vmem>>, vector<1x8x32xf32>
    %323 = vector.shape_cast %322 : vector<1x8x32xf32> to vector<8x32xf32>
    %324 = arith.mulf %306, %323 : vector<8x32xf32>
    %cst_154 = arith.constant dense<0.000000e+00> : vector<8x144xf32>
    %325 = tpu.matmul %324, %59, %cst_154 {dimension_numbers = #tpu.dot_dimension_numbers<[1], [0], [0], [1], [0, 0, 1, 1], [], []>} : vector<8x32xf32>, vector<32x144xf32>, vector<8x144xf32> -> vector<8x144xf32>
    %326 = vector.extract_strided_slice %325 {offsets = [0, 0], sizes = [8, 128], strides = [1, 1]} : vector<8x144xf32> to vector<8x128xf32>
    %327 = vector.extract_strided_slice %325 {offsets = [0, 128], sizes = [8, 16], strides = [1, 1]} : vector<8x144xf32> to vector<8x16xf32>
    %328 = arith.addf %327, %67 : vector<8x16xf32>
    %cst_155 = arith.constant 0.000000e+00 : f32
    %329 = vector.broadcast %cst_155 : f32 to vector<8x16xf32>
    %330 = arith.cmpf ogt, %320, %329 : vector<8x16xf32>
    %331 = arith.select %330, %317, %328 : vector<8x16xi1>, vector<8x16xf32>
    %cst_156 = arith.constant dense<0.000000e+00> : vector<8x16xf32>
    %332 = tpu.matmul %331, %61, %cst_156 {dimension_numbers = #tpu.dot_dimension_numbers<[1], [0], [0], [1], [0, 0, 1, 1], [], []>} : vector<8x16xf32>, vector<16x16xf32>, vector<8x16xf32> -> vector<8x16xf32>
    %333 = arith.addf %332, %71 : vector<8x16xf32>
    %334 = arith.index_cast %314 : i32 to index
    %c0_157 = arith.constant 0 : index
    %c0_158 = arith.constant 0 : index
    %335 = vector.load %arg20[%334, %c0_157, %c0_158] : memref<8x8x16xf32, #tpu.memory_space<vmem>>, vector<1x8x16xf32>
    %336 = vector.shape_cast %335 : vector<1x8x16xf32> to vector<8x16xf32>
    %337 = arith.mulf %336, %333 : vector<8x16xf32>
    %cst_159 = arith.constant 1.000000e+00 : f32
    %338 = vector.broadcast %cst_159 : f32 to vector<8x16xf32>
    %339 = arith.subf %338, %336 : vector<8x16xf32>
    %340 = arith.mulf %339, %328 : vector<8x16xf32>
    %341 = arith.addf %337, %340 : vector<8x16xf32>
    %342 = arith.select %330, %317, %341 : vector<8x16xi1>, vector<8x16xf32>
    %cst_160 = arith.constant dense<0.000000e+00> : vector<8x128xf32>
    %343 = tpu.matmul %342, %63, %cst_160 {dimension_numbers = #tpu.dot_dimension_numbers<[1], [0], [0], [1], [0, 0, 1, 1], [], []>} : vector<8x16xf32>, vector<16x128xf32>, vector<8x128xf32> -> vector<8x128xf32>
    %344 = arith.index_cast %314 : i32 to index
    %c0_161 = arith.constant 0 : index
    %c0_162 = arith.constant 0 : index
    %345 = vector.load %arg21[%344, %c0_161, %c0_162] : memref<8x8x128xf32, #tpu.memory_space<vmem>>, vector<1x8x128xf32>
    %346 = vector.shape_cast %345 : vector<1x8x128xf32> to vector<8x128xf32>
    %347 = arith.addf %343, %346 : vector<8x128xf32>
    %348 = arith.addf %347, %326 : vector<8x128xf32>
    %349 = math.tanh %348 : vector<8x128xf32>
    %350 = arith.negf %348 : vector<8x128xf32>
    %351 = math.exp %350 : vector<8x128xf32>
    %cst_163 = arith.constant 1.000000e+00 : f32
    %352 = vector.broadcast %cst_163 : f32 to vector<8x128xf32>
    %353 = arith.addf %352, %351 : vector<8x128xf32>
    %354 = arith.divf %352, %353 : vector<8x128xf32>
    %355 = arith.select %77, %349, %354 : vector<8x128xi1>, vector<8x128xf32>
    %356 = vector.extract_strided_slice %355 {offsets = [0, 0], sizes = [8, 32], strides = [1, 1]} : vector<8x128xf32> to vector<8x32xf32>
    %357 = vector.extract_strided_slice %355 {offsets = [0, 32], sizes = [8, 32], strides = [1, 1]} : vector<8x128xf32> to vector<8x32xf32>
    %358 = vector.extract_strided_slice %355 {offsets = [0, 64], sizes = [8, 32], strides = [1, 1]} : vector<8x128xf32> to vector<8x32xf32>
    %359 = vector.extract_strided_slice %355 {offsets = [0, 96], sizes = [8, 32], strides = [1, 1]} : vector<8x128xf32> to vector<8x32xf32>
    %360 = arith.mulf %357, %304 : vector<8x32xf32>
    %361 = arith.mulf %356, %358 : vector<8x32xf32>
    %362 = arith.addf %360, %361 : vector<8x32xf32>
    %363 = math.tanh %362 : vector<8x32xf32>
    %364 = arith.mulf %359, %363 : vector<8x32xf32>
    %365 = tpu.concatenate %342, %328, %333, %341 in 1 : vector<8x16xf32>, vector<8x16xf32>, vector<8x16xf32>, vector<8x16xf32> -> vector<8x64xf32>
    %c0_164 = arith.constant 0 : index
    %366 = arith.index_cast %314 : i32 to index
    %c0_165 = arith.constant 0 : index
    %c0_166 = arith.constant 0 : index
    %367 = vector.load %arg18[%c0_164, %366, %c0_165, %c0_166] : memref<1x8x8x64xf32, #tpu.memory_space<vmem>>, vector<1x1x8x64xf32>
    %368 = vector.shape_cast %367 : vector<1x1x8x64xf32> to vector<8x64xf32>
    %369 = vector.shape_cast %365 : vector<8x64xf32> to vector<1x1x8x64xf32>
    tpu.vector_store %arg18[%c0_164, %366, %c0_165, %c0_166], %369 {strides = array<i32>} : memref<1x8x8x64xf32, #tpu.memory_space<vmem>>, vector<1x1x8x64xf32>,
    %c5_i32 = arith.constant 5 : i32
    %c0_i32_167 = arith.constant 0 : i32
    %370 = arith.cmpi eq, %arg0, %c0_i32_167 : i32
    %c7_i32_168 = arith.constant 7 : i32
    %371 = arith.subi %c7_i32_168, %c5_i32 : i32
    %372 = arith.select %370, %c5_i32, %371 : i32
    %373 = arith.index_cast %372 : i32 to index
    %c0_169 = arith.constant 0 : index
    %c0_170 = arith.constant 0 : index
    %374 = vector.load %arg2[%373, %c0_169, %c0_170] : memref<8x8x16xf32, #tpu.memory_space<vmem>>, vector<1x8x16xf32>
    %375 = vector.shape_cast %374 : vector<1x8x16xf32> to vector<8x16xf32>
    %376 = arith.index_cast %372 : i32 to index
    %c0_171 = arith.constant 0 : index
    %c0_172 = arith.constant 0 : index
    %377 = vector.load %arg3[%376, %c0_171, %c0_172] : memref<8x8x16xf32, #tpu.memory_space<vmem>>, vector<1x8x16xf32>
    %378 = vector.shape_cast %377 : vector<1x8x16xf32> to vector<8x16xf32>
    %379 = arith.index_cast %372 : i32 to index
    %c0_173 = arith.constant 0 : index
    %c0_174 = arith.constant 0 : index
    %380 = vector.load %arg19[%379, %c0_173, %c0_174] : memref<8x8x32xf32, #tpu.memory_space<vmem>>, vector<1x8x32xf32>
    %381 = vector.shape_cast %380 : vector<1x8x32xf32> to vector<8x32xf32>
    %382 = arith.mulf %364, %381 : vector<8x32xf32>
    %cst_175 = arith.constant dense<0.000000e+00> : vector<8x144xf32>
    %383 = tpu.matmul %382, %59, %cst_175 {dimension_numbers = #tpu.dot_dimension_numbers<[1], [0], [0], [1], [0, 0, 1, 1], [], []>} : vector<8x32xf32>, vector<32x144xf32>, vector<8x144xf32> -> vector<8x144xf32>
    %384 = vector.extract_strided_slice %383 {offsets = [0, 0], sizes = [8, 128], strides = [1, 1]} : vector<8x144xf32> to vector<8x128xf32>
    %385 = vector.extract_strided_slice %383 {offsets = [0, 128], sizes = [8, 16], strides = [1, 1]} : vector<8x144xf32> to vector<8x16xf32>
    %386 = arith.addf %385, %67 : vector<8x16xf32>
    %cst_176 = arith.constant 0.000000e+00 : f32
    %387 = vector.broadcast %cst_176 : f32 to vector<8x16xf32>
    %388 = arith.cmpf ogt, %378, %387 : vector<8x16xf32>
    %389 = arith.select %388, %375, %386 : vector<8x16xi1>, vector<8x16xf32>
    %cst_177 = arith.constant dense<0.000000e+00> : vector<8x16xf32>
    %390 = tpu.matmul %389, %61, %cst_177 {dimension_numbers = #tpu.dot_dimension_numbers<[1], [0], [0], [1], [0, 0, 1, 1], [], []>} : vector<8x16xf32>, vector<16x16xf32>, vector<8x16xf32> -> vector<8x16xf32>
    %391 = arith.addf %390, %71 : vector<8x16xf32>
    %392 = arith.index_cast %372 : i32 to index
    %c0_178 = arith.constant 0 : index
    %c0_179 = arith.constant 0 : index
    %393 = vector.load %arg20[%392, %c0_178, %c0_179] : memref<8x8x16xf32, #tpu.memory_space<vmem>>, vector<1x8x16xf32>
    %394 = vector.shape_cast %393 : vector<1x8x16xf32> to vector<8x16xf32>
    %395 = arith.mulf %394, %391 : vector<8x16xf32>
    %cst_180 = arith.constant 1.000000e+00 : f32
    %396 = vector.broadcast %cst_180 : f32 to vector<8x16xf32>
    %397 = arith.subf %396, %394 : vector<8x16xf32>
    %398 = arith.mulf %397, %386 : vector<8x16xf32>
    %399 = arith.addf %395, %398 : vector<8x16xf32>
    %400 = arith.select %388, %375, %399 : vector<8x16xi1>, vector<8x16xf32>
    %cst_181 = arith.constant dense<0.000000e+00> : vector<8x128xf32>
    %401 = tpu.matmul %400, %63, %cst_181 {dimension_numbers = #tpu.dot_dimension_numbers<[1], [0], [0], [1], [0, 0, 1, 1], [], []>} : vector<8x16xf32>, vector<16x128xf32>, vector<8x128xf32> -> vector<8x128xf32>
    %402 = arith.index_cast %372 : i32 to index
    %c0_182 = arith.constant 0 : index
    %c0_183 = arith.constant 0 : index
    %403 = vector.load %arg21[%402, %c0_182, %c0_183] : memref<8x8x128xf32, #tpu.memory_space<vmem>>, vector<1x8x128xf32>
    %404 = vector.shape_cast %403 : vector<1x8x128xf32> to vector<8x128xf32>
    %405 = arith.addf %401, %404 : vector<8x128xf32>
    %406 = arith.addf %405, %384 : vector<8x128xf32>
    %407 = math.tanh %406 : vector<8x128xf32>
    %408 = arith.negf %406 : vector<8x128xf32>
    %409 = math.exp %408 : vector<8x128xf32>
    %cst_184 = arith.constant 1.000000e+00 : f32
    %410 = vector.broadcast %cst_184 : f32 to vector<8x128xf32>
    %411 = arith.addf %410, %409 : vector<8x128xf32>
    %412 = arith.divf %410, %411 : vector<8x128xf32>
    %413 = arith.select %77, %407, %412 : vector<8x128xi1>, vector<8x128xf32>
    %414 = vector.extract_strided_slice %413 {offsets = [0, 0], sizes = [8, 32], strides = [1, 1]} : vector<8x128xf32> to vector<8x32xf32>
    %415 = vector.extract_strided_slice %413 {offsets = [0, 32], sizes = [8, 32], strides = [1, 1]} : vector<8x128xf32> to vector<8x32xf32>
    %416 = vector.extract_strided_slice %413 {offsets = [0, 64], sizes = [8, 32], strides = [1, 1]} : vector<8x128xf32> to vector<8x32xf32>
    %417 = vector.extract_strided_slice %413 {offsets = [0, 96], sizes = [8, 32], strides = [1, 1]} : vector<8x128xf32> to vector<8x32xf32>
    %418 = arith.mulf %415, %362 : vector<8x32xf32>
    %419 = arith.mulf %414, %416 : vector<8x32xf32>
    %420 = arith.addf %418, %419 : vector<8x32xf32>
    %421 = math.tanh %420 : vector<8x32xf32>
    %422 = arith.mulf %417, %421 : vector<8x32xf32>
    %423 = tpu.concatenate %400, %386, %391, %399 in 1 : vector<8x16xf32>, vector<8x16xf32>, vector<8x16xf32>, vector<8x16xf32> -> vector<8x64xf32>
    %c0_185 = arith.constant 0 : index
    %424 = arith.index_cast %372 : i32 to index
    %c0_186 = arith.constant 0 : index
    %c0_187 = arith.constant 0 : index
    %425 = vector.load %arg18[%c0_185, %424, %c0_186, %c0_187] : memref<1x8x8x64xf32, #tpu.memory_space<vmem>>, vector<1x1x8x64xf32>
    %426 = vector.shape_cast %425 : vector<1x1x8x64xf32> to vector<8x64xf32>
    %427 = vector.shape_cast %423 : vector<8x64xf32> to vector<1x1x8x64xf32>
    tpu.vector_store %arg18[%c0_185, %424, %c0_186, %c0_187], %427 {strides = array<i32>} : memref<1x8x8x64xf32, #tpu.memory_space<vmem>>, vector<1x1x8x64xf32>,
    %c6_i32 = arith.constant 6 : i32
    %c0_i32_188 = arith.constant 0 : i32
    %428 = arith.cmpi eq, %arg0, %c0_i32_188 : i32
    %c7_i32_189 = arith.constant 7 : i32
    %429 = arith.subi %c7_i32_189, %c6_i32 : i32
    %430 = arith.select %428, %c6_i32, %429 : i32
    %431 = arith.index_cast %430 : i32 to index
    %c0_190 = arith.constant 0 : index
    %c0_191 = arith.constant 0 : index
    %432 = vector.load %arg2[%431, %c0_190, %c0_191] : memref<8x8x16xf32, #tpu.memory_space<vmem>>, vector<1x8x16xf32>
    %433 = vector.shape_cast %432 : vector<1x8x16xf32> to vector<8x16xf32>
    %434 = arith.index_cast %430 : i32 to index
    %c0_192 = arith.constant 0 : index
    %c0_193 = arith.constant 0 : index
    %435 = vector.load %arg3[%434, %c0_192, %c0_193] : memref<8x8x16xf32, #tpu.memory_space<vmem>>, vector<1x8x16xf32>
    %436 = vector.shape_cast %435 : vector<1x8x16xf32> to vector<8x16xf32>
    %437 = arith.index_cast %430 : i32 to index
    %c0_194 = arith.constant 0 : index
    %c0_195 = arith.constant 0 : index
    %438 = vector.load %arg19[%437, %c0_194, %c0_195] : memref<8x8x32xf32, #tpu.memory_space<vmem>>, vector<1x8x32xf32>
    %439 = vector.shape_cast %438 : vector<1x8x32xf32> to vector<8x32xf32>
    %440 = arith.mulf %422, %439 : vector<8x32xf32>
    %cst_196 = arith.constant dense<0.000000e+00> : vector<8x144xf32>
    %441 = tpu.matmul %440, %59, %cst_196 {dimension_numbers = #tpu.dot_dimension_numbers<[1], [0], [0], [1], [0, 0, 1, 1], [], []>} : vector<8x32xf32>, vector<32x144xf32>, vector<8x144xf32> -> vector<8x144xf32>
    %442 = vector.extract_strided_slice %441 {offsets = [0, 0], sizes = [8, 128], strides = [1, 1]} : vector<8x144xf32> to vector<8x128xf32>
    %443 = vector.extract_strided_slice %441 {offsets = [0, 128], sizes = [8, 16], strides = [1, 1]} : vector<8x144xf32> to vector<8x16xf32>
    %444 = arith.addf %443, %67 : vector<8x16xf32>
    %cst_197 = arith.constant 0.000000e+00 : f32
    %445 = vector.broadcast %cst_197 : f32 to vector<8x16xf32>
    %446 = arith.cmpf ogt, %436, %445 : vector<8x16xf32>
    %447 = arith.select %446, %433, %444 : vector<8x16xi1>, vector<8x16xf32>
    %cst_198 = arith.constant dense<0.000000e+00> : vector<8x16xf32>
    %448 = tpu.matmul %447, %61, %cst_198 {dimension_numbers = #tpu.dot_dimension_numbers<[1], [0], [0], [1], [0, 0, 1, 1], [], []>} : vector<8x16xf32>, vector<16x16xf32>, vector<8x16xf32> -> vector<8x16xf32>
    %449 = arith.addf %448, %71 : vector<8x16xf32>
    %450 = arith.index_cast %430 : i32 to index
    %c0_199 = arith.constant 0 : index
    %c0_200 = arith.constant 0 : index
    %451 = vector.load %arg20[%450, %c0_199, %c0_200] : memref<8x8x16xf32, #tpu.memory_space<vmem>>, vector<1x8x16xf32>
    %452 = vector.shape_cast %451 : vector<1x8x16xf32> to vector<8x16xf32>
    %453 = arith.mulf %452, %449 : vector<8x16xf32>
    %cst_201 = arith.constant 1.000000e+00 : f32
    %454 = vector.broadcast %cst_201 : f32 to vector<8x16xf32>
    %455 = arith.subf %454, %452 : vector<8x16xf32>
    %456 = arith.mulf %455, %444 : vector<8x16xf32>
    %457 = arith.addf %453, %456 : vector<8x16xf32>
    %458 = arith.select %446, %433, %457 : vector<8x16xi1>, vector<8x16xf32>
    %cst_202 = arith.constant dense<0.000000e+00> : vector<8x128xf32>
    %459 = tpu.matmul %458, %63, %cst_202 {dimension_numbers = #tpu.dot_dimension_numbers<[1], [0], [0], [1], [0, 0, 1, 1], [], []>} : vector<8x16xf32>, vector<16x128xf32>, vector<8x128xf32> -> vector<8x128xf32>
    %460 = arith.index_cast %430 : i32 to index
    %c0_203 = arith.constant 0 : index
    %c0_204 = arith.constant 0 : index
    %461 = vector.load %arg21[%460, %c0_203, %c0_204] : memref<8x8x128xf32, #tpu.memory_space<vmem>>, vector<1x8x128xf32>
    %462 = vector.shape_cast %461 : vector<1x8x128xf32> to vector<8x128xf32>
    %463 = arith.addf %459, %462 : vector<8x128xf32>
    %464 = arith.addf %463, %442 : vector<8x128xf32>
    %465 = math.tanh %464 : vector<8x128xf32>
    %466 = arith.negf %464 : vector<8x128xf32>
    %467 = math.exp %466 : vector<8x128xf32>
    %cst_205 = arith.constant 1.000000e+00 : f32
    %468 = vector.broadcast %cst_205 : f32 to vector<8x128xf32>
    %469 = arith.addf %468, %467 : vector<8x128xf32>
    %470 = arith.divf %468, %469 : vector<8x128xf32>
    %471 = arith.select %77, %465, %470 : vector<8x128xi1>, vector<8x128xf32>
    %472 = vector.extract_strided_slice %471 {offsets = [0, 0], sizes = [8, 32], strides = [1, 1]} : vector<8x128xf32> to vector<8x32xf32>
    %473 = vector.extract_strided_slice %471 {offsets = [0, 32], sizes = [8, 32], strides = [1, 1]} : vector<8x128xf32> to vector<8x32xf32>
    %474 = vector.extract_strided_slice %471 {offsets = [0, 64], sizes = [8, 32], strides = [1, 1]} : vector<8x128xf32> to vector<8x32xf32>
    %475 = vector.extract_strided_slice %471 {offsets = [0, 96], sizes = [8, 32], strides = [1, 1]} : vector<8x128xf32> to vector<8x32xf32>
    %476 = arith.mulf %473, %420 : vector<8x32xf32>
    %477 = arith.mulf %472, %474 : vector<8x32xf32>
    %478 = arith.addf %476, %477 : vector<8x32xf32>
    %479 = math.tanh %478 : vector<8x32xf32>
    %480 = arith.mulf %475, %479 : vector<8x32xf32>
    %481 = tpu.concatenate %458, %444, %449, %457 in 1 : vector<8x16xf32>, vector<8x16xf32>, vector<8x16xf32>, vector<8x16xf32> -> vector<8x64xf32>
    %c0_206 = arith.constant 0 : index
    %482 = arith.index_cast %430 : i32 to index
    %c0_207 = arith.constant 0 : index
    %c0_208 = arith.constant 0 : index
    %483 = vector.load %arg18[%c0_206, %482, %c0_207, %c0_208] : memref<1x8x8x64xf32, #tpu.memory_space<vmem>>, vector<1x1x8x64xf32>
    %484 = vector.shape_cast %483 : vector<1x1x8x64xf32> to vector<8x64xf32>
    %485 = vector.shape_cast %481 : vector<8x64xf32> to vector<1x1x8x64xf32>
    tpu.vector_store %arg18[%c0_206, %482, %c0_207, %c0_208], %485 {strides = array<i32>} : memref<1x8x8x64xf32, #tpu.memory_space<vmem>>, vector<1x1x8x64xf32>,
    %c7_i32_209 = arith.constant 7 : i32
    %c0_i32_210 = arith.constant 0 : i32
    %486 = arith.cmpi eq, %arg0, %c0_i32_210 : i32
    %c7_i32_211 = arith.constant 7 : i32
    %487 = arith.subi %c7_i32_211, %c7_i32_209 : i32
    %488 = arith.select %486, %c7_i32_209, %487 : i32
    %489 = arith.index_cast %488 : i32 to index
    %c0_212 = arith.constant 0 : index
    %c0_213 = arith.constant 0 : index
    %490 = vector.load %arg2[%489, %c0_212, %c0_213] : memref<8x8x16xf32, #tpu.memory_space<vmem>>, vector<1x8x16xf32>
    %491 = vector.shape_cast %490 : vector<1x8x16xf32> to vector<8x16xf32>
    %492 = arith.index_cast %488 : i32 to index
    %c0_214 = arith.constant 0 : index
    %c0_215 = arith.constant 0 : index
    %493 = vector.load %arg3[%492, %c0_214, %c0_215] : memref<8x8x16xf32, #tpu.memory_space<vmem>>, vector<1x8x16xf32>
    %494 = vector.shape_cast %493 : vector<1x8x16xf32> to vector<8x16xf32>
    %495 = arith.index_cast %488 : i32 to index
    %c0_216 = arith.constant 0 : index
    %c0_217 = arith.constant 0 : index
    %496 = vector.load %arg19[%495, %c0_216, %c0_217] : memref<8x8x32xf32, #tpu.memory_space<vmem>>, vector<1x8x32xf32>
    %497 = vector.shape_cast %496 : vector<1x8x32xf32> to vector<8x32xf32>
    %498 = arith.mulf %480, %497 : vector<8x32xf32>
    %cst_218 = arith.constant dense<0.000000e+00> : vector<8x144xf32>
    %499 = tpu.matmul %498, %59, %cst_218 {dimension_numbers = #tpu.dot_dimension_numbers<[1], [0], [0], [1], [0, 0, 1, 1], [], []>} : vector<8x32xf32>, vector<32x144xf32>, vector<8x144xf32> -> vector<8x144xf32>
    %500 = vector.extract_strided_slice %499 {offsets = [0, 0], sizes = [8, 128], strides = [1, 1]} : vector<8x144xf32> to vector<8x128xf32>
    %501 = vector.extract_strided_slice %499 {offsets = [0, 128], sizes = [8, 16], strides = [1, 1]} : vector<8x144xf32> to vector<8x16xf32>
    %502 = arith.addf %501, %67 : vector<8x16xf32>
    %cst_219 = arith.constant 0.000000e+00 : f32
    %503 = vector.broadcast %cst_219 : f32 to vector<8x16xf32>
    %504 = arith.cmpf ogt, %494, %503 : vector<8x16xf32>
    %505 = arith.select %504, %491, %502 : vector<8x16xi1>, vector<8x16xf32>
    %cst_220 = arith.constant dense<0.000000e+00> : vector<8x16xf32>
    %506 = tpu.matmul %505, %61, %cst_220 {dimension_numbers = #tpu.dot_dimension_numbers<[1], [0], [0], [1], [0, 0, 1, 1], [], []>} : vector<8x16xf32>, vector<16x16xf32>, vector<8x16xf32> -> vector<8x16xf32>
    %507 = arith.addf %506, %71 : vector<8x16xf32>
    %508 = arith.index_cast %488 : i32 to index
    %c0_221 = arith.constant 0 : index
    %c0_222 = arith.constant 0 : index
    %509 = vector.load %arg20[%508, %c0_221, %c0_222] : memref<8x8x16xf32, #tpu.memory_space<vmem>>, vector<1x8x16xf32>
    %510 = vector.shape_cast %509 : vector<1x8x16xf32> to vector<8x16xf32>
    %511 = arith.mulf %510, %507 : vector<8x16xf32>
    %cst_223 = arith.constant 1.000000e+00 : f32
    %512 = vector.broadcast %cst_223 : f32 to vector<8x16xf32>
    %513 = arith.subf %512, %510 : vector<8x16xf32>
    %514 = arith.mulf %513, %502 : vector<8x16xf32>
    %515 = arith.addf %511, %514 : vector<8x16xf32>
    %516 = arith.select %504, %491, %515 : vector<8x16xi1>, vector<8x16xf32>
    %cst_224 = arith.constant dense<0.000000e+00> : vector<8x128xf32>
    %517 = tpu.matmul %516, %63, %cst_224 {dimension_numbers = #tpu.dot_dimension_numbers<[1], [0], [0], [1], [0, 0, 1, 1], [], []>} : vector<8x16xf32>, vector<16x128xf32>, vector<8x128xf32> -> vector<8x128xf32>
    %518 = arith.index_cast %488 : i32 to index
    %c0_225 = arith.constant 0 : index
    %c0_226 = arith.constant 0 : index
    %519 = vector.load %arg21[%518, %c0_225, %c0_226] : memref<8x8x128xf32, #tpu.memory_space<vmem>>, vector<1x8x128xf32>
    %520 = vector.shape_cast %519 : vector<1x8x128xf32> to vector<8x128xf32>
    %521 = arith.addf %517, %520 : vector<8x128xf32>
    %522 = arith.addf %521, %500 : vector<8x128xf32>
    %523 = math.tanh %522 : vector<8x128xf32>
    %524 = arith.negf %522 : vector<8x128xf32>
    %525 = math.exp %524 : vector<8x128xf32>
    %cst_227 = arith.constant 1.000000e+00 : f32
    %526 = vector.broadcast %cst_227 : f32 to vector<8x128xf32>
    %527 = arith.addf %526, %525 : vector<8x128xf32>
    %528 = arith.divf %526, %527 : vector<8x128xf32>
    %529 = arith.select %77, %523, %528 : vector<8x128xi1>, vector<8x128xf32>
    %530 = vector.extract_strided_slice %529 {offsets = [0, 0], sizes = [8, 32], strides = [1, 1]} : vector<8x128xf32> to vector<8x32xf32>
    %531 = vector.extract_strided_slice %529 {offsets = [0, 32], sizes = [8, 32], strides = [1, 1]} : vector<8x128xf32> to vector<8x32xf32>
    %532 = vector.extract_strided_slice %529 {offsets = [0, 64], sizes = [8, 32], strides = [1, 1]} : vector<8x128xf32> to vector<8x32xf32>
    %533 = vector.extract_strided_slice %529 {offsets = [0, 96], sizes = [8, 32], strides = [1, 1]} : vector<8x128xf32> to vector<8x32xf32>
    %534 = arith.mulf %531, %478 : vector<8x32xf32>
    %535 = arith.mulf %530, %532 : vector<8x32xf32>
    %536 = arith.addf %534, %535 : vector<8x32xf32>
    %537 = math.tanh %536 : vector<8x32xf32>
    %538 = arith.mulf %533, %537 : vector<8x32xf32>
    %539 = tpu.concatenate %516, %502, %507, %515 in 1 : vector<8x16xf32>, vector<8x16xf32>, vector<8x16xf32>, vector<8x16xf32> -> vector<8x64xf32>
    %c0_228 = arith.constant 0 : index
    %540 = arith.index_cast %488 : i32 to index
    %c0_229 = arith.constant 0 : index
    %c0_230 = arith.constant 0 : index
    %541 = vector.load %arg18[%c0_228, %540, %c0_229, %c0_230] : memref<1x8x8x64xf32, #tpu.memory_space<vmem>>, vector<1x1x8x64xf32>
    %542 = vector.shape_cast %541 : vector<1x1x8x64xf32> to vector<8x64xf32>
    %543 = vector.shape_cast %539 : vector<8x64xf32> to vector<1x1x8x64xf32>
    tpu.vector_store %arg18[%c0_228, %540, %c0_229, %c0_230], %543 {strides = array<i32>} : memref<1x8x8x64xf32, #tpu.memory_space<vmem>>, vector<1x1x8x64xf32>,
    %c8_i32 = arith.constant 8 : i32
    return
  }
  func.func @transform_0(%arg0: i32, %arg1: i32) -> (i32, i32, i32) {
    %c0_i32 = arith.constant 0 : i32
    %c0_i32_0 = arith.constant 0 : i32
    %c0_i32_1 = arith.constant 0 : i32
    return %c0_i32, %arg1, %c0_i32_0 : i32, i32, i32
  }
  func.func @transform_1(%arg0: i32, %arg1: i32) -> (i32, i32, i32) {
    %c0_i32 = arith.constant 0 : i32
    %c0_i32_0 = arith.constant 0 : i32
    %c0_i32_1 = arith.constant 0 : i32
    return %c0_i32, %arg1, %c0_i32_0 : i32, i32, i32
  }
  func.func @transform_2(%arg0: i32, %arg1: i32) -> (i32, i32, i32, i32) {
    %c0_i32 = arith.constant 0 : i32
    %c0_i32_0 = arith.constant 0 : i32
    %c0_i32_1 = arith.constant 0 : i32
    return %arg0, %c0_i32, %arg1, %c0_i32_0 : i32, i32, i32, i32
  }
  func.func @transform_3(%arg0: i32, %arg1: i32) -> (i32, i32, i32) {
    %c0_i32 = arith.constant 0 : i32
    %c0_i32_0 = arith.constant 0 : i32
    %c0_i32_1 = arith.constant 0 : i32
    return %arg0, %c0_i32, %c0_i32_0 : i32, i32, i32
  }
  func.func @transform_4(%arg0: i32, %arg1: i32) -> (i32, i32, i32) {
    %c0_i32 = arith.constant 0 : i32
    %c0_i32_0 = arith.constant 0 : i32
    %c0_i32_1 = arith.constant 0 : i32
    return %arg0, %c0_i32, %c0_i32_0 : i32, i32, i32
  }
  func.func @transform_5(%arg0: i32, %arg1: i32) -> (i32, i32, i32) {
    %c0_i32 = arith.constant 0 : i32
    %c0_i32_0 = arith.constant 0 : i32
    %c0_i32_1 = arith.constant 0 : i32
    return %arg0, %c0_i32, %c0_i32_0 : i32, i32, i32
  }
  func.func @transform_6(%arg0: i32, %arg1: i32) -> (i32, i32, i32) {
    %c0_i32 = arith.constant 0 : i32
    %c0_i32_0 = arith.constant 0 : i32
    %c0_i32_1 = arith.constant 0 : i32
    return %arg0, %c0_i32, %c0_i32_0 : i32, i32, i32
  }
  func.func @transform_7(%arg0: i32, %arg1: i32) -> (i32, i32, i32) {
    %c0_i32 = arith.constant 0 : i32
    %c0_i32_0 = arith.constant 0 : i32
    %c0_i32_1 = arith.constant 0 : i32
    return %arg0, %c0_i32, %c0_i32_0 : i32, i32, i32
  }
  func.func @transform_8(%arg0: i32, %arg1: i32) -> (i32, i32, i32) {
    %c0_i32 = arith.constant 0 : i32
    %c0_i32_0 = arith.constant 0 : i32
    %c0_i32_1 = arith.constant 0 : i32
    return %arg0, %c0_i32, %c0_i32_0 : i32, i32, i32
  }
  func.func @transform_9(%arg0: i32, %arg1: i32) -> (i32, i32, i32) {
    %c0_i32 = arith.constant 0 : i32
    %c0_i32_0 = arith.constant 0 : i32
    %c0_i32_1 = arith.constant 0 : i32
    return %arg0, %c0_i32, %c0_i32_0 : i32, i32, i32
  }
  func.func @transform_10(%arg0: i32, %arg1: i32) -> (i32, i32, i32) {
    %c0_i32 = arith.constant 0 : i32
    %c0_i32_0 = arith.constant 0 : i32
    %c0_i32_1 = arith.constant 0 : i32
    return %arg0, %c0_i32, %c0_i32_0 : i32, i32, i32
  }
  func.func @transform_11(%arg0: i32, %arg1: i32) -> (i32, i32, i32) {
    %c0_i32 = arith.constant 0 : i32
    %c0_i32_0 = arith.constant 0 : i32
    %c0_i32_1 = arith.constant 0 : i32
    return %arg0, %c0_i32, %c0_i32_0 : i32, i32, i32
  }
  func.func @transform_12(%arg0: i32, %arg1: i32) -> (i32, i32, i32) {
    %c0_i32 = arith.constant 0 : i32
    %c0_i32_0 = arith.constant 0 : i32
    %c0_i32_1 = arith.constant 0 : i32
    return %arg0, %c0_i32, %c0_i32_0 : i32, i32, i32
  }
  func.func @transform_13(%arg0: i32, %arg1: i32) -> (i32, i32, i32) {
    %c0_i32 = arith.constant 0 : i32
    %c0_i32_0 = arith.constant 0 : i32
    %c0_i32_1 = arith.constant 0 : i32
    return %arg0, %c0_i32, %c0_i32_0 : i32, i32, i32
  }
  func.func @transform_14(%arg0: i32, %arg1: i32) -> (i32, i32, i32) {
    %c0_i32 = arith.constant 0 : i32
    %c0_i32_0 = arith.constant 0 : i32
    %c0_i32_1 = arith.constant 0 : i32
    return %arg0, %c0_i32, %c0_i32_0 : i32, i32, i32
  }
  func.func @transform_15(%arg0: i32, %arg1: i32) -> (i32, i32, i32) {
    %c0_i32 = arith.constant 0 : i32
    %c0_i32_0 = arith.constant 0 : i32
    %c0_i32_1 = arith.constant 0 : i32
    return %arg0, %c0_i32, %c0_i32_0 : i32, i32, i32
  }
  func.func @transform_16(%arg0: i32, %arg1: i32) -> (i32, i32, i32, i32) {
    %c0_i32 = arith.constant 0 : i32
    %c0_i32_0 = arith.constant 0 : i32
    %c0_i32_1 = arith.constant 0 : i32
    return %arg0, %c0_i32, %arg1, %c0_i32_0 : i32, i32, i32, i32
  }
}

</mosaic_0001>

<llo_original>
// kernel: tpu_custom_call.1
$region0: #{tpu_custom_call.1}
  #allocation0 [shape = 'u32[]', space=smem, size = 0x4, offset = 0x4, fixed_abs, tag = 'smem constant byte address 0x4 - core index']
  #allocation1 [shape = 'u32[144,128]{1,0:T(1,128)}', space=vmem, size = 0x12000, scoped, tag = 'internal scratch']
  #allocation2 [shape = 'f32[8,8,32]{2,1,0:T(8,128)}', space=vmem, size = 0x8000, scoped, tag = 'scratch operand']
  #allocation3 [shape = 'f32[8,8,16]{2,1,0:T(8,128)}', space=vmem, size = 0x8000, scoped, tag = 'scratch operand']
  #allocation4 [shape = 'f32[8,8,128]{2,1,0:T(8,128)}', space=vmem, size = 0x8000, scoped, tag = 'scratch operand']
  %s0 = inlined_call_operand.hbm [shape: f32[8,8,16], index: 0, kind: input, shape index: {}]
  %s1 = inlined_call_operand.hbm [shape: f32[8,8,16], index: 1, kind: input, shape index: {}]
  %s2 = inlined_call_operand.hbm [shape: f32[2,8,8,16], index: 2, kind: input, shape index: {}]
  %s3 = inlined_call_operand.hbm [shape: f32[2,16,32], index: 3, kind: input, shape index: {}]
  %s4 = inlined_call_operand.vmem [shape: f32[2,1,32], index: 4, kind: input, shape index: {}]
  %s5 = inlined_call_operand.hbm [shape: f32[2,1,16], index: 5, kind: input, shape index: {}]
  %s6 = inlined_call_operand.hbm [shape: f32[2,1,16], index: 6, kind: input, shape index: {}]
  %s7 = inlined_call_operand.hbm [shape: f32[2,32,144], index: 7, kind: input, shape index: {}]
  %s8 = inlined_call_operand.hbm [shape: f32[2,1,16], index: 8, kind: input, shape index: {}]
  %s9 = inlined_call_operand.vmem [shape: f32[2,16,16], index: 9, kind: input, shape index: {}]
  %s10 = inlined_call_operand.vmem [shape: f32[2,1,16], index: 10, kind: input, shape index: {}]
  %s11 = inlined_call_operand.hbm [shape: f32[2,16,16], index: 11, kind: input, shape index: {}]
  %s12 = inlined_call_operand.hbm [shape: f32[2,16,144], index: 12, kind: input, shape index: {}]
  %s13 = inlined_call_operand.vmem [shape: f32[2,1,16], index: 13, kind: input, shape index: {}]
  %s14 = inlined_call_operand.hbm [shape: f32[2,16,128], index: 14, kind: input, shape index: {}]
  %s15 = inlined_call_operand.vmem [shape: f32[2,1,128], index: 15, kind: input, shape index: {}]
  %s16 = inlined_call_operand.hbm [shape: f32[2,8,8,64], index: 16, kind: output, shape index: {}]
  %s17 = sld [smem:[#allocation0]]
  $region141: #{tpu_custom_call.1} parent=0
    _
  %s19 = ssub.s32 1, %s17
  %s20 = scalar_select 0, %s19, %s17
  $region1: #{tpu_custom_call.1} parent=0
    #allocation5 [shape = 'u8[32768]{0}', space=vmem, size = 0x8000, scoped, tag = 'input window, operand 0, single buffered']
    #allocation6 [shape = 's32[2]{0}', space=sflag, size = 0x8, scoped, tag = 'scoped memory for tpu_custom_call.1']
    #allocation7 [shape = 's32[2]{0}', space=sflag, size = 0x8, scoped, tag = 'scoped memory for tpu_custom_call.1']
    #allocation8 [shape = 'u8[32768]{0}', space=vmem, size = 0x8000, scoped, tag = 'input window, operand 1, single buffered']
    #allocation9 [shape = 's32[1]{0}', space=sflag, size = 0x4, scoped, tag = 'scoped memory for tpu_custom_call.1']
    #allocation10 [shape = 'u8[65536]{0}', space=vmem, size = 0x10000, scoped, tag = 'input window, operand 2']
    #allocation11 [shape = 'u8[16384]{0}', space=vmem, size = 0x4000, scoped, tag = 'input window, operand 3']
    #allocation12 [shape = 'u8[1024]{0}', space=vmem, size = 0x400, scoped, tag = 'input window, operand 5']
    #allocation13 [shape = 'u8[1024]{0}', space=vmem, size = 0x400, scoped, tag = 'input window, operand 6']
    #allocation14 [shape = 'u8[65536]{0}', space=vmem, size = 0x10000, scoped, tag = 'input window, operand 7']
    #allocation15 [shape = 'u8[1024]{0}', space=vmem, size = 0x400, scoped, tag = 'input window, operand 8']
    #allocation16 [shape = 'u8[16384]{0}', space=vmem, size = 0x4000, scoped, tag = 'input window, operand 11']
    #allocation17 [shape = 'u8[32768]{0}', space=vmem, size = 0x8000, scoped, tag = 'input window, operand 12']
    #allocation18 [shape = 'u8[16384]{0}', space=vmem, size = 0x4000, scoped, tag = 'input window, operand 14']
    #allocation19 [shape = 'u8[65536]{0}', space=vmem, size = 0x10000, scoped, tag = 'output window, operand 0']
    %21 = vsyncpa [#allocation6], 0
    %22 = vsyncpa [#allocation9], 0
    %23 = vsyncpa [#allocation7], 0
    %s24 = scalar_lea.sflag [#allocation7], 1
    %25 = vsyncpa %s24, 0
    loop: start=0, step=1, limit=4
    $region2: #{tpu_custom_call.1} parent=1 // loop_pre_header
      _
    $region3: #{tpu_custom_call.1} parent=1 // loop_header
      %s27 = sphi 0, %s31
      %p28 = scmp.ge.s32.totalorder %s27, 4
      %s34 = sphi 0, %s46
      %s35 = sphi 0, %s42
      %s36 = sphi 0, %s34
      %s37 = sphi 0, %s35
      %s38 = sphi 0, %s36
      %s39 = sphi 0, %s37
      %s49 = sphi 0, %s51
      %s52 = sphi 0, %s49
      %s53 = sphi 0, %s52
      %s69 = sphi 0, %s53
      %s75 = sphi 0, %s77
      %s78 = sphi 0, %s75
      %s79 = sphi 0, %s78
      %s95 = sphi 0, %s79
      %s103 = sphi 0, %s105
      %s106 = sphi 0, %s103
      %s107 = sphi 0, %s106
      %s123 = sphi 0, %s107
      %s129 = sphi 0, %s131
      %s132 = sphi 0, %s129
      %s133 = sphi 0, %s132
      %s149 = sphi 0, %s133
      %s155 = sphi 0, %s157
      %s158 = sphi 0, %s155
      %s159 = sphi 0, %s158
      %s175 = sphi 0, %s159
      %s181 = sphi 0, %s183
      %s184 = sphi 0, %s181
      %s185 = sphi 0, %s184
      %s201 = sphi 0, %s185
      %s207 = sphi 0, %s209
      %s210 = sphi 0, %s207
      %s211 = sphi 0, %s210
      %s227 = sphi 0, %s211
      %s233 = sphi 0, %s235
      %s236 = sphi 0, %s233
      %s237 = sphi 0, %s236
      %s253 = sphi 0, %s237
      %s259 = sphi 0, %s261
      %s262 = sphi 0, %s259
      %s263 = sphi 0, %s262
      %s279 = sphi 0, %s263
      %s285 = sphi 0, %s287
      %s288 = sphi 0, %s285
      %s289 = sphi 0, %s288
      %s305 = sphi 0, %s289
      %s311 = sphi 0, %s313
      %s314 = sphi 0, %s311
      %s315 = sphi 0, %s314
      %s331 = sphi 0, %s315
      %s337 = sphi 0, %s339
      %s340 = sphi 0, %s337
      %s341 = sphi 0, %s340
      %s357 = sphi 0, %s341
      %s363 = sphi 0, %s365
      %s366 = sphi 0, %s363
      %s367 = sphi 0, %s366
      %s383 = sphi 0, %s367
      %s389 = sphi 0, %s391
      %s392 = sphi 0, %s389
      %s393 = sphi 0, %s392
      %s409 = sphi 0, %s393
      %s415 = sphi 0, %s417
      %s418 = sphi 0, %s415
      %s419 = sphi 0, %s418
      %s435 = sphi 0, %s419
      %s441 = sphi 0, %s443
      %s444 = sphi 0, %s441
      %s445 = sphi 0, %s444
      %s461 = sphi 0, %s445
      %s469 = sphi 0, %s471
      %s472 = sphi 0, %s469
      %s473 = sphi 0, %s472
      %s489 = sphi 0, %s473
    $region4: #{tpu_custom_call.1} parent=1 // loop_header_branch
      %30 = sbr.rel (%p28) target = $region8
    $region5: #{tpu_custom_call.1} parent=1 // loop_body
      %s32 = ssub.s32 %s27, 1
      %s33 = ssub.s32 %s27, 2
      %s40 = sadd.s32 1, %s35
      %p41 = scmp.ge.s32.totalorder %s40, 1
      %s42 = scalar_select %p41, 0, %s40
      %s43 = sadd.s32 1, %s34
      %s44 = scalar_select %p41, %s43, %s34
      %p45 = scmp.ge.s32.totalorder %s44, 2
      %s46 = scalar_select %p45, 0, %s44
      %s47 = ssub.s32 %s35, %s42
      %p48 = scmp.eq.s32.totalorder %s47, 0
      %s50 = sadd.s32 %s49, 1
      %s51 = scalar_select %p48, %s49, %s50
      %p54 = pneg %p48
      %p55 = scmp.eq.s32.totalorder %s27, 1
      %p56 = por %p54, %p55
      %p57 = scmp.ne.s32.totalorder %s49, %s52
      %p58 = scmp.eq.s32.totalorder %s27, 0
      %p59 = por %p57, %p58
      %p60 = scmp.ne.s32.totalorder %s49, %s52
      %p61 = scmp.eq.s32.totalorder %s32, 1
      %p62 = por %p60, %p61
      %p63 = scmp.ne.s32.totalorder %s52, %s53
      %p64 = scmp.eq.s32.totalorder %s32, 0
      %p65 = por %p63, %p64
      %p66 = scmp.ne.s32.totalorder %s52, %s53
      %p67 = scmp.eq.s32.totalorder %s33, 1
      %p68 = por %p66, %p67
      %p70 = scmp.ne.s32.totalorder %s53, %s69
      %p71 = scmp.eq.s32.totalorder %s33, 0
      %p72 = por %p70, %p71
      %s73 = ssub.s32 %s35, %s42
      %p74 = scmp.eq.s32.totalorder %s73, 0
      %s76 = sadd.s32 %s75, 1
      %s77 = scalar_select %p74, %s75, %s76
      %p80 = pneg %p74
      %p81 = scmp.eq.s32.totalorder %s27, 1
      %p82 = por %p80, %p81
      %p83 = scmp.ne.s32.totalorder %s75, %s78
      %p84 = scmp.eq.s32.totalorder %s27, 0
      %p85 = por %p83, %p84
      %p86 = scmp.ne.s32.totalorder %s75, %s78
      %p87 = scmp.eq.s32.totalorder %s32, 1
      %p88 = por %p86, %p87
      %p89 = scmp.ne.s32.totalorder %s78, %s79
      %p90 = scmp.eq.s32.totalorder %s32, 0
      %p91 = por %p89, %p90
      %p92 = scmp.ne.s32.totalorder %s78, %s79
      %p93 = scmp.eq.s32.totalorder %s33, 1
      %p94 = por %p92, %p93
      %p96 = scmp.ne.s32.totalorder %s79, %s95
      %p97 = scmp.eq.s32.totalorder %s33, 0
      %p98 = por %p96, %p97
      %s99 = ssub.s32 %s34, %s46
      %s100 = ssub.s32 %s35, %s42
      %s101 = sor.u32 %s99, %s100
      %p102 = scmp.eq.s32.totalorder %s101, 0
      %s104 = sadd.s32 %s103, 1
      %s105 = scalar_select %p102, %s103, %s104
      %p108 = pneg %p102
      %p109 = scmp.eq.s32.totalorder %s27, 1
      %p110 = por %p108, %p109
      %p111 = scmp.ne.s32.totalorder %s103, %s106
      %p112 = scmp.eq.s32.totalorder %s27, 0
      %p113 = por %p111, %p112
      %p114 = scmp.ne.s32.totalorder %s103, %s106
      %p115 = scmp.eq.s32.totalorder %s32, 1
      %p116 = por %p114, %p115
      %p117 = scmp.ne.s32.totalorder %s106, %s107
      %p118 = scmp.eq.s32.totalorder %s32, 0
      %p119 = por %p117, %p118
      %p120 = scmp.ne.s32.totalorder %s106, %s107
      %p121 = scmp.eq.s32.totalorder %s33, 1
      %p122 = por %p120, %p121
      %p124 = scmp.ne.s32.totalorder %s107, %s123
      %p125 = scmp.eq.s32.totalorder %s33, 0
      %p126 = por %p124, %p125
      %s127 = ssub.s32 %s34, %s46
      %p128 = scmp.eq.s32.totalorder %s127, 0
      %s130 = sadd.s32 %s129, 1
      %s131 = scalar_select %p128, %s129, %s130
      %p134 = pneg %p128
      %p135 = scmp.eq.s32.totalorder %s27, 1
      %p136 = por %p134, %p135
      %p137 = scmp.ne.s32.totalorder %s129, %s132
      %p138 = scmp.eq.s32.totalorder %s27, 0
      %p139 = por %p137, %p138
      %p140 = scmp.ne.s32.totalorder %s129, %s132
      %p141 = scmp.eq.s32.totalorder %s32, 1
      %p142 = por %p140, %p141
      %p143 = scmp.ne.s32.totalorder %s132, %s133
      %p144 = scmp.eq.s32.totalorder %s32, 0
      %p145 = por %p143, %p144
      %p146 = scmp.ne.s32.totalorder %s132, %s133
      %p147 = scmp.eq.s32.totalorder %s33, 1
      %p148 = por %p146, %p147
      %p150 = scmp.ne.s32.totalorder %s133, %s149
      %p151 = scmp.eq.s32.totalorder %s33, 0
      %p152 = por %p150, %p151
      %s153 = ssub.s32 %s34, %s46
      %p154 = scmp.eq.s32.totalorder %s153, 0
      %s156 = sadd.s32 %s155, 1
      %s157 = scalar_select %p154, %s155, %s156
      %p160 = pneg %p154
      %p161 = scmp.eq.s32.totalorder %s27, 1
      %p162 = por %p160, %p161
      %p163 = scmp.ne.s32.totalorder %s155, %s158
      %p164 = scmp.eq.s32.totalorder %s27, 0
      %p165 = por %p163, %p164
      %p166 = scmp.ne.s32.totalorder %s155, %s158
      %p167 = scmp.eq.s32.totalorder %s32, 1
      %p168 = por %p166, %p167
      %p169 = scmp.ne.s32.totalorder %s158, %s159
      %p170 = scmp.eq.s32.totalorder %s32, 0
      %p171 = por %p169, %p170
      %p172 = scmp.ne.s32.totalorder %s158, %s159
      %p173 = scmp.eq.s32.totalorder %s33, 1
      %p174 = por %p172, %p173
      %p176 = scmp.ne.s32.totalorder %s159, %s175
      %p177 = scmp.eq.s32.totalorder %s33, 0
      %p178 = por %p176, %p177
      %s179 = ssub.s32 %s34, %s46
      %p180 = scmp.eq.s32.totalorder %s179, 0
      %s182 = sadd.s32 %s181, 1
      %s183 = scalar_select %p180, %s181, %s182
      %p186 = pneg %p180
      %p187 = scmp.eq.s32.totalorder %s27, 1
      %p188 = por %p186, %p187
      %p189 = scmp.ne.s32.totalorder %s181, %s184
      %p190 = scmp.eq.s32.totalorder %s27, 0
      %p191 = por %p189, %p190
      %p192 = scmp.ne.s32.totalorder %s181, %s184
      %p193 = scmp.eq.s32.totalorder %s32, 1
      %p194 = por %p192, %p193
      %p195 = scmp.ne.s32.totalorder %s184, %s185
      %p196 = scmp.eq.s32.totalorder %s32, 0
      %p197 = por %p195, %p196
      %p198 = scmp.ne.s32.totalorder %s184, %s185
      %p199 = scmp.eq.s32.totalorder %s33, 1
      %p200 = por %p198, %p199
      %p202 = scmp.ne.s32.totalorder %s185, %s201
      %p203 = scmp.eq.s32.totalorder %s33, 0
      %p204 = por %p202, %p203
      %s205 = ssub.s32 %s34, %s46
      %p206 = scmp.eq.s32.totalorder %s205, 0
      %s208 = sadd.s32 %s207, 1
      %s209 = scalar_select %p206, %s207, %s208
      %p212 = pneg %p206
      %p213 = scmp.eq.s32.totalorder %s27, 1
      %p214 = por %p212, %p213
      %p215 = scmp.ne.s32.totalorder %s207, %s210
      %p216 = scmp.eq.s32.totalorder %s27, 0
      %p217 = por %p215, %p216
      %p218 = scmp.ne.s32.totalorder %s207, %s210
      %p219 = scmp.eq.s32.totalorder %s32, 1
      %p220 = por %p218, %p219
      %p221 = scmp.ne.s32.totalorder %s210, %s211
      %p222 = scmp.eq.s32.totalorder %s32, 0
      %p223 = por %p221, %p222
      %p224 = scmp.ne.s32.totalorder %s210, %s211
      %p225 = scmp.eq.s32.totalorder %s33, 1
      %p226 = por %p224, %p225
      %p228 = scmp.ne.s32.totalorder %s211, %s227
      %p229 = scmp.eq.s32.totalorder %s33, 0
      %p230 = por %p228, %p229
      %s231 = ssub.s32 %s34, %s46
      %p232 = scmp.eq.s32.totalorder %s231, 0
      %s234 = sadd.s32 %s233, 1
      %s235 = scalar_select %p232, %s233, %s234
      %p238 = pneg %p232
      %p239 = scmp.eq.s32.totalorder %s27, 1
      %p240 = por %p238, %p239
      %p241 = scmp.ne.s32.totalorder %s233, %s236
      %p242 = scmp.eq.s32.totalorder %s27, 0
      %p243 = por %p241, %p242
      %p244 = scmp.ne.s32.totalorder %s233, %s236
      %p245 = scmp.eq.s32.totalorder %s32, 1
      %p246 = por %p244, %p245
      %p247 = scmp.ne.s32.totalorder %s236, %s237
      %p248 = scmp.eq.s32.totalorder %s32, 0
      %p249 = por %p247, %p248
      %p250 = scmp.ne.s32.totalorder %s236, %s237
      %p251 = scmp.eq.s32.totalorder %s33, 1
      %p252 = por %p250, %p251
      %p254 = scmp.ne.s32.totalorder %s237, %s253
      %p255 = scmp.eq.s32.totalorder %s33, 0
      %p256 = por %p254, %p255
      %s257 = ssub.s32 %s34, %s46
      %p258 = scmp.eq.s32.totalorder %s257, 0
      %s260 = sadd.s32 %s259, 1
      %s261 = scalar_select %p258, %s259, %s260
      %p264 = pneg %p258
      %p265 = scmp.eq.s32.totalorder %s27, 1
      %p266 = por %p264, %p265
      %p267 = scmp.ne.s32.totalorder %s259, %s262
      %p268 = scmp.eq.s32.totalorder %s27, 0
      %p269 = por %p267, %p268
      %p270 = scmp.ne.s32.totalorder %s259, %s262
      %p271 = scmp.eq.s32.totalorder %s32, 1
      %p272 = por %p270, %p271
      %p273 = scmp.ne.s32.totalorder %s262, %s263
      %p274 = scmp.eq.s32.totalorder %s32, 0
      %p275 = por %p273, %p274
      %p276 = scmp.ne.s32.totalorder %s262, %s263
      %p277 = scmp.eq.s32.totalorder %s33, 1
      %p278 = por %p276, %p277
      %p280 = scmp.ne.s32.totalorder %s263, %s279
      %p281 = scmp.eq.s32.totalorder %s33, 0
      %p282 = por %p280, %p281
      %s283 = ssub.s32 %s34, %s46
      %p284 = scmp.eq.s32.totalorder %s283, 0
      %s286 = sadd.s32 %s285, 1
      %s287 = scalar_select %p284, %s285, %s286
      %p290 = pneg %p284
      %p291 = scmp.eq.s32.totalorder %s27, 1
      %p292 = por %p290, %p291
      %p293 = scmp.ne.s32.totalorder %s285, %s288
      %p294 = scmp.eq.s32.totalorder %s27, 0
      %p295 = por %p293, %p294
      %p296 = scmp.ne.s32.totalorder %s285, %s288
      %p297 = scmp.eq.s32.totalorder %s32, 1
      %p298 = por %p296, %p297
      %p299 = scmp.ne.s32.totalorder %s288, %s289
      %p300 = scmp.eq.s32.totalorder %s32, 0
      %p301 = por %p299, %p300
      %p302 = scmp.ne.s32.totalorder %s288, %s289
      %p303 = scmp.eq.s32.totalorder %s33, 1
      %p304 = por %p302, %p303
      %p306 = scmp.ne.s32.totalorder %s289, %s305
      %p307 = scmp.eq.s32.totalorder %s33, 0
      %p308 = por %p306, %p307
      %s309 = ssub.s32 %s34, %s46
      %p310 = scmp.eq.s32.totalorder %s309, 0
      %s312 = sadd.s32 %s311, 1
      %s313 = scalar_select %p310, %s311, %s312
      %p316 = pneg %p310
      %p317 = scmp.eq.s32.totalorder %s27, 1
      %p318 = por %p316, %p317
      %p319 = scmp.ne.s32.totalorder %s311, %s314
      %p320 = scmp.eq.s32.totalorder %s27, 0
      %p321 = por %p319, %p320
      %p322 = scmp.ne.s32.totalorder %s311, %s314
      %p323 = scmp.eq.s32.totalorder %s32, 1
      %p324 = por %p322, %p323
      %p325 = scmp.ne.s32.totalorder %s314, %s315
      %p326 = scmp.eq.s32.totalorder %s32, 0
      %p327 = por %p325, %p326
      %p328 = scmp.ne.s32.totalorder %s314, %s315
      %p329 = scmp.eq.s32.totalorder %s33, 1
      %p330 = por %p328, %p329
      %p332 = scmp.ne.s32.totalorder %s315, %s331
      %p333 = scmp.eq.s32.totalorder %s33, 0
      %p334 = por %p332, %p333
      %s335 = ssub.s32 %s34, %s46
      %p336 = scmp.eq.s32.totalorder %s335, 0
      %s338 = sadd.s32 %s337, 1
      %s339 = scalar_select %p336, %s337, %s338
      %p342 = pneg %p336
      %p343 = scmp.eq.s32.totalorder %s27, 1
      %p344 = por %p342, %p343
      %p345 = scmp.ne.s32.totalorder %s337, %s340
      %p346 = scmp.eq.s32.totalorder %s27, 0
      %p347 = por %p345, %p346
      %p348 = scmp.ne.s32.totalorder %s337, %s340
      %p349 = scmp.eq.s32.totalorder %s32, 1
      %p350 = por %p348, %p349
      %p351 = scmp.ne.s32.totalorder %s340, %s341
      %p352 = scmp.eq.s32.totalorder %s32, 0
      %p353 = por %p351, %p352
      %p354 = scmp.ne.s32.totalorder %s340, %s341
      %p355 = scmp.eq.s32.totalorder %s33, 1
      %p356 = por %p354, %p355
      %p358 = scmp.ne.s32.totalorder %s341, %s357
      %p359 = scmp.eq.s32.totalorder %s33, 0
      %p360 = por %p358, %p359
      %s361 = ssub.s32 %s34, %s46
      %p362 = scmp.eq.s32.totalorder %s361, 0
      %s364 = sadd.s32 %s363, 1
      %s365 = scalar_select %p362, %s363, %s364
      %p368 = pneg %p362
      %p369 = scmp.eq.s32.totalorder %s27, 1
      %p370 = por %p368, %p369
      %p371 = scmp.ne.s32.totalorder %s363, %s366
      %p372 = scmp.eq.s32.totalorder %s27, 0
      %p373 = por %p371, %p372
      %p374 = scmp.ne.s32.totalorder %s363, %s366
      %p375 = scmp.eq.s32.totalorder %s32, 1
      %p376 = por %p374, %p375
      %p377 = scmp.ne.s32.totalorder %s366, %s367
      %p378 = scmp.eq.s32.totalorder %s32, 0
      %p379 = por %p377, %p378
      %p380 = scmp.ne.s32.totalorder %s366, %s367
      %p381 = scmp.eq.s32.totalorder %s33, 1
      %p382 = por %p380, %p381
      %p384 = scmp.ne.s32.totalorder %s367, %s383
      %p385 = scmp.eq.s32.totalorder %s33, 0
      %p386 = por %p384, %p385
      %s387 = ssub.s32 %s34, %s46
      %p388 = scmp.eq.s32.totalorder %s387, 0
      %s390 = sadd.s32 %s389, 1
      %s391 = scalar_select %p388, %s389, %s390
      %p394 = pneg %p388
      %p395 = scmp.eq.s32.totalorder %s27, 1
      %p396 = por %p394, %p395
      %p397 = scmp.ne.s32.totalorder %s389, %s392
      %p398 = scmp.eq.s32.totalorder %s27, 0
      %p399 = por %p397, %p398
      %p400 = scmp.ne.s32.totalorder %s389, %s392
      %p401 = scmp.eq.s32.totalorder %s32, 1
      %p402 = por %p400, %p401
      %p403 = scmp.ne.s32.totalorder %s392, %s393
      %p404 = scmp.eq.s32.totalorder %s32, 0
      %p405 = por %p403, %p404
      %p406 = scmp.ne.s32.totalorder %s392, %s393
      %p407 = scmp.eq.s32.totalorder %s33, 1
      %p408 = por %p406, %p407
      %p410 = scmp.ne.s32.totalorder %s393, %s409
      %p411 = scmp.eq.s32.totalorder %s33, 0
      %p412 = por %p410, %p411
      %s413 = ssub.s32 %s34, %s46
      %p414 = scmp.eq.s32.totalorder %s413, 0
      %s416 = sadd.s32 %s415, 1
      %s417 = scalar_select %p414, %s415, %s416
      %p420 = pneg %p414
      %p421 = scmp.eq.s32.totalorder %s27, 1
      %p422 = por %p420, %p421
      %p423 = scmp.ne.s32.totalorder %s415, %s418
      %p424 = scmp.eq.s32.totalorder %s27, 0
      %p425 = por %p423, %p424
      %p426 = scmp.ne.s32.totalorder %s415, %s418
      %p427 = scmp.eq.s32.totalorder %s32, 1
      %p428 = por %p426, %p427
      %p429 = scmp.ne.s32.totalorder %s418, %s419
      %p430 = scmp.eq.s32.totalorder %s32, 0
      %p431 = por %p429, %p430
      %p432 = scmp.ne.s32.totalorder %s418, %s419
      %p433 = scmp.eq.s32.totalorder %s33, 1
      %p434 = por %p432, %p433
      %p436 = scmp.ne.s32.totalorder %s419, %s435
      %p437 = scmp.eq.s32.totalorder %s33, 0
      %p438 = por %p436, %p437
      %s439 = ssub.s32 %s34, %s46
      %p440 = scmp.eq.s32.totalorder %s439, 0
      %s442 = sadd.s32 %s441, 1
      %s443 = scalar_select %p440, %s441, %s442
      %p446 = pneg %p440
      %p447 = scmp.eq.s32.totalorder %s27, 1
      %p448 = por %p446, %p447
      %p449 = scmp.ne.s32.totalorder %s441, %s444
      %p450 = scmp.eq.s32.totalorder %s27, 0
      %p451 = por %p449, %p450
      %p452 = scmp.ne.s32.totalorder %s441, %s444
      %p453 = scmp.eq.s32.totalorder %s32, 1
      %p454 = por %p452, %p453
      %p455 = scmp.ne.s32.totalorder %s444, %s445
      %p456 = scmp.eq.s32.totalorder %s32, 0
      %p457 = por %p455, %p456
      %p458 = scmp.ne.s32.totalorder %s444, %s445
      %p459 = scmp.eq.s32.totalorder %s33, 1
      %p460 = por %p458, %p459
      %p462 = scmp.ne.s32.totalorder %s445, %s461
      %p463 = scmp.eq.s32.totalorder %s33, 0
      %p464 = por %p462, %p463
      %s465 = ssub.s32 %s34, %s46
      %s466 = ssub.s32 %s35, %s42
      %s467 = sor.u32 %s465, %s466
      %p468 = scmp.eq.s32.totalorder %s467, 0
      %s470 = sadd.s32 %s469, 1
      %s471 = scalar_select %p468, %s469, %s470
      %p474 = pneg %p468
      %p475 = scmp.eq.s32.totalorder %s27, 1
      %p476 = por %p474, %p475
      %p477 = scmp.ne.s32.totalorder %s469, %s472
      %p478 = scmp.eq.s32.totalorder %s27, 0
      %p479 = por %p477, %p478
      %p480 = scmp.ne.s32.totalorder %s469, %s472
      %p481 = scmp.eq.s32.totalorder %s32, 1
      %p482 = por %p480, %p481
      %p483 = scmp.ne.s32.totalorder %s472, %s473
      %p484 = scmp.eq.s32.totalorder %s32, 0
      %p485 = por %p483, %p484
      %p486 = scmp.ne.s32.totalorder %s472, %s473
      %p487 = scmp.eq.s32.totalorder %s33, 1
      %p488 = por %p486, %p487
      %p490 = scmp.ne.s32.totalorder %s473, %s489
      %p491 = scmp.eq.s32.totalorder %s33, 0
      %p492 = por %p490, %p491
      %p493 = scmp.le.s32.totalorder 1, %s27
      %p494 = scmp.lt.s32.totalorder %s27, 3
      %p495 = pnand %p493, %p494
      %p496 = pneg %p495
      // Predicated region
      $region9: #{tpu_custom_call.1} parent=5 // pred_check
        _
      $region10: #{tpu_custom_call.1} parent=5 // pred_check_branch
        %498 = sbr.rel (%p495) target = $region12
      $region11: #{tpu_custom_call.1} parent=5 // pred_region
        %s499 = ssub.s32 %s27, 1
        // Predicated region
        $region13: #{tpu_custom_call.1} parent=11 // pred_check
          %p500 = pneg %p65
        $region14: #{tpu_custom_call.1} parent=11 // pred_check_branch
          %502 = sbr.rel (%p500) target = $region16
        $region15: #{tpu_custom_call.1} parent=11 // pred_region
          %s504 = ssub.s32 1024, 1024
          %505 = vsyncadd [#allocation6], %s504
          %s506 = smul.addr %s37, 128
          %s507 = scalar_lea.hbm %s0, %s506
          %s508 = sshll.u32 [#allocation5], 4
          %s509 = int_to_ptr.vmem [resolvable:$true] %s508
          %514 = dma.hbm_to_vmem [thread:$0]  %s507, 1024, %s509, [#allocation6], 128, 128, 8
        $region16: #{tpu_custom_call.1} parent=11 // pred_fallthru
          _
        // Predicated region
        $region17: #{tpu_custom_call.1} parent=11 // pred_check
          %p515 = pneg %p91
        $region18: #{tpu_custom_call.1} parent=11 // pred_check_branch
          %517 = sbr.rel (%p515) target = $region20
        $region19: #{tpu_custom_call.1} parent=11 // pred_region
          %s519 = ssub.s32 1024, 1024
          %520 = vsyncadd [#allocation9], %s519
          %s521 = smul.addr %s37, 128
          %s522 = scalar_lea.hbm %s1, %s521
          %s523 = sshll.u32 [#allocation8], 4
          %s524 = int_to_ptr.vmem [resolvable:$true] %s523
          %529 = dma.hbm_to_vmem [thread:$0]  %s522, 1024, %s524, [#allocation9], 128, 128, 8
        $region20: #{tpu_custom_call.1} parent=11 // pred_fallthru
          _
      $region12: #{tpu_custom_call.1} parent=5 // pred_fallthru
        _
      %p530 = scmp.lt.s32.totalorder %s27, 2
      // Predicated region
      $region21: #{tpu_custom_call.1} parent=5 // pred_check
        %p531 = pneg %p530
      $region22: #{tpu_custom_call.1} parent=5 // pred_check_branch
        %533 = sbr.rel (%p531) target = $region24
      $region23: #{tpu_custom_call.1} parent=5 // pred_region
        // Predicated region
        $region25: #{tpu_custom_call.1} parent=23 // pred_check
          %p534 = pneg %p113
        $region26: #{tpu_custom_call.1} parent=23 // pred_check_branch
          %536 = sbr.rel (%p534) target = $region28
        $region27: #{tpu_custom_call.1} parent=23 // pred_region
          %s537 = sand.u32 %s27, 1
          %s538 = scalar_lea.sflag [#allocation6], %s537
          %s539 = sand.u32 %s103, 1
          %s540 = smul.addr %s539, 64
          %s541 = scalar_lea.vmem [#allocation10], %s540
          %s543 = ssub.s32 1024, 1024
          %544 = vsyncadd %s538, %s543
          %s545 = smul.addr %s34, 8
          %s546 = sadd.s32 %s35, %s545
          %s547 = smul.addr %s546, 128
          %s548 = scalar_lea.hbm %s2, %s547
          %s549 = sshll.u32 %s541, 4
          %s550 = int_to_ptr.vmem [resolvable:$true] %s549
          %555 = dma.hbm_to_vmem [thread:$0]  %s548, 1024, %s550, %s538, 128, 128, 8
        $region28: #{tpu_custom_call.1} parent=23 // pred_fallthru
          _
        // Predicated region
        $region29: #{tpu_custom_call.1} parent=23 // pred_check
          %p556 = pneg %p139
        $region30: #{tpu_custom_call.1} parent=23 // pred_check_branch
          %558 = sbr.rel (%p556) target = $region32
        $region31: #{tpu_custom_call.1} parent=23 // pred_region
          %s559 = sand.u32 %s27, 1
          %s560 = scalar_lea.sflag [#allocation6], %s559
          %s561 = sand.u32 %s129, 1
          %s562 = smul.addr %s561, 16
          %s563 = scalar_lea.vmem [#allocation11], %s562
          %s565 = ssub.s32 256, 256
          %566 = vsyncadd %s560, %s565
          %s567 = smul.addr %s34, 2
          %s568 = smul.addr %s567, 128
          %s569 = scalar_lea.hbm %s3, %s568
          %s570 = sshll.u32 %s563, 4
          %s571 = int_to_ptr.vmem [resolvable:$true] %s570
          %576 = dma.hbm_to_vmem [thread:$0]  %s569, 256, %s571, %s560, 128, 128, 8
        $region32: #{tpu_custom_call.1} parent=23 // pred_fallthru
          _
        // Predicated region
        $region33: #{tpu_custom_call.1} parent=23 // pred_check
          %p577 = pneg %p165
        $region34: #{tpu_custom_call.1} parent=23 // pred_check_branch
          %579 = sbr.rel (%p577) target = $region36
        $region35: #{tpu_custom_call.1} parent=23 // pred_region
          %p580 = scmp.lt.s32.totalorder %s34, 1
          %s581 = scalar_select %p580, %s34, 1
          %s582 = scalar_lea.vmem %s4, %s581
        $region36: #{tpu_custom_call.1} parent=23 // pred_fallthru
          _
        // Predicated region
        $region37: #{tpu_custom_call.1} parent=23 // pred_check
          %p583 = pneg %p191
        $region38: #{tpu_custom_call.1} parent=23 // pred_check_branch
          %585 = sbr.rel (%p583) target = $region40
        $region39: #{tpu_custom_call.1} parent=23 // pred_region
          %s586 = sand.u32 %s27, 1
          %s587 = scalar_lea.sflag [#allocation6], %s586
          %s588 = sand.u32 %s181, 1
          %s589 = scalar_lea.vmem [#allocation12], %s588
          %s591 = ssub.s32 16, 16
          %592 = vsyncadd %s587, %s591
          %s593 = smul.addr %s34, 16
          %s594 = scalar_lea.hbm %s5, %s593
          %s596 = sshll.u32 %s589, 4
          %s597 = int_to_ptr.vmem [resolvable:$true] %s596
          %599 = dma.hbm_to_vmem [thread:$0]  %s594, 16, %s597, %s587
        $region40: #{tpu_custom_call.1} parent=23 // pred_fallthru
          _
        // Predicated region
        $region41: #{tpu_custom_call.1} parent=23 // pred_check
          %p600 = pneg %p217
        $region42: #{tpu_custom_call.1} parent=23 // pred_check_branch
          %602 = sbr.rel (%p600) target = $region44
        $region43: #{tpu_custom_call.1} parent=23 // pred_region
          %s603 = sand.u32 %s27, 1
          %s604 = scalar_lea.sflag [#allocation6], %s603
          %s605 = sand.u32 %s207, 1
          %s606 = scalar_lea.vmem [#allocation13], %s605
          %s608 = ssub.s32 16, 16
          %609 = vsyncadd %s604, %s608
          %s610 = smul.addr %s34, 16
          %s611 = scalar_lea.hbm %s6, %s610
          %s613 = sshll.u32 %s606, 4
          %s614 = int_to_ptr.vmem [resolvable:$true] %s613
          %616 = dma.hbm_to_vmem [thread:$0]  %s611, 16, %s614, %s604
        $region44: #{tpu_custom_call.1} parent=23 // pred_fallthru
          _
        // Predicated region
        $region45: #{tpu_custom_call.1} parent=23 // pred_check
          %p617 = pneg %p243
        $region46: #{tpu_custom_call.1} parent=23 // pred_check_branch
          %619 = sbr.rel (%p617) target = $region48
        $region47: #{tpu_custom_call.1} parent=23 // pred_region
          %s620 = sand.u32 %s27, 1
          %s621 = scalar_lea.sflag [#allocation6], %s620
          %s622 = sand.u32 %s233, 1
          %s623 = smul.addr %s622, 64
          %s624 = scalar_lea.vmem [#allocation14], %s623
          %s626 = ssub.s32 1024, 1024
          %627 = vsyncadd %s621, %s626
          %s628 = smul.addr %s34, 8
          %s629 = smul.addr %s628, 128
          %s630 = scalar_lea.hbm %s7, %s629
          %s631 = sshll.u32 %s624, 4
          %s632 = int_to_ptr.vmem [resolvable:$true] %s631
          %637 = dma.hbm_to_vmem [thread:$0]  %s630, 1024, %s632, %s621, 256, 256, 16
        $region48: #{tpu_custom_call.1} parent=23 // pred_fallthru
          _
        // Predicated region
        $region49: #{tpu_custom_call.1} parent=23 // pred_check
          %p638 = pneg %p269
        $region50: #{tpu_custom_call.1} parent=23 // pred_check_branch
          %640 = sbr.rel (%p638) target = $region52
        $region51: #{tpu_custom_call.1} parent=23 // pred_region
          %s641 = sand.u32 %s27, 1
          %s642 = scalar_lea.sflag [#allocation6], %s641
          %s643 = sand.u32 %s259, 1
          %s644 = scalar_lea.vmem [#allocation15], %s643
          %s646 = ssub.s32 16, 16
          %647 = vsyncadd %s642, %s646
          %s648 = smul.addr %s34, 16
          %s649 = scalar_lea.hbm %s8, %s648
          %s651 = sshll.u32 %s644, 4
          %s652 = int_to_ptr.vmem [resolvable:$true] %s651
          %654 = dma.hbm_to_vmem [thread:$0]  %s649, 16, %s652, %s642
        $region52: #{tpu_custom_call.1} parent=23 // pred_fallthru
          _
        // Predicated region
        $region53: #{tpu_custom_call.1} parent=23 // pred_check
          %p655 = pneg %p295
        $region54: #{tpu_custom_call.1} parent=23 // pred_check_branch
          %657 = sbr.rel (%p655) target = $region56
        $region55: #{tpu_custom_call.1} parent=23 // pred_region
          %p658 = scmp.lt.s32.totalorder %s34, 1
          %s659 = scalar_select %p658, %s34, 1
          %s660 = smul.addr %s659, 2
          %s661 = smul.addr %s660, 8
          %s662 = scalar_lea.vmem %s9, %s661
        $region56: #{tpu_custom_call.1} parent=23 // pred_fallthru
          _
        // Predicated region
        $region57: #{tpu_custom_call.1} parent=23 // pred_check
          %p663 = pneg %p321
        $region58: #{tpu_custom_call.1} parent=23 // pred_check_branch
          %665 = sbr.rel (%p663) target = $region60
        $region59: #{tpu_custom_call.1} parent=23 // pred_region
          %p666 = scmp.lt.s32.totalorder %s34, 1
          %s667 = scalar_select %p666, %s34, 1
          %s668 = scalar_lea.vmem %s10, %s667
        $region60: #{tpu_custom_call.1} parent=23 // pred_fallthru
          _
        // Predicated region
        $region61: #{tpu_custom_call.1} parent=23 // pred_check
          %p669 = pneg %p347
        $region62: #{tpu_custom_call.1} parent=23 // pred_check_branch
          %671 = sbr.rel (%p669) target = $region64
        $region63: #{tpu_custom_call.1} parent=23 // pred_region
          %s672 = sand.u32 %s27, 1
          %s673 = scalar_lea.sflag [#allocation6], %s672
          %s674 = sand.u32 %s337, 1
          %s675 = smul.addr %s674, 16
          %s676 = scalar_lea.vmem [#allocation16], %s675
          %s678 = ssub.s32 256, 256
          %679 = vsyncadd %s673, %s678
          %s680 = smul.addr %s34, 2
          %s681 = smul.addr %s680, 128
          %s682 = scalar_lea.hbm %s11, %s681
          %s683 = sshll.u32 %s676, 4
          %s684 = int_to_ptr.vmem [resolvable:$true] %s683
          %689 = dma.hbm_to_vmem [thread:$0]  %s682, 256, %s684, %s673, 128, 128, 8
        $region64: #{tpu_custom_call.1} parent=23 // pred_fallthru
          _
        // Predicated region
        $region65: #{tpu_custom_call.1} parent=23 // pred_check
          %p690 = pneg %p373
        $region66: #{tpu_custom_call.1} parent=23 // pred_check_branch
          %692 = sbr.rel (%p690) target = $region68
        $region67: #{tpu_custom_call.1} parent=23 // pred_region
          %s693 = sand.u32 %s27, 1
          %s694 = scalar_lea.sflag [#allocation6], %s693
          %s695 = sand.u32 %s363, 1
          %s696 = smul.addr %s695, 32
          %s697 = scalar_lea.vmem [#allocation17], %s696
          %s699 = ssub.s32 512, 512
          %700 = vsyncadd %s694, %s699
          %s701 = smul.addr %s34, 4
          %s702 = smul.addr %s701, 128
          %s703 = scalar_lea.hbm %s12, %s702
          %s704 = sshll.u32 %s697, 4
          %s705 = int_to_ptr.vmem [resolvable:$true] %s704
          %710 = dma.hbm_to_vmem [thread:$0]  %s703, 512, %s705, %s694, 256, 256, 16
        $region68: #{tpu_custom_call.1} parent=23 // pred_fallthru
          _
        // Predicated region
        $region69: #{tpu_custom_call.1} parent=23 // pred_check
          %p711 = pneg %p399
        $region70: #{tpu_custom_call.1} parent=23 // pred_check_branch
          %713 = sbr.rel (%p711) target = $region72
        $region71: #{tpu_custom_call.1} parent=23 // pred_region
          %p714 = scmp.lt.s32.totalorder %s34, 1
          %s715 = scalar_select %p714, %s34, 1
          %s716 = scalar_lea.vmem %s13, %s715
        $region72: #{tpu_custom_call.1} parent=23 // pred_fallthru
          _
        // Predicated region
        $region73: #{tpu_custom_call.1} parent=23 // pred_check
          %p717 = pneg %p425
        $region74: #{tpu_custom_call.1} parent=23 // pred_check_branch
          %719 = sbr.rel (%p717) target = $region76
        $region75: #{tpu_custom_call.1} parent=23 // pred_region
          %s720 = sand.u32 %s27, 1
          %s721 = scalar_lea.sflag [#allocation6], %s720
          %s722 = sand.u32 %s415, 1
          %s723 = smul.addr %s722, 16
          %s724 = scalar_lea.vmem [#allocation18], %s723
          %s726 = ssub.s32 256, 256
          %727 = vsyncadd %s721, %s726
          %s728 = smul.addr %s34, 2
          %s729 = smul.addr %s728, 128
          %s730 = scalar_lea.hbm %s14, %s729
          %s731 = sshll.u32 %s724, 4
          %s732 = int_to_ptr.vmem [resolvable:$true] %s731
          %737 = dma.hbm_to_vmem [thread:$0]  %s730, 256, %s732, %s721, 128, 128, 8
        $region76: #{tpu_custom_call.1} parent=23 // pred_fallthru
          _
        // Predicated region
        $region77: #{tpu_custom_call.1} parent=23 // pred_check
          %p738 = pneg %p451
        $region78: #{tpu_custom_call.1} parent=23 // pred_check_branch
          %740 = sbr.rel (%p738) target = $region80
        $region79: #{tpu_custom_call.1} parent=23 // pred_region
          %p741 = scmp.lt.s32.totalorder %s34, 1
          %s742 = scalar_select %p741, %s34, 1
          %s743 = scalar_lea.vmem %s15, %s742
        $region80: #{tpu_custom_call.1} parent=23 // pred_fallthru
          _
      $region24: #{tpu_custom_call.1} parent=5 // pred_fallthru
        _
      %p744 = scmp.le.s32.totalorder 1, %s27
      %p745 = scmp.lt.s32.totalorder %s27, 3
      %p746 = pnand %p744, %p745
      %p747 = pneg %p746
      // Predicated region
      $region81: #{tpu_custom_call.1} parent=5 // pred_check
        _
      $region82: #{tpu_custom_call.1} parent=5 // pred_check_branch
        %749 = sbr.rel (%p746) target = $region84
      $region83: #{tpu_custom_call.1} parent=5 // pred_region
        %s750 = ssub.s32 %s27, 1
        // Predicated region
        $region85: #{tpu_custom_call.1} parent=83 // pred_check
          %p751 = pneg %p65
        $region86: #{tpu_custom_call.1} parent=83 // pred_check_branch
          %753 = sbr.rel (%p751) target = $region88
        $region87: #{tpu_custom_call.1} parent=83 // pred_region
          %754 = dma.done [#allocation6], 1024
        $region88: #{tpu_custom_call.1} parent=83 // pred_fallthru
          _
        // Predicated region
        $region89: #{tpu_custom_call.1} parent=83 // pred_check
          %p755 = pneg %p91
        $region90: #{tpu_custom_call.1} parent=83 // pred_check_branch
          %757 = sbr.rel (%p755) target = $region92
        $region91: #{tpu_custom_call.1} parent=83 // pred_region
          %758 = dma.done [#allocation9], 1024
        $region92: #{tpu_custom_call.1} parent=83 // pred_fallthru
          _
        %s759 = sand.u32 %s32, 1
        %s760 = scalar_lea.sflag [#allocation6], %s759
        %s761 = sand.u32 %s106, 1
        %s762 = smul.addr %s761, 64
        %s763 = scalar_lea.vmem [#allocation10], %s762
        // Predicated region
        $region93: #{tpu_custom_call.1} parent=83 // pred_check
          %p764 = pneg %p119
        $region94: #{tpu_custom_call.1} parent=83 // pred_check_branch
          %766 = sbr.rel (%p764) target = $region96
        $region95: #{tpu_custom_call.1} parent=83 // pred_region
          %767 = dma.done %s760, 1024
        $region96: #{tpu_custom_call.1} parent=83 // pred_fallthru
          _
        %s768 = sand.u32 %s32, 1
        %s769 = scalar_lea.sflag [#allocation6], %s768
        %s770 = sand.u32 %s132, 1
        %s771 = smul.addr %s770, 16
        %s772 = scalar_lea.vmem [#allocation11], %s771
        // Predicated region
        $region97: #{tpu_custom_call.1} parent=83 // pred_check
          %p773 = pneg %p145
        $region98: #{tpu_custom_call.1} parent=83 // pred_check_branch
          %775 = sbr.rel (%p773) target = $region100
        $region99: #{tpu_custom_call.1} parent=83 // pred_region
          %776 = dma.done %s769, 256
        $region100: #{tpu_custom_call.1} parent=83 // pred_fallthru
          _
        %s777 = sand.u32 %s32, 1
        %s778 = scalar_lea.sflag [#allocation6], %s777
        %s779 = sand.u32 %s184, 1
        %s780 = scalar_lea.vmem [#allocation12], %s779
        // Predicated region
        $region101: #{tpu_custom_call.1} parent=83 // pred_check
          %p781 = pneg %p197
        $region102: #{tpu_custom_call.1} parent=83 // pred_check_branch
          %783 = sbr.rel (%p781) target = $region104
        $region103: #{tpu_custom_call.1} parent=83 // pred_region
          %784 = dma.done %s778, 16
        $region104: #{tpu_custom_call.1} parent=83 // pred_fallthru
          _
        %s785 = sand.u32 %s32, 1
        %s786 = scalar_lea.sflag [#allocation6], %s785
        %s787 = sand.u32 %s210, 1
        %s788 = scalar_lea.vmem [#allocation13], %s787
        // Predicated region
        $region105: #{tpu_custom_call.1} parent=83 // pred_check
          %p789 = pneg %p223
        $region106: #{tpu_custom_call.1} parent=83 // pred_check_branch
          %791 = sbr.rel (%p789) target = $region108
        $region107: #{tpu_custom_call.1} parent=83 // pred_region
          %792 = dma.done %s786, 16
        $region108: #{tpu_custom_call.1} parent=83 // pred_fallthru
          _
        %s793 = sand.u32 %s32, 1
        %s794 = scalar_lea.sflag [#allocation6], %s793
        %s795 = sand.u32 %s236, 1
        %s796 = smul.addr %s795, 64
        %s797 = scalar_lea.vmem [#allocation14], %s796
        // Predicated region
        $region109: #{tpu_custom_call.1} parent=83 // pred_check
          %p798 = pneg %p249
        $region110: #{tpu_custom_call.1} parent=83 // pred_check_branch
          %800 = sbr.rel (%p798) target = $region112
        $region111: #{tpu_custom_call.1} parent=83 // pred_region
          %801 = dma.done %s794, 1024
        $region112: #{tpu_custom_call.1} parent=83 // pred_fallthru
          _
        %s802 = sand.u32 %s32, 1
        %s803 = scalar_lea.sflag [#allocation6], %s802
        %s804 = sand.u32 %s262, 1
        %s805 = scalar_lea.vmem [#allocation15], %s804
        // Predicated region
        $region113: #{tpu_custom_call.1} parent=83 // pred_check
          %p806 = pneg %p275
        $region114: #{tpu_custom_call.1} parent=83 // pred_check_branch
          %808 = sbr.rel (%p806) target = $region116
        $region115: #{tpu_custom_call.1} parent=83 // pred_region
          %809 = dma.done %s803, 16
        $region116: #{tpu_custom_call.1} parent=83 // pred_fallthru
          _
        %s810 = sand.u32 %s32, 1
        %s811 = scalar_lea.sflag [#allocation6], %s810
        %s812 = sand.u32 %s340, 1
        %s813 = smul.addr %s812, 16
        %s814 = scalar_lea.vmem [#allocation16], %s813
        // Predicated region
        $region117: #{tpu_custom_call.1} parent=83 // pred_check
          %p815 = pneg %p353
        $region118: #{tpu_custom_call.1} parent=83 // pred_check_branch
          %817 = sbr.rel (%p815) target = $region120
        $region119: #{tpu_custom_call.1} parent=83 // pred_region
          %818 = dma.done %s811, 256
        $region120: #{tpu_custom_call.1} parent=83 // pred_fallthru
          _
        %s819 = sand.u32 %s32, 1
        %s820 = scalar_lea.sflag [#allocation6], %s819
        %s821 = sand.u32 %s366, 1
        %s822 = smul.addr %s821, 32
        %s823 = scalar_lea.vmem [#allocation17], %s822
        // Predicated region
        $region121: #{tpu_custom_call.1} parent=83 // pred_check
          %p824 = pneg %p379
        $region122: #{tpu_custom_call.1} parent=83 // pred_check_branch
          %826 = sbr.rel (%p824) target = $region124
        $region123: #{tpu_custom_call.1} parent=83 // pred_region
          %827 = dma.done %s820, 512
        $region124: #{tpu_custom_call.1} parent=83 // pred_fallthru
          _
        %s828 = sand.u32 %s32, 1
        %s829 = scalar_lea.sflag [#allocation6], %s828
        %s830 = sand.u32 %s418, 1
        %s831 = smul.addr %s830, 16
        %s832 = scalar_lea.vmem [#allocation18], %s831
        // Predicated region
        $region125: #{tpu_custom_call.1} parent=83 // pred_check
          %p833 = pneg %p431
        $region126: #{tpu_custom_call.1} parent=83 // pred_check_branch
          %835 = sbr.rel (%p833) target = $region128
        $region127: #{tpu_custom_call.1} parent=83 // pred_region
          %836 = dma.done %s829, 256
        $region128: #{tpu_custom_call.1} parent=83 // pred_fallthru
          _
        %p837 = pneg %p65
        %p838 = pneg %p62
        %p839 = pneg %p91
        %p840 = pneg %p88
        %s841 = sand.u32 %s32, 1
        %s842 = scalar_lea.sflag [#allocation6], %s841
        %s843 = sand.u32 %s106, 1
        %s844 = smul.addr %s843, 64
        %s845 = scalar_lea.vmem [#allocation10], %s844
        %p846 = pneg %p119
        %p847 = pneg %p116
        %s848 = sand.u32 %s32, 1
        %s849 = scalar_lea.sflag [#allocation6], %s848
        %s850 = sand.u32 %s132, 1
        %s851 = smul.addr %s850, 16
        %s852 = scalar_lea.vmem [#allocation11], %s851
        %p853 = pneg %p145
        %p854 = pneg %p142
        %p855 = scmp.lt.s32.totalorder %s36, 1
        %s856 = scalar_select %p855, %s36, 1
        %s857 = scalar_lea.vmem %s4, %s856
        %p858 = pneg %p171
        %p859 = pneg %p168
        %s860 = sand.u32 %s32, 1
        %s861 = scalar_lea.sflag [#allocation6], %s860
        %s862 = sand.u32 %s184, 1
        %s863 = scalar_lea.vmem [#allocation12], %s862
        %p864 = pneg %p197
        %p865 = pneg %p194
        %s866 = sand.u32 %s32, 1
        %s867 = scalar_lea.sflag [#allocation6], %s866
        %s868 = sand.u32 %s210, 1
        %s869 = scalar_lea.vmem [#allocation13], %s868
        %p870 = pneg %p223
        %p871 = pneg %p220
        %s872 = sand.u32 %s32, 1
        %s873 = scalar_lea.sflag [#allocation6], %s872
        %s874 = sand.u32 %s236, 1
        %s875 = smul.addr %s874, 64
        %s876 = scalar_lea.vmem [#allocation14], %s875
        %p877 = pneg %p249
        %p878 = pneg %p246
        %s879 = sand.u32 %s32, 1
        %s880 = scalar_lea.sflag [#allocation6], %s879
        %s881 = sand.u32 %s262, 1
        %s882 = scalar_lea.vmem [#allocation15], %s881
        %p883 = pneg %p275
        %p884 = pneg %p272
        %p885 = scmp.lt.s32.totalorder %s36, 1
        %s886 = scalar_select %p885, %s36, 1
        %s887 = smul.addr %s886, 2
        %s888 = smul.addr %s887, 8
        %s889 = scalar_lea.vmem %s9, %s888
        %p890 = pneg %p301
        %p891 = pneg %p298
        %p892 = scmp.lt.s32.totalorder %s36, 1
        %s893 = scalar_select %p892, %s36, 1
        %s894 = scalar_lea.vmem %s10, %s893
        %p895 = pneg %p327
        %p896 = pneg %p324
        %s897 = sand.u32 %s32, 1
        %s898 = scalar_lea.sflag [#allocation6], %s897
        %s899 = sand.u32 %s340, 1
        %s900 = smul.addr %s899, 16
        %s901 = scalar_lea.vmem [#allocation16], %s900
        %p902 = pneg %p353
        %p903 = pneg %p350
        %s904 = sand.u32 %s32, 1
        %s905 = scalar_lea.sflag [#allocation6], %s904
        %s906 = sand.u32 %s366, 1
        %s907 = smul.addr %s906, 32
        %s908 = scalar_lea.vmem [#allocation17], %s907
        %p909 = pneg %p379
        %p910 = pneg %p376
        %p911 = scmp.lt.s32.totalorder %s36, 1
        %s912 = scalar_select %p911, %s36, 1
        %s913 = scalar_lea.vmem %s13, %s912
        %p914 = pneg %p405
        %p915 = pneg %p402
        %s916 = sand.u32 %s32, 1
        %s917 = scalar_lea.sflag [#allocation6], %s916
        %s918 = sand.u32 %s418, 1
        %s919 = smul.addr %s918, 16
        %s920 = scalar_lea.vmem [#allocation18], %s919
        %p921 = pneg %p431
        %p922 = pneg %p428
        %p923 = scmp.lt.s32.totalorder %s36, 1
        %s924 = scalar_select %p923, %s36, 1
        %s925 = scalar_lea.vmem %s15, %s924
        %p926 = pneg %p457
        %p927 = pneg %p454
        %p928 = pneg %p485
        %p929 = pneg %p482
        %s930 = sand.u32 %s472, 1
        %s931 = scalar_lea.sflag [#allocation7], %s930
        %s932 = sand.u32 %s472, 1
        %s933 = smul.addr %s932, 64
        %s934 = scalar_lea.vmem [#allocation19], %s933
        %p935 = scmp.lt.s32.totalorder %s36, 1
        %s936 = scalar_select %p935, %s36, 1
        %s937 = scalar_lea.vmem %s4, %s936
        %p938 = scmp.lt.s32.totalorder %s36, 1
        %s939 = scalar_select %p938, %s36, 1
        %s940 = smul.addr %s939, 2
        %s941 = smul.addr %s940, 8
        %s942 = scalar_lea.vmem %s9, %s941
        %p943 = scmp.lt.s32.totalorder %s36, 1
        %s944 = scalar_select %p943, %s36, 1
        %s945 = scalar_lea.vmem %s10, %s944
        %p946 = scmp.lt.s32.totalorder %s36, 1
        %s947 = scalar_select %p946, %s36, 1
        %s948 = scalar_lea.vmem %s13, %s947
        %p949 = scmp.lt.s32.totalorder %s36, 1
        %s950 = scalar_select %p949, %s36, 1
        %s951 = scalar_lea.vmem %s15, %s950
        %v952 = vld [vmem:[%s763] sm:$0xff]
        %v953 = vld [vmem:[%s763 + $0x8] sm:$0xff]
        %v954 = vld [vmem:[%s763 + $0x10] sm:$0xff]
        %v955 = vld [vmem:[%s763 + $0x18] sm:$0xff]
        %v956 = vld [vmem:[%s763 + $0x20] sm:$0xff]
        %v957 = vld [vmem:[%s763 + $0x28] sm:$0xff]
        %v958 = vld [vmem:[%s763 + $0x30] sm:$0xff]
        %v959 = vld [vmem:[%s763 + $0x38] sm:$0xff]
        %v960 = vld [vmem:[#allocation8] sm:$0xff]
        %v961 = vld [vmem:[#allocation8 + $0x8] sm:$0xff]
        %v962 = vld [vmem:[#allocation8 + $0x10] sm:$0xff]
        %v963 = vld [vmem:[#allocation8 + $0x18] sm:$0xff]
        %v964 = vld [vmem:[#allocation8 + $0x20] sm:$0xff]
        %v965 = vld [vmem:[#allocation8 + $0x28] sm:$0xff]
        %v966 = vld [vmem:[#allocation8 + $0x30] sm:$0xff]
        %v967 = vld [vmem:[#allocation8 + $0x38] sm:$0xff]
        %v968 = vld [vmem:[%s772] sm:$0xff]
        %v969 = vld [vmem:[%s772 + $0x8] sm:$0xff]
        %v970 = vld [vmem:[%s937] sm:$0x1]
        %v972 = vlaneseq
        %v973 = vshrl.u32 %v972, 7
        %v974 = vsub.s32 0, %v973
        %v975 = vrot.slane %v970, %v974
        %vm977 = vcmask 130048
        %v979 = vsel %vm977, %v952, 0
        %v982 = vsel %vm977, %v953, 0
        %v985 = vsel %vm977, %v954, 0
        %v988 = vsel %vm977, %v955, 0
        %v991 = vsel %vm977, %v956, 0
        %v994 = vsel %vm977, %v957, 0
        %v997 = vsel %vm977, %v958, 0
        %v1000 = vsel %vm977, %v959, 0
        %1002 = vmatprep.subr.mxu0 0.0
        %1003 = vmatpush1.msra.mxu0 %v968
        %1004 = vmatprep.subr.mxu0 0.0
        %1005 = vmatpush1.msra.mxu0 %v969
        %1006 = vmatprep.subr.mxu0 0.0
        %1007 = vmatpush1.msra.mxu0 0.0
        %1008 = vmatprep.subr.mxu0 0.0
        %1009 = vmatpush1.msra.mxu0 0.0
        %1010 = vmatprep.subr.mxu0 0.0
        %1011 = vmatpush1.msra.mxu0 0.0
        %1012 = vmatprep.subr.mxu0 0.0
        %1013 = vmatpush1.msra.mxu0 0.0
        %1014 = vmatprep.subr.mxu0 0.0
        %1015 = vmatpush1.msra.mxu0 0.0
        %1016 = vmatprep.subr.mxu0 0.0
        %1017 = vmatpush1.msra.mxu0 0.0
        %1018 = vmatprep.subr.mxu0 0.0
        %1019 = vmatpush1.msra.mxu0 0.0
        %1020 = vmatprep.subr.mxu0 0.0
        %1021 = vmatpush1.msra.mxu0 0.0
        %1022 = vmatprep.subr.mxu0 0.0
        %1023 = vmatpush1.msra.mxu0 0.0
        %1024 = vmatprep.subr.mxu0 0.0
        %1025 = vmatpush1.msra.mxu0 0.0
        %1026 = vmatprep.subr.mxu0 0.0
        %1027 = vmatpush1.msra.mxu0 0.0
        %1028 = vmatprep.subr.mxu0 0.0
        %1029 = vmatpush1.msra.mxu0 0.0
        %1030 = vmatprep.subr.mxu0 0.0
        %1031 = vmatpush1.msra.mxu0 0.0
        %1032 = vmatprep.subr.mxu0 0.0
        %1033 = vmatpush1.msra.mxu0 0.0
        %1034 = vmatprep.subr.mxu0 0.0
        %1035 = vmatpush1.msra.mxu0 0.0
        %1036 = vmatprep.subr.mxu0 0.0
        %1037 = vmatpush1.msra.mxu0 0.0
        %1038 = vmatprep.subr.mxu0 0.0
        %1039 = vmatpush1.msra.mxu0 0.0
        %1040 = vmatprep.subr.mxu0 0.0
        %1041 = vmatpush1.msra.mxu0 0.0
        %1042 = vmatprep.subr.mxu0 0.0
        %1043 = vmatpush1.msra.mxu0 0.0
        %1044 = vmatprep.subr.mxu0 0.0
        %1045 = vmatpush1.msra.mxu0 0.0
        %1046 = vmatprep.subr.mxu0 0.0
        %1047 = vmatpush1.msra.mxu0 0.0
        %1048 = vmatprep.subr.mxu0 0.0
        %1049 = vmatpush1.msra.mxu0 0.0
        %1050 = vmatprep.subr.mxu0 0.0
        %1051 = vmatpush1.msra.mxu0 0.0
        %1052 = vmatprep.subr.mxu0 0.0
        %1053 = vmatpush1.msra.mxu0 0.0
        %1054 = vmatprep.subr.mxu0 0.0
        %1055 = vmatpush1.msra.mxu0 0.0
        %1056 = vmatprep.subr.mxu0 0.0
        %1057 = vmatpush1.msra.mxu0 0.0
        %1058 = vmatprep.subr.mxu0 0.0
        %1059 = vmatpush1.msra.mxu0 0.0
        %1060 = vmatprep.subr.mxu0 0.0
        %1061 = vmatpush1.msra.mxu0 0.0
        %1062 = vmatprep.subr.mxu0 0.0
        %1063 = vmatpush1.msra.mxu0 0.0
        %1064 = vmatprep.subr.mxu0 0.0
        %1065 = vmatpush1.msra.mxu0 0.0
        %1066 = vmatprep.mubr.f32.mxu0 0.0
        %1067 = vmatmul.mubr.f32.gmra.mrb[0].mxu0 %v979
        %v1068 = vpop.f32.mrb[0].mxu0
        %v1069 = vadd.f32 %v975, %v1068
        %v1070 = vpop.f32.mrb[0].mxu0
        %1071 = vmatprep.mubr.f32.mxu0 0.0
        %1072 = vmatmul.mubr.f32.gmra.mrb[0].mxu0 %v982
        %v1073 = vpop.f32.mrb[0].mxu0
        %v1074 = vadd.f32 %v975, %v1073
        %v1075 = vpop.f32.mrb[0].mxu0
        %1076 = vmatprep.mubr.f32.mxu0 0.0
        %1077 = vmatmul.mubr.f32.gmra.mrb[0].mxu0 %v985
        %v1078 = vpop.f32.mrb[0].mxu0
        %v1079 = vadd.f32 %v975, %v1078
        %v1080 = vpop.f32.mrb[0].mxu0
        %1081 = vmatprep.mubr.f32.mxu0 0.0
        %1082 = vmatmul.mubr.f32.gmra.mrb[0].mxu0 %v988
        %v1083 = vpop.f32.mrb[0].mxu0
        %v1084 = vadd.f32 %v975, %v1083
        %v1085 = vpop.f32.mrb[0].mxu0
        %1086 = vmatprep.mubr.f32.mxu0 0.0
        %1087 = vmatmul.mubr.f32.gmra.mrb[0].mxu0 %v991
        %v1088 = vpop.f32.mrb[0].mxu0
        %v1089 = vadd.f32 %v975, %v1088
        %v1090 = vpop.f32.mrb[0].mxu0
        %1091 = vmatprep.mubr.f32.mxu0 0.0
        %1092 = vmatmul.mubr.f32.gmra.mrb[0].mxu0 %v994
        %v1093 = vpop.f32.mrb[0].mxu0
        %v1094 = vadd.f32 %v975, %v1093
        %v1095 = vpop.f32.mrb[0].mxu0
        %1096 = vmatprep.mubr.f32.mxu0 0.0
        %1097 = vmatmul.mubr.f32.gmra.mrb[0].mxu0 %v997
        %v1098 = vpop.f32.mrb[0].mxu0
        %v1099 = vadd.f32 %v975, %v1098
        %v1100 = vpop.f32.mrb[0].mxu0
        %1101 = vmatprep.mubr.f32.mxu0 0.0
        %1102 = vmatmul.mubr.f32.gmra.mrb[0].mxu0 %v1000
        %v1103 = vpop.f32.mrb[0].mxu0
        %v1104 = vadd.f32 %v975, %v1103
        %v1105 = vpop.f32.mrb[0].mxu0
        %1106 = vdwg.mxu0
        %v1107 = vmax.f32 %v1069, 0.0
        %v1108 = vmax.f32 %v1074, 0.0
        %v1109 = vmax.f32 %v1079, 0.0
        %v1110 = vmax.f32 %v1084, 0.0
        %v1111 = vmax.f32 %v1089, 0.0
        %v1112 = vmax.f32 %v1094, 0.0
        %v1113 = vmax.f32 %v1099, 0.0
        %v1114 = vmax.f32 %v1104, 0.0
        %v1115 = vsub.f32 0.0, %v1107
        %v1116 = vsub.f32 0.0, %v1108
        %v1117 = vsub.f32 0.0, %v1109
        %v1118 = vsub.f32 0.0, %v1110
        %v1119 = vsub.f32 0.0, %v1111
        %v1120 = vsub.f32 0.0, %v1112
        %v1121 = vsub.f32 0.0, %v1113
        %v1122 = vsub.f32 0.0, %v1114
        %v1123 = vmul.f32 %v1115, 1.442695
        %v1124 = vpow.pop %v1123
        %v1125 = vmul.f32 %v1116, 1.442695
        %v1126 = vpow.pop %v1125
        %v1127 = vmul.f32 %v1117, 1.442695
        %v1128 = vpow.pop %v1127
        %v1129 = vmul.f32 %v1118, 1.442695
        %v1130 = vpow.pop %v1129
        %v1131 = vmul.f32 %v1119, 1.442695
        %v1132 = vpow.pop %v1131
        %v1133 = vmul.f32 %v1120, 1.442695
        %v1134 = vpow.pop %v1133
        %v1135 = vmul.f32 %v1121, 1.442695
        %v1136 = vpow.pop %v1135
        %v1137 = vmul.f32 %v1122, 1.442695
        %v1138 = vpow.pop %v1137
        %v1139 = vld [vmem:[%s780] sm:$0x1]
        %v1141 = vlaneseq
        %v1142 = vshrl.u32 %v1141, 7
        %v1143 = vsub.s32 0, %v1142
        %v1144 = vrot.slane %v1139, %v1143
        %v1146 = vmul.f32 %v952, %v1144
        %v1147 = vmul.f32 %v953, %v1144
        %v1148 = vmul.f32 %v954, %v1144
        %v1149 = vmul.f32 %v955, %v1144
        %v1150 = vmul.f32 %v956, %v1144
        %v1151 = vmul.f32 %v957, %v1144
        %v1152 = vmul.f32 %v958, %v1144
        %v1153 = vmul.f32 %v959, %v1144
        %v1154 = vld [vmem:[%s788] sm:$0x1]
        %v1156 = vlaneseq
        %v1157 = vshrl.u32 %v1156, 7
        %v1158 = vsub.s32 0, %v1157
        %v1159 = vrot.slane %v1154, %v1158
        %v1161 = vadd.f32 %v1146, %v1159
        %v1162 = vadd.f32 %v1147, %v1159
        %v1163 = vadd.f32 %v1148, %v1159
        %v1164 = vadd.f32 %v1149, %v1159
        %v1165 = vadd.f32 %v1150, %v1159
        %v1166 = vadd.f32 %v1151, %v1159
        %v1167 = vadd.f32 %v1152, %v1159
        %v1168 = vadd.f32 %v1153, %v1159
        %v1169 = vmax.f32 %v1161, 0.0
        %v1170 = vmax.f32 %v1162, 0.0
        %v1171 = vmax.f32 %v1163, 0.0
        %v1172 = vmax.f32 %v1164, 0.0
        %v1173 = vmax.f32 %v1165, 0.0
        %v1174 = vmax.f32 %v1166, 0.0
        %v1175 = vmax.f32 %v1167, 0.0
        %v1176 = vmax.f32 %v1168, 0.0
        %v1177 = vsub.f32 0.0, %v1169
        %v1178 = vsub.f32 0.0, %v1170
        %v1179 = vsub.f32 0.0, %v1171
        %v1180 = vsub.f32 0.0, %v1172
        %v1181 = vsub.f32 0.0, %v1173
        %v1182 = vsub.f32 0.0, %v1174
        %v1183 = vsub.f32 0.0, %v1175
        %v1184 = vsub.f32 0.0, %v1176
        %v1185 = vmul.f32 %v1177, 1.442695
        %v1186 = vpow.pop %v1185
        %v1187 = vmul.f32 %v1178, 1.442695
        %v1188 = vpow.pop %v1187
        %v1189 = vmul.f32 %v1179, 1.442695
        %v1190 = vpow.pop %v1189
        %v1191 = vmul.f32 %v1180, 1.442695
        %v1192 = vpow.pop %v1191
        %v1193 = vmul.f32 %v1181, 1.442695
        %v1194 = vpow.pop %v1193
        %v1195 = vmul.f32 %v1182, 1.442695
        %v1196 = vpow.pop %v1195
        %v1197 = vmul.f32 %v1183, 1.442695
        %v1198 = vpow.pop %v1197
        %v1199 = vmul.f32 %v1184, 1.442695
        %v1200 = vpow.pop %v1199
        %v1201 = vld [vmem:[%s823] sm:$0xff]
        %v1202 = vld [vmem:[%s823 + $0x8] sm:$0xff]
        %v1203 = vld [vmem:[%s823 + $0x10] sm:$0xff]
        %v1204 = vld [vmem:[%s823 + $0x18] sm:$0xff]
        %v1206 = vsel %vm977, %v960, 0
        %v1209 = vsel %vm977, %v961, 0
        %v1212 = vsel %vm977, %v962, 0
        %v1215 = vsel %vm977, %v963, 0
        %v1218 = vsel %vm977, %v964, 0
        %v1221 = vsel %vm977, %v965, 0
        %v1224 = vsel %vm977, %v966, 0
        %v1227 = vsel %vm977, %v967, 0
        %1229 = vmatprep.subr.mxu0 %v1202
        %1230 = vmatpush1.msra.mxu0 %v1201
        %1231 = vmatprep.subr.mxu0 %v1204
        %1232 = vmatpush1.msra.mxu0 %v1203
        %1233 = vmatprep.subr.mxu0 0.0
        %1234 = vmatpush1.msra.mxu0 0.0
        %1235 = vmatprep.subr.mxu0 0.0
        %1236 = vmatpush1.msra.mxu0 0.0
        %1237 = vmatprep.subr.mxu0 0.0
        %1238 = vmatpush1.msra.mxu0 0.0
        %1239 = vmatprep.subr.mxu0 0.0
        %1240 = vmatpush1.msra.mxu0 0.0
        %1241 = vmatprep.subr.mxu0 0.0
        %1242 = vmatpush1.msra.mxu0 0.0
        %1243 = vmatprep.subr.mxu0 0.0
        %1244 = vmatpush1.msra.mxu0 0.0
        %1245 = vmatprep.subr.mxu0 0.0
        %1246 = vmatpush1.msra.mxu0 0.0
        %1247 = vmatprep.subr.mxu0 0.0
        %1248 = vmatpush1.msra.mxu0 0.0
        %1249 = vmatprep.subr.mxu0 0.0
        %1250 = vmatpush1.msra.mxu0 0.0
        %1251 = vmatprep.subr.mxu0 0.0
        %1252 = vmatpush1.msra.mxu0 0.0
        %1253 = vmatprep.subr.mxu0 0.0
        %1254 = vmatpush1.msra.mxu0 0.0
        %1255 = vmatprep.subr.mxu0 0.0
        %1256 = vmatpush1.msra.mxu0 0.0
        %1257 = vmatprep.subr.mxu0 0.0
        %1258 = vmatpush1.msra.mxu0 0.0
        %1259 = vmatprep.subr.mxu0 0.0
        %1260 = vmatpush1.msra.mxu0 0.0
        %1261 = vmatprep.subr.mxu0 0.0
        %1262 = vmatpush1.msra.mxu0 0.0
        %1263 = vmatprep.subr.mxu0 0.0
        %1264 = vmatpush1.msra.mxu0 0.0
        %1265 = vmatprep.subr.mxu0 0.0
        %1266 = vmatpush1.msra.mxu0 0.0
        %1267 = vmatprep.subr.mxu0 0.0
        %1268 = vmatpush1.msra.mxu0 0.0
        %1269 = vmatprep.subr.mxu0 0.0
        %1270 = vmatpush1.msra.mxu0 0.0
        %1271 = vmatprep.subr.mxu0 0.0
        %1272 = vmatpush1.msra.mxu0 0.0
        %1273 = vmatprep.subr.mxu0 0.0
        %1274 = vmatpush1.msra.mxu0 0.0
        %1275 = vmatprep.subr.mxu0 0.0
        %1276 = vmatpush1.msra.mxu0 0.0
        %1277 = vmatprep.subr.mxu0 0.0
        %1278 = vmatpush1.msra.mxu0 0.0
        %1279 = vmatprep.subr.mxu0 0.0
        %1280 = vmatpush1.msra.mxu0 0.0
        %1281 = vmatprep.subr.mxu0 0.0
        %1282 = vmatpush1.msra.mxu0 0.0
        %1283 = vmatprep.subr.mxu0 0.0
        %1284 = vmatpush1.msra.mxu0 0.0
        %1285 = vmatprep.subr.mxu0 0.0
        %1286 = vmatpush1.msra.mxu0 0.0
        %1287 = vmatprep.subr.mxu0 0.0
        %1288 = vmatpush1.msra.mxu0 0.0
        %1289 = vmatprep.subr.mxu0 0.0
        %1290 = vmatpush1.msra.mxu0 0.0
        %1291 = vmatprep.subr.mxu0 0.0
        %1292 = vmatpush1.msra.mxu0 0.0
        %1293 = vmatprep.mubr.f32.mxu0 0.0
        %1294 = vmatmul.mubr.f32.gmra.mrb[0].mxu0 %v1206
        %v1295 = vpop.f32.mrb[0].mxu0
        %v1296 = vadd.f32 0.0, %v1295
        %v1297 = vpop.f32.mrb[0].mxu0
        %v1298 = vadd.f32 0.0, %v1297
        %1299 = vmatprep.mubr.f32.mxu0 0.0
        %1300 = vmatmul.mubr.f32.gmra.mrb[0].mxu0 %v1209
        %v1301 = vpop.f32.mrb[0].mxu0
        %v1302 = vadd.f32 0.0, %v1301
        %v1303 = vpop.f32.mrb[0].mxu0
        %v1304 = vadd.f32 0.0, %v1303
        %1305 = vmatprep.mubr.f32.mxu0 0.0
        %1306 = vmatmul.mubr.f32.gmra.mrb[0].mxu0 %v1212
        %v1307 = vpop.f32.mrb[0].mxu0
        %v1308 = vadd.f32 0.0, %v1307
        %v1309 = vpop.f32.mrb[0].mxu0
        %v1310 = vadd.f32 0.0, %v1309
        %1311 = vmatprep.mubr.f32.mxu0 0.0
        %1312 = vmatmul.mubr.f32.gmra.mrb[0].mxu0 %v1215
        %v1313 = vpop.f32.mrb[0].mxu0
        %v1314 = vadd.f32 0.0, %v1313
        %v1315 = vpop.f32.mrb[0].mxu0
        %v1316 = vadd.f32 0.0, %v1315
        %1317 = vmatprep.mubr.f32.mxu0 0.0
        %1318 = vmatmul.mubr.f32.gmra.mrb[0].mxu0 %v1218
        %v1319 = vpop.f32.mrb[0].mxu0
        %v1320 = vadd.f32 0.0, %v1319
        %v1321 = vpop.f32.mrb[0].mxu0
        %v1322 = vadd.f32 0.0, %v1321
        %1323 = vmatprep.mubr.f32.mxu0 0.0
        %1324 = vmatmul.mubr.f32.gmra.mrb[0].mxu0 %v1221
        %v1325 = vpop.f32.mrb[0].mxu0
        %v1326 = vadd.f32 0.0, %v1325
        %v1327 = vpop.f32.mrb[0].mxu0
        %v1328 = vadd.f32 0.0, %v1327
        %1329 = vmatprep.mubr.f32.mxu0 0.0
        %1330 = vmatmul.mubr.f32.gmra.mrb[0].mxu0 %v1224
        %v1331 = vpop.f32.mrb[0].mxu0
        %v1332 = vadd.f32 0.0, %v1331
        %v1333 = vpop.f32.mrb[0].mxu0
        %v1334 = vadd.f32 0.0, %v1333
        %1335 = vmatprep.mubr.f32.mxu0 0.0
        %1336 = vmatmul.mubr.f32.gmra.mrb[0].mxu0 %v1227
        %v1337 = vpop.f32.mrb[0].mxu0
        %v1338 = vadd.f32 0.0, %v1337
        %v1339 = vpop.f32.mrb[0].mxu0
        %v1340 = vadd.f32 0.0, %v1339
        %1341 = vdwg.mxu0
        %v1342 = vld [vmem:[%s814] sm:$0xff]
        %v1343 = vld [vmem:[%s814 + $0x8] sm:$0xff]
        %v1345 = vsel %vm977, %v1186, 0
        %v1348 = vsel %vm977, %v1188, 0
        %v1351 = vsel %vm977, %v1190, 0
        %v1354 = vsel %vm977, %v1192, 0
        %v1357 = vsel %vm977, %v1194, 0
        %v1360 = vsel %vm977, %v1196, 0
        %v1363 = vsel %vm977, %v1198, 0
        %v1366 = vsel %vm977, %v1200, 0
        %1368 = vmatprep.subr.mxu0 0.0
        %1369 = vmatpush1.msra.mxu0 %v1342
        %1370 = vmatprep.subr.mxu0 0.0
        %1371 = vmatpush1.msra.mxu0 %v1343
        %1372 = vmatprep.subr.mxu0 0.0
        %1373 = vmatpush1.msra.mxu0 0.0
        %1374 = vmatprep.subr.mxu0 0.0
        %1375 = vmatpush1.msra.mxu0 0.0
        %1376 = vmatprep.subr.mxu0 0.0
        %1377 = vmatpush1.msra.mxu0 0.0
        %1378 = vmatprep.subr.mxu0 0.0
        %1379 = vmatpush1.msra.mxu0 0.0
        %1380 = vmatprep.subr.mxu0 0.0
        %1381 = vmatpush1.msra.mxu0 0.0
        %1382 = vmatprep.subr.mxu0 0.0
        %1383 = vmatpush1.msra.mxu0 0.0
        %1384 = vmatprep.subr.mxu0 0.0
        %1385 = vmatpush1.msra.mxu0 0.0
        %1386 = vmatprep.subr.mxu0 0.0
        %1387 = vmatpush1.msra.mxu0 0.0
        %1388 = vmatprep.subr.mxu0 0.0
        %1389 = vmatpush1.msra.mxu0 0.0
        %1390 = vmatprep.subr.mxu0 0.0
        %1391 = vmatpush1.msra.mxu0 0.0
        %1392 = vmatprep.subr.mxu0 0.0
        %1393 = vmatpush1.msra.mxu0 0.0
        %1394 = vmatprep.subr.mxu0 0.0
        %1395 = vmatpush1.msra.mxu0 0.0
        %1396 = vmatprep.subr.mxu0 0.0
        %1397 = vmatpush1.msra.mxu0 0.0
        %1398 = vmatprep.subr.mxu0 0.0
        %1399 = vmatpush1.msra.mxu0 0.0
        %1400 = vmatprep.subr.mxu0 0.0
        %1401 = vmatpush1.msra.mxu0 0.0
        %1402 = vmatprep.subr.mxu0 0.0
        %1403 = vmatpush1.msra.mxu0 0.0
        %1404 = vmatprep.subr.mxu0 0.0
        %1405 = vmatpush1.msra.mxu0 0.0
        %1406 = vmatprep.subr.mxu0 0.0
        %1407 = vmatpush1.msra.mxu0 0.0
        %1408 = vmatprep.subr.mxu0 0.0
        %1409 = vmatpush1.msra.mxu0 0.0
        %1410 = vmatprep.subr.mxu0 0.0
        %1411 = vmatpush1.msra.mxu0 0.0
        %1412 = vmatprep.subr.mxu0 0.0
        %1413 = vmatpush1.msra.mxu0 0.0
        %1414 = vmatprep.subr.mxu0 0.0
        %1415 = vmatpush1.msra.mxu0 0.0
        %1416 = vmatprep.subr.mxu0 0.0
        %1417 = vmatpush1.msra.mxu0 0.0
        %1418 = vmatprep.subr.mxu0 0.0
        %1419 = vmatpush1.msra.mxu0 0.0
        %1420 = vmatprep.subr.mxu0 0.0
        %1421 = vmatpush1.msra.mxu0 0.0
        %1422 = vmatprep.subr.mxu0 0.0
        %1423 = vmatpush1.msra.mxu0 0.0
        %1424 = vmatprep.subr.mxu0 0.0
        %1425 = vmatpush1.msra.mxu0 0.0
        %1426 = vmatprep.subr.mxu0 0.0
        %1427 = vmatpush1.msra.mxu0 0.0
        %1428 = vmatprep.subr.mxu0 0.0
        %1429 = vmatpush1.msra.mxu0 0.0
        %1430 = vmatprep.subr.mxu0 0.0
        %1431 = vmatpush1.msra.mxu0 0.0
        %1432 = vmatprep.mubr.f32.mxu0 0.0
        %1433 = vmatmul.mubr.f32.gmra.mrb[0].mxu0 %v1345
        %v1434 = vpop.f32.mrb[0].mxu0
        %v1435 = vadd.f32 %v1298, %v1434
        %v1436 = vpop.f32.mrb[0].mxu0
        %1437 = vmatprep.mubr.f32.mxu0 0.0
        %1438 = vmatmul.mubr.f32.gmra.mrb[0].mxu0 %v1348
        %v1439 = vpop.f32.mrb[0].mxu0
        %v1440 = vadd.f32 %v1304, %v1439
        %v1441 = vpop.f32.mrb[0].mxu0
        %1442 = vmatprep.mubr.f32.mxu0 0.0
        %1443 = vmatmul.mubr.f32.gmra.mrb[0].mxu0 %v1351
        %v1444 = vpop.f32.mrb[0].mxu0
        %v1445 = vadd.f32 %v1310, %v1444
        %v1446 = vpop.f32.mrb[0].mxu0
        %1447 = vmatprep.mubr.f32.mxu0 0.0
        %1448 = vmatmul.mubr.f32.gmra.mrb[0].mxu0 %v1354
        %v1449 = vpop.f32.mrb[0].mxu0
        %v1450 = vadd.f32 %v1316, %v1449
        %v1451 = vpop.f32.mrb[0].mxu0
        %1452 = vmatprep.mubr.f32.mxu0 0.0
        %1453 = vmatmul.mubr.f32.gmra.mrb[0].mxu0 %v1357
        %v1454 = vpop.f32.mrb[0].mxu0
        %v1455 = vadd.f32 %v1322, %v1454
        %v1456 = vpop.f32.mrb[0].mxu0
        %1457 = vmatprep.mubr.f32.mxu0 0.0
        %1458 = vmatmul.mubr.f32.gmra.mrb[0].mxu0 %v1360
        %v1459 = vpop.f32.mrb[0].mxu0
        %v1460 = vadd.f32 %v1328, %v1459
        %v1461 = vpop.f32.mrb[0].mxu0
        %1462 = vmatprep.mubr.f32.mxu0 0.0
        %1463 = vmatmul.mubr.f32.gmra.mrb[0].mxu0 %v1363
        %v1464 = vpop.f32.mrb[0].mxu0
        %v1465 = vadd.f32 %v1334, %v1464
        %v1466 = vpop.f32.mrb[0].mxu0
        %1467 = vmatprep.mubr.f32.mxu0 0.0
        %1468 = vmatmul.mubr.f32.gmra.mrb[0].mxu0 %v1366
        %v1469 = vpop.f32.mrb[0].mxu0
        %v1470 = vadd.f32 %v1340, %v1469
        %v1471 = vpop.f32.mrb[0].mxu0
        %1472 = vdwg.mxu0
        %v1473 = vld [vmem:[%s948] sm:$0x1]
        %v1475 = vlaneseq
        %v1476 = vshrl.u32 %v1475, 7
        %v1477 = vsub.s32 0, %v1476
        %v1478 = vrot.slane %v1473, %v1477
        %v1480 = vadd.f32 %v1435, %v1478
        %v1481 = vadd.f32 %v1440, %v1478
        %v1482 = vadd.f32 %v1445, %v1478
        %v1483 = vadd.f32 %v1450, %v1478
        %v1484 = vadd.f32 %v1455, %v1478
        %v1485 = vadd.f32 %v1460, %v1478
        %v1486 = vadd.f32 %v1465, %v1478
        %v1487 = vadd.f32 %v1470, %v1478
        %v1488 = vxor.u32 %v1480, 2147483648
        %v1489 = vxor.u32 %v1481, 2147483648
        %v1490 = vxor.u32 %v1482, 2147483648
        %v1491 = vxor.u32 %v1483, 2147483648
        %v1492 = vxor.u32 %v1484, 2147483648
        %v1493 = vxor.u32 %v1485, 2147483648
        %v1494 = vxor.u32 %v1486, 2147483648
        %v1495 = vxor.u32 %v1487, 2147483648
        %v1496 = vmul.f32 %v1488, 1.442695
        %v1497 = vpow.pop %v1496
        %v1498 = vmul.f32 %v1489, 1.442695
        %v1499 = vpow.pop %v1498
        %v1500 = vmul.f32 %v1490, 1.442695
        %v1501 = vpow.pop %v1500
        %v1502 = vmul.f32 %v1491, 1.442695
        %v1503 = vpow.pop %v1502
        %v1504 = vmul.f32 %v1492, 1.442695
        %v1505 = vpow.pop %v1504
        %v1506 = vmul.f32 %v1493, 1.442695
        %v1507 = vpow.pop %v1506
        %v1508 = vmul.f32 %v1494, 1.442695
        %v1509 = vpow.pop %v1508
        %v1510 = vmul.f32 %v1495, 1.442695
        %v1511 = vpow.pop %v1510
        %v1512 = vadd.f32 %v1497, 1.0
        %v1513 = vadd.f32 %v1499, 1.0
        %v1514 = vadd.f32 %v1501, 1.0
        %v1515 = vadd.f32 %v1503, 1.0
        %v1516 = vadd.f32 %v1505, 1.0
        %v1517 = vadd.f32 %v1507, 1.0
        %v1518 = vadd.f32 %v1509, 1.0
        %v1519 = vadd.f32 %v1511, 1.0
        %v1520 = vrcp.pop %v1512
        %v1521 = vmul.f32 1.0, %v1520
        %v1522 = vrcp.pop %v1513
        %v1523 = vmul.f32 1.0, %v1522
        %v1524 = vrcp.pop %v1514
        %v1525 = vmul.f32 1.0, %v1524
        %v1526 = vrcp.pop %v1515
        %v1527 = vmul.f32 1.0, %v1526
        %v1528 = vrcp.pop %v1516
        %v1529 = vmul.f32 1.0, %v1528
        %v1530 = vrcp.pop %v1517
        %v1531 = vmul.f32 1.0, %v1530
        %v1532 = vrcp.pop %v1518
        %v1533 = vmul.f32 1.0, %v1532
        %v1534 = vrcp.pop %v1519
        %v1535 = vmul.f32 1.0, %v1534
        %vm1536 = vcmask 261120
        %1537 = vst.msk [vmem:[#allocation2] sm:$0xff] %vm1536, %v1124
        %1538 = vst.msk [vmem:[#allocation2 + $0x8] sm:$0xff] %vm1536, %v1126
        %1539 = vst.msk [vmem:[#allocation2 + $0x10] sm:$0xff] %vm1536, %v1128
        %1540 = vst.msk [vmem:[#allocation2 + $0x18] sm:$0xff] %vm1536, %v1130
        %1541 = vst.msk [vmem:[#allocation2 + $0x20] sm:$0xff] %vm1536, %v1132
        %1542 = vst.msk [vmem:[#allocation2 + $0x28] sm:$0xff] %vm1536, %v1134
        %1543 = vst.msk [vmem:[#allocation2 + $0x30] sm:$0xff] %vm1536, %v1136
        %1544 = vst.msk [vmem:[#allocation2 + $0x38] sm:$0xff] %vm1536, %v1138
        %1545 = vst.msk [vmem:[#allocation3] sm:$0xff] %vm977, %v1521
        %1546 = vst.msk [vmem:[#allocation3 + $0x8] sm:$0xff] %vm977, %v1523
        %1547 = vst.msk [vmem:[#allocation3 + $0x10] sm:$0xff] %vm977, %v1525
        %1548 = vst.msk [vmem:[#allocation3 + $0x18] sm:$0xff] %vm977, %v1527
        %1549 = vst.msk [vmem:[#allocation3 + $0x20] sm:$0xff] %vm977, %v1529
        %1550 = vst.msk [vmem:[#allocation3 + $0x28] sm:$0xff] %vm977, %v1531
        %1551 = vst.msk [vmem:[#allocation3 + $0x30] sm:$0xff] %vm977, %v1533
        %1552 = vst.msk [vmem:[#allocation3 + $0x38] sm:$0xff] %vm977, %v1535
        %v1553 = vld [vmem:[%s951] sm:$0x1]
        %v1555 = vlaneseq
        %v1556 = vshrl.u32 %v1555, 7
        %v1557 = vsub.s32 0, %v1556
        %v1558 = vrot.slane %v1553, %v1557
        %v1560 = vadd.f32 %v1296, %v1558
        %v1561 = vadd.f32 %v1302, %v1558
        %v1562 = vadd.f32 %v1308, %v1558
        %v1563 = vadd.f32 %v1314, %v1558
        %v1564 = vadd.f32 %v1320, %v1558
        %v1565 = vadd.f32 %v1326, %v1558
        %v1566 = vadd.f32 %v1332, %v1558
        %v1567 = vadd.f32 %v1338, %v1558
        %1568 = vst [vmem:[#allocation4] sm:$0xff] %v1560
        %1569 = vst [vmem:[#allocation4 + $0x8] sm:$0xff] %v1561
        %1570 = vst [vmem:[#allocation4 + $0x10] sm:$0xff] %v1562
        %1571 = vst [vmem:[#allocation4 + $0x18] sm:$0xff] %v1563
        %1572 = vst [vmem:[#allocation4 + $0x20] sm:$0xff] %v1564
        %1573 = vst [vmem:[#allocation4 + $0x28] sm:$0xff] %v1565
        %1574 = vst [vmem:[#allocation4 + $0x30] sm:$0xff] %v1566
        %1575 = vst [vmem:[#allocation4 + $0x38] sm:$0xff] %v1567
        %v1576 = vld [vmem:[%s797] sm:$0xff]
        %v1577 = vld [vmem:[%s797 + $0x8] sm:$0xff]
        %v1578 = vld [vmem:[%s797 + $0x10] sm:$0xff]
        %v1579 = vld [vmem:[%s797 + $0x18] sm:$0xff]
        %v1580 = vld [vmem:[%s797 + $0x20] sm:$0xff]
        %v1581 = vld [vmem:[%s797 + $0x28] sm:$0xff]
        %v1582 = vld [vmem:[%s797 + $0x30] sm:$0xff]
        %v1583 = vld [vmem:[%s797 + $0x38] sm:$0xff]
        %v1584 = vld [vmem:[%s942] sm:$0xff]
        %v1585 = vld [vmem:[%s942 + $0x8] sm:$0xff]
        %v1586 = vld [vmem:[%s832] sm:$0xff]
        %v1587 = vld [vmem:[%s832 + $0x8] sm:$0xff]
        %v1588 = vld [vmem:[%s805] sm:$0x1]
        %v1590 = vlaneseq
        %v1591 = vshrl.u32 %v1590, 7
        %v1592 = vsub.s32 0, %v1591
        %v1593 = vrot.slane %v1588, %v1592
        %v1595 = vld [vmem:[%s945] sm:$0x1]
        %v1597 = vlaneseq
        %v1598 = vshrl.u32 %v1597, 7
        %v1599 = vsub.s32 0, %v1598
        %v1600 = vrot.slane %v1595, %v1599
        %v1602 = vlaneseq
        %v1603 = vand.u32 %v1602, 127
        %vm1604 = vcmp.ge.s32.totalorder %v1603, 64
        %vm1605 = vcmp.lt.s32.totalorder %v1603, 96
        %vm1606 = vmand %vm1604, %vm1605
        %p1607 = scmp.eq.s32.totalorder %s36, 0
        %s1608 = scalar_select %p1607, 0, 7
        %s1609 = smul.u32 %s1608, 8
        %s1610 = scalar_lea.vmem [#allocation5], %s1609
        %v1611 = vld [vmem:[%s1610] sm:$0xff]
        %s1612 = scalar_lea.vmem [#allocation8], %s1609
        %v1613 = vld [vmem:[%s1612] sm:$0xff]
        %s1614 = scalar_lea.vmem [#allocation2], %s1609
        %v1615 = vld [vmem:[%s1614] sm:$0xff]
        %v1616 = vmul.f32 %v1615, 0.0
        %v1618 = vsel %vm1536, %v1616, 0
        %1620 = vmatprep.subr.mxu0 %v1577
        %1621 = vmatpush1.msra.mxu0 %v1576
        %1622 = vmatprep.subr.mxu0 %v1579
        %1623 = vmatpush1.msra.mxu0 %v1578
        %1624 = vmatprep.subr.mxu0 %v1581
        %1625 = vmatpush1.msra.mxu0 %v1580
        %1626 = vmatprep.subr.mxu0 %v1583
        %1627 = vmatpush1.msra.mxu0 %v1582
        %1628 = vmatprep.subr.mxu0 0.0
        %1629 = vmatpush1.msra.mxu0 0.0
        %1630 = vmatprep.subr.mxu0 0.0
        %1631 = vmatpush1.msra.mxu0 0.0
        %1632 = vmatprep.subr.mxu0 0.0
        %1633 = vmatpush1.msra.mxu0 0.0
        %1634 = vmatprep.subr.mxu0 0.0
        %1635 = vmatpush1.msra.mxu0 0.0
        %1636 = vmatprep.subr.mxu0 0.0
        %1637 = vmatpush1.msra.mxu0 0.0
        %1638 = vmatprep.subr.mxu0 0.0
        %1639 = vmatpush1.msra.mxu0 0.0
        %1640 = vmatprep.subr.mxu0 0.0
        %1641 = vmatpush1.msra.mxu0 0.0
        %1642 = vmatprep.subr.mxu0 0.0
        %1643 = vmatpush1.msra.mxu0 0.0
        %1644 = vmatprep.subr.mxu0 0.0
        %1645 = vmatpush1.msra.mxu0 0.0
        %1646 = vmatprep.subr.mxu0 0.0
        %1647 = vmatpush1.msra.mxu0 0.0
        %1648 = vmatprep.subr.mxu0 0.0
        %1649 = vmatpush1.msra.mxu0 0.0
        %1650 = vmatprep.subr.mxu0 0.0
        %1651 = vmatpush1.msra.mxu0 0.0
        %1652 = vmatprep.subr.mxu0 0.0
        %1653 = vmatpush1.msra.mxu0 0.0
        %1654 = vmatprep.subr.mxu0 0.0
        %1655 = vmatpush1.msra.mxu0 0.0
        %1656 = vmatprep.subr.mxu0 0.0
        %1657 = vmatpush1.msra.mxu0 0.0
        %1658 = vmatprep.subr.mxu0 0.0
        %1659 = vmatpush1.msra.mxu0 0.0
        %1660 = vmatprep.subr.mxu0 0.0
        %1661 = vmatpush1.msra.mxu0 0.0
        %1662 = vmatprep.subr.mxu0 0.0
        %1663 = vmatpush1.msra.mxu0 0.0
        %1664 = vmatprep.subr.mxu0 0.0
        %1665 = vmatpush1.msra.mxu0 0.0
        %1666 = vmatprep.subr.mxu0 0.0
        %1667 = vmatpush1.msra.mxu0 0.0
        %1668 = vmatprep.subr.mxu0 0.0
        %1669 = vmatpush1.msra.mxu0 0.0
        %1670 = vmatprep.subr.mxu0 0.0
        %1671 = vmatpush1.msra.mxu0 0.0
        %1672 = vmatprep.subr.mxu0 0.0
        %1673 = vmatpush1.msra.mxu0 0.0
        %1674 = vmatprep.subr.mxu0 0.0
        %1675 = vmatpush1.msra.mxu0 0.0
        %1676 = vmatprep.subr.mxu0 0.0
        %1677 = vmatpush1.msra.mxu0 0.0
        %1678 = vmatprep.subr.mxu0 0.0
        %1679 = vmatpush1.msra.mxu0 0.0
        %1680 = vmatprep.subr.mxu0 0.0
        %1681 = vmatpush1.msra.mxu0 0.0
        %1682 = vmatprep.subr.mxu0 0.0
        %1683 = vmatpush1.msra.mxu0 0.0
        %1684 = vmatprep.mubr.f32.mxu0 0.0
        %1685 = vmatmul.mubr.f32.gmra.mrb[0].mxu0 %v1618
        %v1686 = vpop.f32.mrb[0].mxu0
        %v1687 = vadd.f32 0.0, %v1686
        %v1688 = vpop.f32.mrb[0].mxu0
        %v1689 = vadd.f32 0.0, %v1688
        %1690 = vdwg.mxu0
        %v1691 = vadd.f32 %v1689, %v1593
        %vm1692 = vcmp.gt.f32.partialorder %v1613, 0.0
        %v1693 = vsel %vm1692, %v1611, %v1691
        %v1695 = vsel %vm977, %v1693, 0
        %1697 = vmatprep.subr.mxu0 0.0
        %1698 = vmatpush1.msra.mxu0 %v1584
        %1699 = vmatprep.subr.mxu0 0.0
        %1700 = vmatpush1.msra.mxu0 %v1585
        %1701 = vmatprep.subr.mxu0 0.0
        %1702 = vmatpush1.msra.mxu0 0.0
        %1703 = vmatprep.subr.mxu0 0.0
        %1704 = vmatpush1.msra.mxu0 0.0
        %1705 = vmatprep.subr.mxu0 0.0
        %1706 = vmatpush1.msra.mxu0 0.0
        %1707 = vmatprep.subr.mxu0 0.0
        %1708 = vmatpush1.msra.mxu0 0.0
        %1709 = vmatprep.subr.mxu0 0.0
        %1710 = vmatpush1.msra.mxu0 0.0
        %1711 = vmatprep.subr.mxu0 0.0
        %1712 = vmatpush1.msra.mxu0 0.0
        %1713 = vmatprep.subr.mxu0 0.0
        %1714 = vmatpush1.msra.mxu0 0.0
        %1715 = vmatprep.subr.mxu0 0.0
        %1716 = vmatpush1.msra.mxu0 0.0
        %1717 = vmatprep.subr.mxu0 0.0
        %1718 = vmatpush1.msra.mxu0 0.0
        %1719 = vmatprep.subr.mxu0 0.0
        %1720 = vmatpush1.msra.mxu0 0.0
        %1721 = vmatprep.subr.mxu0 0.0
        %1722 = vmatpush1.msra.mxu0 0.0
        %1723 = vmatprep.subr.mxu0 0.0
        %1724 = vmatpush1.msra.mxu0 0.0
        %1725 = vmatprep.subr.mxu0 0.0
        %1726 = vmatpush1.msra.mxu0 0.0
        %1727 = vmatprep.subr.mxu0 0.0
        %1728 = vmatpush1.msra.mxu0 0.0
        %1729 = vmatprep.subr.mxu0 0.0
        %1730 = vmatpush1.msra.mxu0 0.0
        %1731 = vmatprep.subr.mxu0 0.0
        %1732 = vmatpush1.msra.mxu0 0.0
        %1733 = vmatprep.subr.mxu0 0.0
        %1734 = vmatpush1.msra.mxu0 0.0
        %1735 = vmatprep.subr.mxu0 0.0
        %1736 = vmatpush1.msra.mxu0 0.0
        %1737 = vmatprep.subr.mxu0 0.0
        %1738 = vmatpush1.msra.mxu0 0.0
        %1739 = vmatprep.subr.mxu0 0.0
        %1740 = vmatpush1.msra.mxu0 0.0
        %1741 = vmatprep.subr.mxu0 0.0
        %1742 = vmatpush1.msra.mxu0 0.0
        %1743 = vmatprep.subr.mxu0 0.0
        %1744 = vmatpush1.msra.mxu0 0.0
        %1745 = vmatprep.subr.mxu0 0.0
        %1746 = vmatpush1.msra.mxu0 0.0
        %1747 = vmatprep.subr.mxu0 0.0
        %1748 = vmatpush1.msra.mxu0 0.0
        %1749 = vmatprep.subr.mxu0 0.0
        %1750 = vmatpush1.msra.mxu0 0.0
        %1751 = vmatprep.subr.mxu0 0.0
        %1752 = vmatpush1.msra.mxu0 0.0
        %1753 = vmatprep.subr.mxu0 0.0
        %1754 = vmatpush1.msra.mxu0 0.0
        %1755 = vmatprep.subr.mxu0 0.0
        %1756 = vmatpush1.msra.mxu0 0.0
        %1757 = vmatprep.subr.mxu0 0.0
        %1758 = vmatpush1.msra.mxu0 0.0
        %1759 = vmatprep.subr.mxu0 0.0
        %1760 = vmatpush1.msra.mxu0 0.0
        %1761 = vmatprep.mubr.f32.mxu0 0.0
        %1762 = vmatmul.mubr.f32.gmra.mrb[0].mxu0 %v1695
        %v1763 = vpop.f32.mrb[0].mxu0
        %v1764 = vadd.f32 %v1600, %v1763
        %v1765 = vpop.f32.mrb[0].mxu0
        %1766 = vdwg.mxu0
        %s1767 = scalar_lea.vmem [#allocation3], %s1609
        %v1768 = vld [vmem:[%s1767] sm:$0xff]
        %v1769 = vmul.f32 %v1768, %v1764
        %v1770 = vsub.f32 1.0, %v1768
        %v1771 = vmul.f32 %v1770, %v1691
        %v1772 = vadd.f32 %v1769, %v1771
        %v1773 = vsel %vm1692, %v1611, %v1772
        %s1774 = scalar_lea.vmem [#allocation4], %s1609
        %v1775 = vld [vmem:[%s1774] sm:$0xff]
        %v1777 = vsel %vm977, %v1773, 0
        %1779 = vmatprep.subr.mxu0 0.0
        %1780 = vmatpush1.msra.mxu0 %v1586
        %1781 = vmatprep.subr.mxu0 0.0
        %1782 = vmatpush1.msra.mxu0 %v1587
        %1783 = vmatprep.subr.mxu0 0.0
        %1784 = vmatpush1.msra.mxu0 0.0
        %1785 = vmatprep.subr.mxu0 0.0
        %1786 = vmatpush1.msra.mxu0 0.0
        %1787 = vmatprep.subr.mxu0 0.0
        %1788 = vmatpush1.msra.mxu0 0.0
        %1789 = vmatprep.subr.mxu0 0.0
        %1790 = vmatpush1.msra.mxu0 0.0
        %1791 = vmatprep.subr.mxu0 0.0
        %1792 = vmatpush1.msra.mxu0 0.0
        %1793 = vmatprep.subr.mxu0 0.0
        %1794 = vmatpush1.msra.mxu0 0.0
        %1795 = vmatprep.subr.mxu0 0.0
        %1796 = vmatpush1.msra.mxu0 0.0
        %1797 = vmatprep.subr.mxu0 0.0
        %1798 = vmatpush1.msra.mxu0 0.0
        %1799 = vmatprep.subr.mxu0 0.0
        %1800 = vmatpush1.msra.mxu0 0.0
        %1801 = vmatprep.subr.mxu0 0.0
        %1802 = vmatpush1.msra.mxu0 0.0
        %1803 = vmatprep.subr.mxu0 0.0
        %1804 = vmatpush1.msra.mxu0 0.0
        %1805 = vmatprep.subr.mxu0 0.0
        %1806 = vmatpush1.msra.mxu0 0.0
        %1807 = vmatprep.subr.mxu0 0.0
        %1808 = vmatpush1.msra.mxu0 0.0
        %1809 = vmatprep.subr.mxu0 0.0
        %1810 = vmatpush1.msra.mxu0 0.0
        %1811 = vmatprep.subr.mxu0 0.0
        %1812 = vmatpush1.msra.mxu0 0.0
        %1813 = vmatprep.subr.mxu0 0.0
        %1814 = vmatpush1.msra.mxu0 0.0
        %1815 = vmatprep.subr.mxu0 0.0
        %1816 = vmatpush1.msra.mxu0 0.0
        %1817 = vmatprep.subr.mxu0 0.0
        %1818 = vmatpush1.msra.mxu0 0.0
        %1819 = vmatprep.subr.mxu0 0.0
        %1820 = vmatpush1.msra.mxu0 0.0
        %1821 = vmatprep.subr.mxu0 0.0
        %1822 = vmatpush1.msra.mxu0 0.0
        %1823 = vmatprep.subr.mxu0 0.0
        %1824 = vmatpush1.msra.mxu0 0.0
        %1825 = vmatprep.subr.mxu0 0.0
        %1826 = vmatpush1.msra.mxu0 0.0
        %1827 = vmatprep.subr.mxu0 0.0
        %1828 = vmatpush1.msra.mxu0 0.0
        %1829 = vmatprep.subr.mxu0 0.0
        %1830 = vmatpush1.msra.mxu0 0.0
        %1831 = vmatprep.subr.mxu0 0.0
        %1832 = vmatpush1.msra.mxu0 0.0
        %1833 = vmatprep.subr.mxu0 0.0
        %1834 = vmatpush1.msra.mxu0 0.0
        %1835 = vmatprep.subr.mxu0 0.0
        %1836 = vmatpush1.msra.mxu0 0.0
        %1837 = vmatprep.subr.mxu0 0.0
        %1838 = vmatpush1.msra.mxu0 0.0
        %1839 = vmatprep.subr.mxu0 0.0
        %1840 = vmatpush1.msra.mxu0 0.0
        %1841 = vmatprep.subr.mxu0 0.0
        %1842 = vmatpush1.msra.mxu0 0.0
        %1843 = vmatprep.mubr.f32.mxu0 0.0
        %1844 = vmatmul.mubr.f32.gmra.mrb[0].mxu0 %v1777
        %v1845 = vpop.f32.mrb[0].mxu0
        %v1846 = vadd.f32 %v1775, %v1845
        %v1847 = vpop.f32.mrb[0].mxu0
        %1848 = vdwg.mxu0
        %v1849 = vadd.f32 %v1846, %v1687
        %v1850 = vtanh.pop %v1849
        %v1851 = vxor.u32 %v1849, 2147483648
        %v1852 = vmul.f32 %v1851, 1.442695
        %v1853 = vpow.pop %v1852
        %v1854 = vadd.f32 %v1853, 1.0
        %v1855 = vrcp.pop %v1854
        %v1856 = vmul.f32 1.0, %v1855
        %v1857 = vsel %vm1606, %v1850, %v1856
        %v1858 = vmul.f32 %v1857, 0.0
        %1860 = vrot.lane.b32.xlu0 %v1857, 64
        %v1861 = vpop.permute.xlu0 %1860
        %v1863 = vmul.f32 %v1857, %v1861
        %1865 = vrot.lane.b32.xlu0 %v1863, 32
        %v1866 = vpop.permute.xlu0 %1865
        %v1868 = vadd.f32 %v1858, %v1866
        %v1869 = vtanh.pop %v1868
        %1871 = vrot.lane.b32.xlu0 %v1869, 64
        %v1872 = vpop.permute.xlu0 %1871
        %v1874 = vmul.f32 %v1857, %v1872
        %1876 = vrot.lane.b32.xlu0 %v1691, 16
        %v1877 = vpop.permute.xlu0 %1876
        %1880 = vrot.lane.b32.xlu0 %v1764, 32
        %v1881 = vpop.permute.xlu0 %1880
        %1884 = vrot.lane.b32.xlu0 %v1772, 48
        %v1885 = vpop.permute.xlu0 %1884
        %v1887 = vsel %vm977, %v1773, %v1877
        %v1888 = vsel %vm1536, %v1887, %v1881
        %vm1889 = vcmask 392192
        %v1890 = vsel %vm1889, %v1888, %v1885
        %s1891 = scalar_lea.vmem %s934, %s1609 [#allocation19]
        %vm1892 = vcmask 523264
        %1893 = vst.msk [vmem:[%s1891] sm:$0xff] %vm1892, %v1890
        %s1894 = scalar_select %p1607, 1, 6
        %s1895 = smul.u32 %s1894, 8
        %s1896 = scalar_lea.vmem [#allocation5], %s1895
        %v1897 = vld [vmem:[%s1896] sm:$0xff]
        %s1898 = scalar_lea.vmem [#allocation8], %s1895
        %v1899 = vld [vmem:[%s1898] sm:$0xff]
        %s1900 = scalar_lea.vmem [#allocation2], %s1895
        %v1901 = vld [vmem:[%s1900] sm:$0xff]
        %1903 = vrot.lane.b32.xlu0 %v1901, 96
        %v1904 = vpop.permute.xlu0 %1903
        %v1906 = vmul.f32 %v1874, %v1904
        %1908 = vrot.lane.b32.xlu0 %v1906, 32
        %v1909 = vpop.permute.xlu0 %1908
        %v1910 = vsel %vm1536, %v1909, 0
        %1912 = vmatprep.subr.mxu0 %v1577
        %1913 = vmatpush1.msra.mxu0 %v1576
        %1914 = vmatprep.subr.mxu0 %v1579
        %1915 = vmatpush1.msra.mxu0 %v1578
        %1916 = vmatprep.subr.mxu0 %v1581
        %1917 = vmatpush1.msra.mxu0 %v1580
        %1918 = vmatprep.subr.mxu0 %v1583
        %1919 = vmatpush1.msra.mxu0 %v1582
        %1920 = vmatprep.subr.mxu0 0.0
        %1921 = vmatpush1.msra.mxu0 0.0
        %1922 = vmatprep.subr.mxu0 0.0
        %1923 = vmatpush1.msra.mxu0 0.0
        %1924 = vmatprep.subr.mxu0 0.0
        %1925 = vmatpush1.msra.mxu0 0.0
        %1926 = vmatprep.subr.mxu0 0.0
        %1927 = vmatpush1.msra.mxu0 0.0
        %1928 = vmatprep.subr.mxu0 0.0
        %1929 = vmatpush1.msra.mxu0 0.0
        %1930 = vmatprep.subr.mxu0 0.0
        %1931 = vmatpush1.msra.mxu0 0.0
        %1932 = vmatprep.subr.mxu0 0.0
        %1933 = vmatpush1.msra.mxu0 0.0
        %1934 = vmatprep.subr.mxu0 0.0
        %1935 = vmatpush1.msra.mxu0 0.0
        %1936 = vmatprep.subr.mxu0 0.0
        %1937 = vmatpush1.msra.mxu0 0.0
        %1938 = vmatprep.subr.mxu0 0.0
        %1939 = vmatpush1.msra.mxu0 0.0
        %1940 = vmatprep.subr.mxu0 0.0
        %1941 = vmatpush1.msra.mxu0 0.0
        %1942 = vmatprep.subr.mxu0 0.0
        %1943 = vmatpush1.msra.mxu0 0.0
        %1944 = vmatprep.subr.mxu0 0.0
        %1945 = vmatpush1.msra.mxu0 0.0
        %1946 = vmatprep.subr.mxu0 0.0
        %1947 = vmatpush1.msra.mxu0 0.0
        %1948 = vmatprep.subr.mxu0 0.0
        %1949 = vmatpush1.msra.mxu0 0.0
        %1950 = vmatprep.subr.mxu0 0.0
        %1951 = vmatpush1.msra.mxu0 0.0
        %1952 = vmatprep.subr.mxu0 0.0
        %1953 = vmatpush1.msra.mxu0 0.0
        %1954 = vmatprep.subr.mxu0 0.0
        %1955 = vmatpush1.msra.mxu0 0.0
        %1956 = vmatprep.subr.mxu0 0.0
        %1957 = vmatpush1.msra.mxu0 0.0
        %1958 = vmatprep.subr.mxu0 0.0
        %1959 = vmatpush1.msra.mxu0 0.0
        %1960 = vmatprep.subr.mxu0 0.0
        %1961 = vmatpush1.msra.mxu0 0.0
        %1962 = vmatprep.subr.mxu0 0.0
        %1963 = vmatpush1.msra.mxu0 0.0
        %1964 = vmatprep.subr.mxu0 0.0
        %1965 = vmatpush1.msra.mxu0 0.0
        %1966 = vmatprep.subr.mxu0 0.0
        %1967 = vmatpush1.msra.mxu0 0.0
        %1968 = vmatprep.subr.mxu0 0.0
        %1969 = vmatpush1.msra.mxu0 0.0
        %1970 = vmatprep.subr.mxu0 0.0
        %1971 = vmatpush1.msra.mxu0 0.0
        %1972 = vmatprep.subr.mxu0 0.0
        %1973 = vmatpush1.msra.mxu0 0.0
        %1974 = vmatprep.subr.mxu0 0.0
        %1975 = vmatpush1.msra.mxu0 0.0
        %1976 = vmatprep.mubr.f32.mxu0 0.0
        %1977 = vmatmul.mubr.f32.gmra.mrb[0].mxu0 %v1910
        %v1978 = vpop.f32.mrb[0].mxu0
        %v1979 = vadd.f32 0.0, %v1978
        %v1980 = vpop.f32.mrb[0].mxu0
        %v1981 = vadd.f32 0.0, %v1980
        %1982 = vdwg.mxu0
        %v1983 = vadd.f32 %v1981, %v1593
        %vm1984 = vcmp.gt.f32.partialorder %v1899, 0.0
        %v1985 = vsel %vm1984, %v1897, %v1983
        %v1987 = vsel %vm977, %v1985, 0
        %1989 = vmatprep.subr.mxu0 0.0
        %1990 = vmatpush1.msra.mxu0 %v1584
        %1991 = vmatprep.subr.mxu0 0.0
        %1992 = vmatpush1.msra.mxu0 %v1585
        %1993 = vmatprep.subr.mxu0 0.0
        %1994 = vmatpush1.msra.mxu0 0.0
        %1995 = vmatprep.subr.mxu0 0.0
        %1996 = vmatpush1.msra.mxu0 0.0
        %1997 = vmatprep.subr.mxu0 0.0
        %1998 = vmatpush1.msra.mxu0 0.0
        %1999 = vmatprep.subr.mxu0 0.0
        %2000 = vmatpush1.msra.mxu0 0.0
        %2001 = vmatprep.subr.mxu0 0.0
        %2002 = vmatpush1.msra.mxu0 0.0
        %2003 = vmatprep.subr.mxu0 0.0
        %2004 = vmatpush1.msra.mxu0 0.0
        %2005 = vmatprep.subr.mxu0 0.0
        %2006 = vmatpush1.msra.mxu0 0.0
        %2007 = vmatprep.subr.mxu0 0.0
        %2008 = vmatpush1.msra.mxu0 0.0
        %2009 = vmatprep.subr.mxu0 0.0
        %2010 = vmatpush1.msra.mxu0 0.0
        %2011 = vmatprep.subr.mxu0 0.0
        %2012 = vmatpush1.msra.mxu0 0.0
        %2013 = vmatprep.subr.mxu0 0.0
        %2014 = vmatpush1.msra.mxu0 0.0
        %2015 = vmatprep.subr.mxu0 0.0
        %2016 = vmatpush1.msra.mxu0 0.0
        %2017 = vmatprep.subr.mxu0 0.0
        %2018 = vmatpush1.msra.mxu0 0.0
        %2019 = vmatprep.subr.mxu0 0.0
        %2020 = vmatpush1.msra.mxu0 0.0
        %2021 = vmatprep.subr.mxu0 0.0
        %2022 = vmatpush1.msra.mxu0 0.0
        %2023 = vmatprep.subr.mxu0 0.0
        %2024 = vmatpush1.msra.mxu0 0.0
        %2025 = vmatprep.subr.mxu0 0.0
        %2026 = vmatpush1.msra.mxu0 0.0
        %2027 = vmatprep.subr.mxu0 0.0
        %2028 = vmatpush1.msra.mxu0 0.0
        %2029 = vmatprep.subr.mxu0 0.0
        %2030 = vmatpush1.msra.mxu0 0.0
        %2031 = vmatprep.subr.mxu0 0.0
        %2032 = vmatpush1.msra.mxu0 0.0
        %2033 = vmatprep.subr.mxu0 0.0
        %2034 = vmatpush1.msra.mxu0 0.0
        %2035 = vmatprep.subr.mxu0 0.0
        %2036 = vmatpush1.msra.mxu0 0.0
        %2037 = vmatprep.subr.mxu0 0.0
        %2038 = vmatpush1.msra.mxu0 0.0
        %2039 = vmatprep.subr.mxu0 0.0
        %2040 = vmatpush1.msra.mxu0 0.0
        %2041 = vmatprep.subr.mxu0 0.0
        %2042 = vmatpush1.msra.mxu0 0.0
        %2043 = vmatprep.subr.mxu0 0.0
        %2044 = vmatpush1.msra.mxu0 0.0
        %2045 = vmatprep.subr.mxu0 0.0
        %2046 = vmatpush1.msra.mxu0 0.0
        %2047 = vmatprep.subr.mxu0 0.0
        %2048 = vmatpush1.msra.mxu0 0.0
        %2049 = vmatprep.subr.mxu0 0.0
        %2050 = vmatpush1.msra.mxu0 0.0
        %2051 = vmatprep.subr.mxu0 0.0
        %2052 = vmatpush1.msra.mxu0 0.0
        %2053 = vmatprep.mubr.f32.mxu0 0.0
        %2054 = vmatmul.mubr.f32.gmra.mrb[0].mxu0 %v1987
        %v2055 = vpop.f32.mrb[0].mxu0
        %v2056 = vadd.f32 %v1600, %v2055
        %v2057 = vpop.f32.mrb[0].mxu0
        %2058 = vdwg.mxu0
        %s2059 = scalar_lea.vmem [#allocation3], %s1895
        %v2060 = vld [vmem:[%s2059] sm:$0xff]
        %v2061 = vmul.f32 %v2060, %v2056
        %v2062 = vsub.f32 1.0, %v2060
        %v2063 = vmul.f32 %v2062, %v1983
        %v2064 = vadd.f32 %v2061, %v2063
        %v2065 = vsel %vm1984, %v1897, %v2064
        %s2066 = scalar_lea.vmem [#allocation4], %s1895
        %v2067 = vld [vmem:[%s2066] sm:$0xff]
        %v2069 = vsel %vm977, %v2065, 0
        %2071 = vmatprep.subr.mxu0 0.0
        %2072 = vmatpush1.msra.mxu0 %v1586
        %2073 = vmatprep.subr.mxu0 0.0
        %2074 = vmatpush1.msra.mxu0 %v1587
        %2075 = vmatprep.subr.mxu0 0.0
        %2076 = vmatpush1.msra.mxu0 0.0
        %2077 = vmatprep.subr.mxu0 0.0
        %2078 = vmatpush1.msra.mxu0 0.0
        %2079 = vmatprep.subr.mxu0 0.0
        %2080 = vmatpush1.msra.mxu0 0.0
        %2081 = vmatprep.subr.mxu0 0.0
        %2082 = vmatpush1.msra.mxu0 0.0
        %2083 = vmatprep.subr.mxu0 0.0
        %2084 = vmatpush1.msra.mxu0 0.0
        %2085 = vmatprep.subr.mxu0 0.0
        %2086 = vmatpush1.msra.mxu0 0.0
        %2087 = vmatprep.subr.mxu0 0.0
        %2088 = vmatpush1.msra.mxu0 0.0
        %2089 = vmatprep.subr.mxu0 0.0
        %2090 = vmatpush1.msra.mxu0 0.0
        %2091 = vmatprep.subr.mxu0 0.0
        %2092 = vmatpush1.msra.mxu0 0.0
        %2093 = vmatprep.subr.mxu0 0.0
        %2094 = vmatpush1.msra.mxu0 0.0
        %2095 = vmatprep.subr.mxu0 0.0
        %2096 = vmatpush1.msra.mxu0 0.0
        %2097 = vmatprep.subr.mxu0 0.0
        %2098 = vmatpush1.msra.mxu0 0.0
        %2099 = vmatprep.subr.mxu0 0.0
        %2100 = vmatpush1.msra.mxu0 0.0
        %2101 = vmatprep.subr.mxu0 0.0
        %2102 = vmatpush1.msra.mxu0 0.0
        %2103 = vmatprep.subr.mxu0 0.0
        %2104 = vmatpush1.msra.mxu0 0.0
        %2105 = vmatprep.subr.mxu0 0.0
        %2106 = vmatpush1.msra.mxu0 0.0
        %2107 = vmatprep.subr.mxu0 0.0
        %2108 = vmatpush1.msra.mxu0 0.0
        %2109 = vmatprep.subr.mxu0 0.0
        %2110 = vmatpush1.msra.mxu0 0.0
        %2111 = vmatprep.subr.mxu0 0.0
        %2112 = vmatpush1.msra.mxu0 0.0
        %2113 = vmatprep.subr.mxu0 0.0
        %2114 = vmatpush1.msra.mxu0 0.0
        %2115 = vmatprep.subr.mxu0 0.0
        %2116 = vmatpush1.msra.mxu0 0.0
        %2117 = vmatprep.subr.mxu0 0.0
        %2118 = vmatpush1.msra.mxu0 0.0
        %2119 = vmatprep.subr.mxu0 0.0
        %2120 = vmatpush1.msra.mxu0 0.0
        %2121 = vmatprep.subr.mxu0 0.0
        %2122 = vmatpush1.msra.mxu0 0.0
        %2123 = vmatprep.subr.mxu0 0.0
        %2124 = vmatpush1.msra.mxu0 0.0
        %2125 = vmatprep.subr.mxu0 0.0
        %2126 = vmatpush1.msra.mxu0 0.0
        %2127 = vmatprep.subr.mxu0 0.0
        %2128 = vmatpush1.msra.mxu0 0.0
        %2129 = vmatprep.subr.mxu0 0.0
        %2130 = vmatpush1.msra.mxu0 0.0
        %2131 = vmatprep.subr.mxu0 0.0
        %2132 = vmatpush1.msra.mxu0 0.0
        %2133 = vmatprep.subr.mxu0 0.0
        %2134 = vmatpush1.msra.mxu0 0.0
        %2135 = vmatprep.mubr.f32.mxu0 0.0
        %2136 = vmatmul.mubr.f32.gmra.mrb[0].mxu0 %v2069
        %v2137 = vpop.f32.mrb[0].mxu0
        %v2138 = vadd.f32 %v2067, %v2137
        %v2139 = vpop.f32.mrb[0].mxu0
        %2140 = vdwg.mxu0
        %v2141 = vadd.f32 %v2138, %v1979
        %v2142 = vtanh.pop %v2141
        %v2143 = vxor.u32 %v2141, 2147483648
        %v2144 = vmul.f32 %v2143, 1.442695
        %v2145 = vpow.pop %v2144
        %v2146 = vadd.f32 %v2145, 1.0
        %v2147 = vrcp.pop %v2146
        %v2148 = vmul.f32 1.0, %v2147
        %v2149 = vsel %vm1606, %v2142, %v2148
        %v2150 = vmul.f32 %v2149, %v1868
        %2152 = vrot.lane.b32.xlu0 %v2149, 64
        %v2153 = vpop.permute.xlu0 %2152
        %v2155 = vmul.f32 %v2149, %v2153
        %2157 = vrot.lane.b32.xlu0 %v2155, 32
        %v2158 = vpop.permute.xlu0 %2157
        %v2160 = vadd.f32 %v2150, %v2158
        %v2161 = vtanh.pop %v2160
        %2163 = vrot.lane.b32.xlu0 %v2161, 64
        %v2164 = vpop.permute.xlu0 %2163
        %v2166 = vmul.f32 %v2149, %v2164
        %2168 = vrot.lane.b32.xlu0 %v1983, 16
        %v2169 = vpop.permute.xlu0 %2168
        %2172 = vrot.lane.b32.xlu0 %v2056, 32
        %v2173 = vpop.permute.xlu0 %2172
        %2176 = vrot.lane.b32.xlu0 %v2064, 48
        %v2177 = vpop.permute.xlu0 %2176
        %v2179 = vsel %vm977, %v2065, %v2169
        %v2180 = vsel %vm1536, %v2179, %v2173
        %v2181 = vsel %vm1889, %v2180, %v2177
        %s2182 = scalar_lea.vmem %s934, %s1895 [#allocation19]
        %2183 = vst.msk [vmem:[%s2182] sm:$0xff] %vm1892, %v2181
        %s2184 = scalar_select %p1607, 2, 5
        %s2185 = smul.u32 %s2184, 8
        %s2186 = scalar_lea.vmem [#allocation5], %s2185
        %v2187 = vld [vmem:[%s2186] sm:$0xff]
        %s2188 = scalar_lea.vmem [#allocation8], %s2185
        %v2189 = vld [vmem:[%s2188] sm:$0xff]
        %s2190 = scalar_lea.vmem [#allocation2], %s2185
        %v2191 = vld [vmem:[%s2190] sm:$0xff]
        %2193 = vrot.lane.b32.xlu0 %v2191, 96
        %v2194 = vpop.permute.xlu0 %2193
        %v2196 = vmul.f32 %v2166, %v2194
        %2198 = vrot.lane.b32.xlu0 %v2196, 32
        %v2199 = vpop.permute.xlu0 %2198
        %v2200 = vsel %vm1536, %v2199, 0
        %2202 = vmatprep.subr.mxu0 %v1577
        %2203 = vmatpush1.msra.mxu0 %v1576
        %2204 = vmatprep.subr.mxu0 %v1579
        %2205 = vmatpush1.msra.mxu0 %v1578
        %2206 = vmatprep.subr.mxu0 %v1581
        %2207 = vmatpush1.msra.mxu0 %v1580
        %2208 = vmatprep.subr.mxu0 %v1583
        %2209 = vmatpush1.msra.mxu0 %v1582
        %2210 = vmatprep.subr.mxu0 0.0
        %2211 = vmatpush1.msra.mxu0 0.0
        %2212 = vmatprep.subr.mxu0 0.0
        %2213 = vmatpush1.msra.mxu0 0.0
        %2214 = vmatprep.subr.mxu0 0.0
        %2215 = vmatpush1.msra.mxu0 0.0
        %2216 = vmatprep.subr.mxu0 0.0
        %2217 = vmatpush1.msra.mxu0 0.0
        %2218 = vmatprep.subr.mxu0 0.0
        %2219 = vmatpush1.msra.mxu0 0.0
        %2220 = vmatprep.subr.mxu0 0.0
        %2221 = vmatpush1.msra.mxu0 0.0
        %2222 = vmatprep.subr.mxu0 0.0
        %2223 = vmatpush1.msra.mxu0 0.0
        %2224 = vmatprep.subr.mxu0 0.0
        %2225 = vmatpush1.msra.mxu0 0.0
        %2226 = vmatprep.subr.mxu0 0.0
        %2227 = vmatpush1.msra.mxu0 0.0
        %2228 = vmatprep.subr.mxu0 0.0
        %2229 = vmatpush1.msra.mxu0 0.0
        %2230 = vmatprep.subr.mxu0 0.0
        %2231 = vmatpush1.msra.mxu0 0.0
        %2232 = vmatprep.subr.mxu0 0.0
        %2233 = vmatpush1.msra.mxu0 0.0
        %2234 = vmatprep.subr.mxu0 0.0
        %2235 = vmatpush1.msra.mxu0 0.0
        %2236 = vmatprep.subr.mxu0 0.0
        %2237 = vmatpush1.msra.mxu0 0.0
        %2238 = vmatprep.subr.mxu0 0.0
        %2239 = vmatpush1.msra.mxu0 0.0
        %2240 = vmatprep.subr.mxu0 0.0
        %2241 = vmatpush1.msra.mxu0 0.0
        %2242 = vmatprep.subr.mxu0 0.0
        %2243 = vmatpush1.msra.mxu0 0.0
        %2244 = vmatprep.subr.mxu0 0.0
        %2245 = vmatpush1.msra.mxu0 0.0
        %2246 = vmatprep.subr.mxu0 0.0
        %2247 = vmatpush1.msra.mxu0 0.0
        %2248 = vmatprep.subr.mxu0 0.0
        %2249 = vmatpush1.msra.mxu0 0.0
        %2250 = vmatprep.subr.mxu0 0.0
        %2251 = vmatpush1.msra.mxu0 0.0
        %2252 = vmatprep.subr.mxu0 0.0
        %2253 = vmatpush1.msra.mxu0 0.0
        %2254 = vmatprep.subr.mxu0 0.0
        %2255 = vmatpush1.msra.mxu0 0.0
        %2256 = vmatprep.subr.mxu0 0.0
        %2257 = vmatpush1.msra.mxu0 0.0
        %2258 = vmatprep.subr.mxu0 0.0
        %2259 = vmatpush1.msra.mxu0 0.0
        %2260 = vmatprep.subr.mxu0 0.0
        %2261 = vmatpush1.msra.mxu0 0.0
        %2262 = vmatprep.subr.mxu0 0.0
        %2263 = vmatpush1.msra.mxu0 0.0
        %2264 = vmatprep.subr.mxu0 0.0
        %2265 = vmatpush1.msra.mxu0 0.0
        %2266 = vmatprep.mubr.f32.mxu0 0.0
        %2267 = vmatmul.mubr.f32.gmra.mrb[0].mxu0 %v2200
        %v2268 = vpop.f32.mrb[0].mxu0
        %v2269 = vadd.f32 0.0, %v2268
        %v2270 = vpop.f32.mrb[0].mxu0
        %v2271 = vadd.f32 0.0, %v2270
        %2272 = vdwg.mxu0
        %v2273 = vadd.f32 %v2271, %v1593
        %vm2274 = vcmp.gt.f32.partialorder %v2189, 0.0
        %v2275 = vsel %vm2274, %v2187, %v2273
        %v2277 = vsel %vm977, %v2275, 0
        %2279 = vmatprep.subr.mxu0 0.0
        %2280 = vmatpush1.msra.mxu0 %v1584
        %2281 = vmatprep.subr.mxu0 0.0
        %2282 = vmatpush1.msra.mxu0 %v1585
        %2283 = vmatprep.subr.mxu0 0.0
        %2284 = vmatpush1.msra.mxu0 0.0
        %2285 = vmatprep.subr.mxu0 0.0
        %2286 = vmatpush1.msra.mxu0 0.0
        %2287 = vmatprep.subr.mxu0 0.0
        %2288 = vmatpush1.msra.mxu0 0.0
        %2289 = vmatprep.subr.mxu0 0.0
        %2290 = vmatpush1.msra.mxu0 0.0
        %2291 = vmatprep.subr.mxu0 0.0
        %2292 = vmatpush1.msra.mxu0 0.0
        %2293 = vmatprep.subr.mxu0 0.0
        %2294 = vmatpush1.msra.mxu0 0.0
        %2295 = vmatprep.subr.mxu0 0.0
        %2296 = vmatpush1.msra.mxu0 0.0
        %2297 = vmatprep.subr.mxu0 0.0
        %2298 = vmatpush1.msra.mxu0 0.0
        %2299 = vmatprep.subr.mxu0 0.0
        %2300 = vmatpush1.msra.mxu0 0.0
        %2301 = vmatprep.subr.mxu0 0.0
        %2302 = vmatpush1.msra.mxu0 0.0
        %2303 = vmatprep.subr.mxu0 0.0
        %2304 = vmatpush1.msra.mxu0 0.0
        %2305 = vmatprep.subr.mxu0 0.0
        %2306 = vmatpush1.msra.mxu0 0.0
        %2307 = vmatprep.subr.mxu0 0.0
        %2308 = vmatpush1.msra.mxu0 0.0
        %2309 = vmatprep.subr.mxu0 0.0
        %2310 = vmatpush1.msra.mxu0 0.0
        %2311 = vmatprep.subr.mxu0 0.0
        %2312 = vmatpush1.msra.mxu0 0.0
        %2313 = vmatprep.subr.mxu0 0.0
        %2314 = vmatpush1.msra.mxu0 0.0
        %2315 = vmatprep.subr.mxu0 0.0
        %2316 = vmatpush1.msra.mxu0 0.0
        %2317 = vmatprep.subr.mxu0 0.0
        %2318 = vmatpush1.msra.mxu0 0.0
        %2319 = vmatprep.subr.mxu0 0.0
        %2320 = vmatpush1.msra.mxu0 0.0
        %2321 = vmatprep.subr.mxu0 0.0
        %2322 = vmatpush1.msra.mxu0 0.0
        %2323 = vmatprep.subr.mxu0 0.0
        %2324 = vmatpush1.msra.mxu0 0.0
        %2325 = vmatprep.subr.mxu0 0.0
        %2326 = vmatpush1.msra.mxu0 0.0
        %2327 = vmatprep.subr.mxu0 0.0
        %2328 = vmatpush1.msra.mxu0 0.0
        %2329 = vmatprep.subr.mxu0 0.0
        %2330 = vmatpush1.msra.mxu0 0.0
        %2331 = vmatprep.subr.mxu0 0.0
        %2332 = vmatpush1.msra.mxu0 0.0
        %2333 = vmatprep.subr.mxu0 0.0
        %2334 = vmatpush1.msra.mxu0 0.0
        %2335 = vmatprep.subr.mxu0 0.0
        %2336 = vmatpush1.msra.mxu0 0.0
        %2337 = vmatprep.subr.mxu0 0.0
        %2338 = vmatpush1.msra.mxu0 0.0
        %2339 = vmatprep.subr.mxu0 0.0
        %2340 = vmatpush1.msra.mxu0 0.0
        %2341 = vmatprep.subr.mxu0 0.0
        %2342 = vmatpush1.msra.mxu0 0.0
        %2343 = vmatprep.mubr.f32.mxu0 0.0
        %2344 = vmatmul.mubr.f32.gmra.mrb[0].mxu0 %v2277
        %v2345 = vpop.f32.mrb[0].mxu0
        %v2346 = vadd.f32 %v1600, %v2345
        %v2347 = vpop.f32.mrb[0].mxu0
        %2348 = vdwg.mxu0
        %s2349 = scalar_lea.vmem [#allocation3], %s2185
        %v2350 = vld [vmem:[%s2349] sm:$0xff]
        %v2351 = vmul.f32 %v2350, %v2346
        %v2352 = vsub.f32 1.0, %v2350
        %v2353 = vmul.f32 %v2352, %v2273
        %v2354 = vadd.f32 %v2351, %v2353
        %v2355 = vsel %vm2274, %v2187, %v2354
        %s2356 = scalar_lea.vmem [#allocation4], %s2185
        %v2357 = vld [vmem:[%s2356] sm:$0xff]
        %v2359 = vsel %vm977, %v2355, 0
        %2361 = vmatprep.subr.mxu0 0.0
        %2362 = vmatpush1.msra.mxu0 %v1586
        %2363 = vmatprep.subr.mxu0 0.0
        %2364 = vmatpush1.msra.mxu0 %v1587
        %2365 = vmatprep.subr.mxu0 0.0
        %2366 = vmatpush1.msra.mxu0 0.0
        %2367 = vmatprep.subr.mxu0 0.0
        %2368 = vmatpush1.msra.mxu0 0.0
        %2369 = vmatprep.subr.mxu0 0.0
        %2370 = vmatpush1.msra.mxu0 0.0
        %2371 = vmatprep.subr.mxu0 0.0
        %2372 = vmatpush1.msra.mxu0 0.0
        %2373 = vmatprep.subr.mxu0 0.0
        %2374 = vmatpush1.msra.mxu0 0.0
        %2375 = vmatprep.subr.mxu0 0.0
        %2376 = vmatpush1.msra.mxu0 0.0
        %2377 = vmatprep.subr.mxu0 0.0
        %2378 = vmatpush1.msra.mxu0 0.0
        %2379 = vmatprep.subr.mxu0 0.0
        %2380 = vmatpush1.msra.mxu0 0.0
        %2381 = vmatprep.subr.mxu0 0.0
        %2382 = vmatpush1.msra.mxu0 0.0
        %2383 = vmatprep.subr.mxu0 0.0
        %2384 = vmatpush1.msra.mxu0 0.0
        %2385 = vmatprep.subr.mxu0 0.0
        %2386 = vmatpush1.msra.mxu0 0.0
        %2387 = vmatprep.subr.mxu0 0.0
        %2388 = vmatpush1.msra.mxu0 0.0
        %2389 = vmatprep.subr.mxu0 0.0
        %2390 = vmatpush1.msra.mxu0 0.0
        %2391 = vmatprep.subr.mxu0 0.0
        %2392 = vmatpush1.msra.mxu0 0.0
        %2393 = vmatprep.subr.mxu0 0.0
        %2394 = vmatpush1.msra.mxu0 0.0
        %2395 = vmatprep.subr.mxu0 0.0
        %2396 = vmatpush1.msra.mxu0 0.0
        %2397 = vmatprep.subr.mxu0 0.0
        %2398 = vmatpush1.msra.mxu0 0.0
        %2399 = vmatprep.subr.mxu0 0.0
        %2400 = vmatpush1.msra.mxu0 0.0
        %2401 = vmatprep.subr.mxu0 0.0
        %2402 = vmatpush1.msra.mxu0 0.0
        %2403 = vmatprep.subr.mxu0 0.0
        %2404 = vmatpush1.msra.mxu0 0.0
        %2405 = vmatprep.subr.mxu0 0.0
        %2406 = vmatpush1.msra.mxu0 0.0
        %2407 = vmatprep.subr.mxu0 0.0
        %2408 = vmatpush1.msra.mxu0 0.0
        %2409 = vmatprep.subr.mxu0 0.0
        %2410 = vmatpush1.msra.mxu0 0.0
        %2411 = vmatprep.subr.mxu0 0.0
        %2412 = vmatpush1.msra.mxu0 0.0
        %2413 = vmatprep.subr.mxu0 0.0
        %2414 = vmatpush1.msra.mxu0 0.0
        %2415 = vmatprep.subr.mxu0 0.0
        %2416 = vmatpush1.msra.mxu0 0.0
        %2417 = vmatprep.subr.mxu0 0.0
        %2418 = vmatpush1.msra.mxu0 0.0
        %2419 = vmatprep.subr.mxu0 0.0
        %2420 = vmatpush1.msra.mxu0 0.0
        %2421 = vmatprep.subr.mxu0 0.0
        %2422 = vmatpush1.msra.mxu0 0.0
        %2423 = vmatprep.subr.mxu0 0.0
        %2424 = vmatpush1.msra.mxu0 0.0
        %2425 = vmatprep.mubr.f32.mxu0 0.0
        %2426 = vmatmul.mubr.f32.gmra.mrb[0].mxu0 %v2359
        %v2427 = vpop.f32.mrb[0].mxu0
        %v2428 = vadd.f32 %v2357, %v2427
        %v2429 = vpop.f32.mrb[0].mxu0
        %2430 = vdwg.mxu0
        %v2431 = vadd.f32 %v2428, %v2269
        %v2432 = vtanh.pop %v2431
        %v2433 = vxor.u32 %v2431, 2147483648
        %v2434 = vmul.f32 %v2433, 1.442695
        %v2435 = vpow.pop %v2434
        %v2436 = vadd.f32 %v2435, 1.0
        %v2437 = vrcp.pop %v2436
        %v2438 = vmul.f32 1.0, %v2437
        %v2439 = vsel %vm1606, %v2432, %v2438
        %v2440 = vmul.f32 %v2439, %v2160
        %2442 = vrot.lane.b32.xlu0 %v2439, 64
        %v2443 = vpop.permute.xlu0 %2442
        %v2445 = vmul.f32 %v2439, %v2443
        %2447 = vrot.lane.b32.xlu0 %v2445, 32
        %v2448 = vpop.permute.xlu0 %2447
        %v2450 = vadd.f32 %v2440, %v2448
        %v2451 = vtanh.pop %v2450
        %2453 = vrot.lane.b32.xlu0 %v2451, 64
        %v2454 = vpop.permute.xlu0 %2453
        %v2456 = vmul.f32 %v2439, %v2454
        %2458 = vrot.lane.b32.xlu0 %v2273, 16
        %v2459 = vpop.permute.xlu0 %2458
        %2462 = vrot.lane.b32.xlu0 %v2346, 32
        %v2463 = vpop.permute.xlu0 %2462
        %2466 = vrot.lane.b32.xlu0 %v2354, 48
        %v2467 = vpop.permute.xlu0 %2466
        %v2469 = vsel %vm977, %v2355, %v2459
        %v2470 = vsel %vm1536, %v2469, %v2463
        %v2471 = vsel %vm1889, %v2470, %v2467
        %s2472 = scalar_lea.vmem %s934, %s2185 [#allocation19]
        %2473 = vst.msk [vmem:[%s2472] sm:$0xff] %vm1892, %v2471
        %s2474 = scalar_select %p1607, 3, 4
        %s2475 = smul.u32 %s2474, 8
        %s2476 = scalar_lea.vmem [#allocation5], %s2475
        %v2477 = vld [vmem:[%s2476] sm:$0xff]
        %s2478 = scalar_lea.vmem [#allocation8], %s2475
        %v2479 = vld [vmem:[%s2478] sm:$0xff]
        %s2480 = scalar_lea.vmem [#allocation2], %s2475
        %v2481 = vld [vmem:[%s2480] sm:$0xff]
        %2483 = vrot.lane.b32.xlu0 %v2481, 96
        %v2484 = vpop.permute.xlu0 %2483
        %v2486 = vmul.f32 %v2456, %v2484
        %2488 = vrot.lane.b32.xlu0 %v2486, 32
        %v2489 = vpop.permute.xlu0 %2488
        %v2490 = vsel %vm1536, %v2489, 0
        %2492 = vmatprep.subr.mxu0 %v1577
        %2493 = vmatpush1.msra.mxu0 %v1576
        %2494 = vmatprep.subr.mxu0 %v1579
        %2495 = vmatpush1.msra.mxu0 %v1578
        %2496 = vmatprep.subr.mxu0 %v1581
        %2497 = vmatpush1.msra.mxu0 %v1580
        %2498 = vmatprep.subr.mxu0 %v1583
        %2499 = vmatpush1.msra.mxu0 %v1582
        %2500 = vmatprep.subr.mxu0 0.0
        %2501 = vmatpush1.msra.mxu0 0.0
        %2502 = vmatprep.subr.mxu0 0.0
        %2503 = vmatpush1.msra.mxu0 0.0
        %2504 = vmatprep.subr.mxu0 0.0
        %2505 = vmatpush1.msra.mxu0 0.0
        %2506 = vmatprep.subr.mxu0 0.0
        %2507 = vmatpush1.msra.mxu0 0.0
        %2508 = vmatprep.subr.mxu0 0.0
        %2509 = vmatpush1.msra.mxu0 0.0
        %2510 = vmatprep.subr.mxu0 0.0
        %2511 = vmatpush1.msra.mxu0 0.0
        %2512 = vmatprep.subr.mxu0 0.0
        %2513 = vmatpush1.msra.mxu0 0.0
        %2514 = vmatprep.subr.mxu0 0.0
        %2515 = vmatpush1.msra.mxu0 0.0
        %2516 = vmatprep.subr.mxu0 0.0
        %2517 = vmatpush1.msra.mxu0 0.0
        %2518 = vmatprep.subr.mxu0 0.0
        %2519 = vmatpush1.msra.mxu0 0.0
        %2520 = vmatprep.subr.mxu0 0.0
        %2521 = vmatpush1.msra.mxu0 0.0
        %2522 = vmatprep.subr.mxu0 0.0
        %2523 = vmatpush1.msra.mxu0 0.0
        %2524 = vmatprep.subr.mxu0 0.0
        %2525 = vmatpush1.msra.mxu0 0.0
        %2526 = vmatprep.subr.mxu0 0.0
        %2527 = vmatpush1.msra.mxu0 0.0
        %2528 = vmatprep.subr.mxu0 0.0
        %2529 = vmatpush1.msra.mxu0 0.0
        %2530 = vmatprep.subr.mxu0 0.0
        %2531 = vmatpush1.msra.mxu0 0.0
        %2532 = vmatprep.subr.mxu0 0.0
        %2533 = vmatpush1.msra.mxu0 0.0
        %2534 = vmatprep.subr.mxu0 0.0
        %2535 = vmatpush1.msra.mxu0 0.0
        %2536 = vmatprep.subr.mxu0 0.0
        %2537 = vmatpush1.msra.mxu0 0.0
        %2538 = vmatprep.subr.mxu0 0.0
        %2539 = vmatpush1.msra.mxu0 0.0
        %2540 = vmatprep.subr.mxu0 0.0
        %2541 = vmatpush1.msra.mxu0 0.0
        %2542 = vmatprep.subr.mxu0 0.0
        %2543 = vmatpush1.msra.mxu0 0.0
        %2544 = vmatprep.subr.mxu0 0.0
        %2545 = vmatpush1.msra.mxu0 0.0
        %2546 = vmatprep.subr.mxu0 0.0
        %2547 = vmatpush1.msra.mxu0 0.0
        %2548 = vmatprep.subr.mxu0 0.0
        %2549 = vmatpush1.msra.mxu0 0.0
        %2550 = vmatprep.subr.mxu0 0.0
        %2551 = vmatpush1.msra.mxu0 0.0
        %2552 = vmatprep.subr.mxu0 0.0
        %2553 = vmatpush1.msra.mxu0 0.0
        %2554 = vmatprep.subr.mxu0 0.0
        %2555 = vmatpush1.msra.mxu0 0.0
        %2556 = vmatprep.mubr.f32.mxu0 0.0
        %2557 = vmatmul.mubr.f32.gmra.mrb[0].mxu0 %v2490
        %v2558 = vpop.f32.mrb[0].mxu0
        %v2559 = vadd.f32 0.0, %v2558
        %v2560 = vpop.f32.mrb[0].mxu0
        %v2561 = vadd.f32 0.0, %v2560
        %2562 = vdwg.mxu0
        %v2563 = vadd.f32 %v2561, %v1593
        %vm2564 = vcmp.gt.f32.partialorder %v2479, 0.0
        %v2565 = vsel %vm2564, %v2477, %v2563
        %v2567 = vsel %vm977, %v2565, 0
        %2569 = vmatprep.subr.mxu0 0.0
        %2570 = vmatpush1.msra.mxu0 %v1584
        %2571 = vmatprep.subr.mxu0 0.0
        %2572 = vmatpush1.msra.mxu0 %v1585
        %2573 = vmatprep.subr.mxu0 0.0
        %2574 = vmatpush1.msra.mxu0 0.0
        %2575 = vmatprep.subr.mxu0 0.0
        %2576 = vmatpush1.msra.mxu0 0.0
        %2577 = vmatprep.subr.mxu0 0.0
        %2578 = vmatpush1.msra.mxu0 0.0
        %2579 = vmatprep.subr.mxu0 0.0
        %2580 = vmatpush1.msra.mxu0 0.0
        %2581 = vmatprep.subr.mxu0 0.0
        %2582 = vmatpush1.msra.mxu0 0.0
        %2583 = vmatprep.subr.mxu0 0.0
        %2584 = vmatpush1.msra.mxu0 0.0
        %2585 = vmatprep.subr.mxu0 0.0
        %2586 = vmatpush1.msra.mxu0 0.0
        %2587 = vmatprep.subr.mxu0 0.0
        %2588 = vmatpush1.msra.mxu0 0.0
        %2589 = vmatprep.subr.mxu0 0.0
        %2590 = vmatpush1.msra.mxu0 0.0
        %2591 = vmatprep.subr.mxu0 0.0
        %2592 = vmatpush1.msra.mxu0 0.0
        %2593 = vmatprep.subr.mxu0 0.0
        %2594 = vmatpush1.msra.mxu0 0.0
        %2595 = vmatprep.subr.mxu0 0.0
        %2596 = vmatpush1.msra.mxu0 0.0
        %2597 = vmatprep.subr.mxu0 0.0
        %2598 = vmatpush1.msra.mxu0 0.0
        %2599 = vmatprep.subr.mxu0 0.0
        %2600 = vmatpush1.msra.mxu0 0.0
        %2601 = vmatprep.subr.mxu0 0.0
        %2602 = vmatpush1.msra.mxu0 0.0
        %2603 = vmatprep.subr.mxu0 0.0
        %2604 = vmatpush1.msra.mxu0 0.0
        %2605 = vmatprep.subr.mxu0 0.0
        %2606 = vmatpush1.msra.mxu0 0.0
        %2607 = vmatprep.subr.mxu0 0.0
        %2608 = vmatpush1.msra.mxu0 0.0
        %2609 = vmatprep.subr.mxu0 0.0
        %2610 = vmatpush1.msra.mxu0 0.0
        %2611 = vmatprep.subr.mxu0 0.0
        %2612 = vmatpush1.msra.mxu0 0.0
        %2613 = vmatprep.subr.mxu0 0.0
        %2614 = vmatpush1.msra.mxu0 0.0
        %2615 = vmatprep.subr.mxu0 0.0
        %2616 = vmatpush1.msra.mxu0 0.0
        %2617 = vmatprep.subr.mxu0 0.0
        %2618 = vmatpush1.msra.mxu0 0.0
        %2619 = vmatprep.subr.mxu0 0.0
        %2620 = vmatpush1.msra.mxu0 0.0
        %2621 = vmatprep.subr.mxu0 0.0
        %2622 = vmatpush1.msra.mxu0 0.0
        %2623 = vmatprep.subr.mxu0 0.0
        %2624 = vmatpush1.msra.mxu0 0.0
        %2625 = vmatprep.subr.mxu0 0.0
        %2626 = vmatpush1.msra.mxu0 0.0
        %2627 = vmatprep.subr.mxu0 0.0
        %2628 = vmatpush1.msra.mxu0 0.0
        %2629 = vmatprep.subr.mxu0 0.0
        %2630 = vmatpush1.msra.mxu0 0.0
        %2631 = vmatprep.subr.mxu0 0.0
        %2632 = vmatpush1.msra.mxu0 0.0
        %2633 = vmatprep.mubr.f32.mxu0 0.0
        %2634 = vmatmul.mubr.f32.gmra.mrb[0].mxu0 %v2567
        %v2635 = vpop.f32.mrb[0].mxu0
        %v2636 = vadd.f32 %v1600, %v2635
        %v2637 = vpop.f32.mrb[0].mxu0
        %2638 = vdwg.mxu0
        %s2639 = scalar_lea.vmem [#allocation3], %s2475
        %v2640 = vld [vmem:[%s2639] sm:$0xff]
        %v2641 = vmul.f32 %v2640, %v2636
        %v2642 = vsub.f32 1.0, %v2640
        %v2643 = vmul.f32 %v2642, %v2563
        %v2644 = vadd.f32 %v2641, %v2643
        %v2645 = vsel %vm2564, %v2477, %v2644
        %s2646 = scalar_lea.vmem [#allocation4], %s2475
        %v2647 = vld [vmem:[%s2646] sm:$0xff]
        %v2649 = vsel %vm977, %v2645, 0
        %2651 = vmatprep.subr.mxu0 0.0
        %2652 = vmatpush1.msra.mxu0 %v1586
        %2653 = vmatprep.subr.mxu0 0.0
        %2654 = vmatpush1.msra.mxu0 %v1587
        %2655 = vmatprep.subr.mxu0 0.0
        %2656 = vmatpush1.msra.mxu0 0.0
        %2657 = vmatprep.subr.mxu0 0.0
        %2658 = vmatpush1.msra.mxu0 0.0
        %2659 = vmatprep.subr.mxu0 0.0
        %2660 = vmatpush1.msra.mxu0 0.0
        %2661 = vmatprep.subr.mxu0 0.0
        %2662 = vmatpush1.msra.mxu0 0.0
        %2663 = vmatprep.subr.mxu0 0.0
        %2664 = vmatpush1.msra.mxu0 0.0
        %2665 = vmatprep.subr.mxu0 0.0
        %2666 = vmatpush1.msra.mxu0 0.0
        %2667 = vmatprep.subr.mxu0 0.0
        %2668 = vmatpush1.msra.mxu0 0.0
        %2669 = vmatprep.subr.mxu0 0.0
        %2670 = vmatpush1.msra.mxu0 0.0
        %2671 = vmatprep.subr.mxu0 0.0
        %2672 = vmatpush1.msra.mxu0 0.0
        %2673 = vmatprep.subr.mxu0 0.0
        %2674 = vmatpush1.msra.mxu0 0.0
        %2675 = vmatprep.subr.mxu0 0.0
        %2676 = vmatpush1.msra.mxu0 0.0
        %2677 = vmatprep.subr.mxu0 0.0
        %2678 = vmatpush1.msra.mxu0 0.0
        %2679 = vmatprep.subr.mxu0 0.0
        %2680 = vmatpush1.msra.mxu0 0.0
        %2681 = vmatprep.subr.mxu0 0.0
        %2682 = vmatpush1.msra.mxu0 0.0
        %2683 = vmatprep.subr.mxu0 0.0
        %2684 = vmatpush1.msra.mxu0 0.0
        %2685 = vmatprep.subr.mxu0 0.0
        %2686 = vmatpush1.msra.mxu0 0.0
        %2687 = vmatprep.subr.mxu0 0.0
        %2688 = vmatpush1.msra.mxu0 0.0
        %2689 = vmatprep.subr.mxu0 0.0
        %2690 = vmatpush1.msra.mxu0 0.0
        %2691 = vmatprep.subr.mxu0 0.0
        %2692 = vmatpush1.msra.mxu0 0.0
        %2693 = vmatprep.subr.mxu0 0.0
        %2694 = vmatpush1.msra.mxu0 0.0
        %2695 = vmatprep.subr.mxu0 0.0
        %2696 = vmatpush1.msra.mxu0 0.0
        %2697 = vmatprep.subr.mxu0 0.0
        %2698 = vmatpush1.msra.mxu0 0.0
        %2699 = vmatprep.subr.mxu0 0.0
        %2700 = vmatpush1.msra.mxu0 0.0
        %2701 = vmatprep.subr.mxu0 0.0
        %2702 = vmatpush1.msra.mxu0 0.0
        %2703 = vmatprep.subr.mxu0 0.0
        %2704 = vmatpush1.msra.mxu0 0.0
        %2705 = vmatprep.subr.mxu0 0.0
        %2706 = vmatpush1.msra.mxu0 0.0
        %2707 = vmatprep.subr.mxu0 0.0
        %2708 = vmatpush1.msra.mxu0 0.0
        %2709 = vmatprep.subr.mxu0 0.0
        %2710 = vmatpush1.msra.mxu0 0.0
        %2711 = vmatprep.subr.mxu0 0.0
        %2712 = vmatpush1.msra.mxu0 0.0
        %2713 = vmatprep.subr.mxu0 0.0
        %2714 = vmatpush1.msra.mxu0 0.0
        %2715 = vmatprep.mubr.f32.mxu0 0.0
        %2716 = vmatmul.mubr.f32.gmra.mrb[0].mxu0 %v2649
        %v2717 = vpop.f32.mrb[0].mxu0
        %v2718 = vadd.f32 %v2647, %v2717
        %v2719 = vpop.f32.mrb[0].mxu0
        %2720 = vdwg.mxu0
        %v2721 = vadd.f32 %v2718, %v2559
        %v2722 = vtanh.pop %v2721
        %v2723 = vxor.u32 %v2721, 2147483648
        %v2724 = vmul.f32 %v2723, 1.442695
        %v2725 = vpow.pop %v2724
        %v2726 = vadd.f32 %v2725, 1.0
        %v2727 = vrcp.pop %v2726
        %v2728 = vmul.f32 1.0, %v2727
        %v2729 = vsel %vm1606, %v2722, %v2728
        %v2730 = vmul.f32 %v2729, %v2450
        %2732 = vrot.lane.b32.xlu0 %v2729, 64
        %v2733 = vpop.permute.xlu0 %2732
        %v2735 = vmul.f32 %v2729, %v2733
        %2737 = vrot.lane.b32.xlu0 %v2735, 32
        %v2738 = vpop.permute.xlu0 %2737
        %v2740 = vadd.f32 %v2730, %v2738
        %v2741 = vtanh.pop %v2740
        %2743 = vrot.lane.b32.xlu0 %v2741, 64
        %v2744 = vpop.permute.xlu0 %2743
        %v2746 = vmul.f32 %v2729, %v2744
        %2748 = vrot.lane.b32.xlu0 %v2563, 16
        %v2749 = vpop.permute.xlu0 %2748
        %2752 = vrot.lane.b32.xlu0 %v2636, 32
        %v2753 = vpop.permute.xlu0 %2752
        %2756 = vrot.lane.b32.xlu0 %v2644, 48
        %v2757 = vpop.permute.xlu0 %2756
        %v2759 = vsel %vm977, %v2645, %v2749
        %v2760 = vsel %vm1536, %v2759, %v2753
        %v2761 = vsel %vm1889, %v2760, %v2757
        %s2762 = scalar_lea.vmem %s934, %s2475 [#allocation19]
        %2763 = vst.msk [vmem:[%s2762] sm:$0xff] %vm1892, %v2761
        %s2764 = scalar_select %p1607, 4, 3
        %s2765 = smul.u32 %s2764, 8
        %s2766 = scalar_lea.vmem [#allocation5], %s2765
        %v2767 = vld [vmem:[%s2766] sm:$0xff]
        %s2768 = scalar_lea.vmem [#allocation8], %s2765
        %v2769 = vld [vmem:[%s2768] sm:$0xff]
        %s2770 = scalar_lea.vmem [#allocation2], %s2765
        %v2771 = vld [vmem:[%s2770] sm:$0xff]
        %2773 = vrot.lane.b32.xlu0 %v2771, 96
        %v2774 = vpop.permute.xlu0 %2773
        %v2776 = vmul.f32 %v2746, %v2774
        %2778 = vrot.lane.b32.xlu0 %v2776, 32
        %v2779 = vpop.permute.xlu0 %2778
        %v2780 = vsel %vm1536, %v2779, 0
        %2782 = vmatprep.subr.mxu0 %v1577
        %2783 = vmatpush1.msra.mxu0 %v1576
        %2784 = vmatprep.subr.mxu0 %v1579
        %2785 = vmatpush1.msra.mxu0 %v1578
        %2786 = vmatprep.subr.mxu0 %v1581
        %2787 = vmatpush1.msra.mxu0 %v1580
        %2788 = vmatprep.subr.mxu0 %v1583
        %2789 = vmatpush1.msra.mxu0 %v1582
        %2790 = vmatprep.subr.mxu0 0.0
        %2791 = vmatpush1.msra.mxu0 0.0
        %2792 = vmatprep.subr.mxu0 0.0
        %2793 = vmatpush1.msra.mxu0 0.0
        %2794 = vmatprep.subr.mxu0 0.0
        %2795 = vmatpush1.msra.mxu0 0.0
        %2796 = vmatprep.subr.mxu0 0.0
        %2797 = vmatpush1.msra.mxu0 0.0
        %2798 = vmatprep.subr.mxu0 0.0
        %2799 = vmatpush1.msra.mxu0 0.0
        %2800 = vmatprep.subr.mxu0 0.0
        %2801 = vmatpush1.msra.mxu0 0.0
        %2802 = vmatprep.subr.mxu0 0.0
        %2803 = vmatpush1.msra.mxu0 0.0
        %2804 = vmatprep.subr.mxu0 0.0
        %2805 = vmatpush1.msra.mxu0 0.0
        %2806 = vmatprep.subr.mxu0 0.0
        %2807 = vmatpush1.msra.mxu0 0.0
        %2808 = vmatprep.subr.mxu0 0.0
        %2809 = vmatpush1.msra.mxu0 0.0
        %2810 = vmatprep.subr.mxu0 0.0
        %2811 = vmatpush1.msra.mxu0 0.0
        %2812 = vmatprep.subr.mxu0 0.0
        %2813 = vmatpush1.msra.mxu0 0.0
        %2814 = vmatprep.subr.mxu0 0.0
        %2815 = vmatpush1.msra.mxu0 0.0
        %2816 = vmatprep.subr.mxu0 0.0
        %2817 = vmatpush1.msra.mxu0 0.0
        %2818 = vmatprep.subr.mxu0 0.0
        %2819 = vmatpush1.msra.mxu0 0.0
        %2820 = vmatprep.subr.mxu0 0.0
        %2821 = vmatpush1.msra.mxu0 0.0
        %2822 = vmatprep.subr.mxu0 0.0
        %2823 = vmatpush1.msra.mxu0 0.0
        %2824 = vmatprep.subr.mxu0 0.0
        %2825 = vmatpush1.msra.mxu0 0.0
        %2826 = vmatprep.subr.mxu0 0.0
        %2827 = vmatpush1.msra.mxu0 0.0
        %2828 = vmatprep.subr.mxu0 0.0
        %2829 = vmatpush1.msra.mxu0 0.0
        %2830 = vmatprep.subr.mxu0 0.0
        %2831 = vmatpush1.msra.mxu0 0.0
        %2832 = vmatprep.subr.mxu0 0.0
        %2833 = vmatpush1.msra.mxu0 0.0
        %2834 = vmatprep.subr.mxu0 0.0
        %2835 = vmatpush1.msra.mxu0 0.0
        %2836 = vmatprep.subr.mxu0 0.0
        %2837 = vmatpush1.msra.mxu0 0.0
        %2838 = vmatprep.subr.mxu0 0.0
        %2839 = vmatpush1.msra.mxu0 0.0
        %2840 = vmatprep.subr.mxu0 0.0
        %2841 = vmatpush1.msra.mxu0 0.0
        %2842 = vmatprep.subr.mxu0 0.0
        %2843 = vmatpush1.msra.mxu0 0.0
        %2844 = vmatprep.subr.mxu0 0.0
        %2845 = vmatpush1.msra.mxu0 0.0
        %2846 = vmatprep.mubr.f32.mxu0 0.0
        %2847 = vmatmul.mubr.f32.gmra.mrb[0].mxu0 %v2780
        %v2848 = vpop.f32.mrb[0].mxu0
        %v2849 = vadd.f32 0.0, %v2848
        %v2850 = vpop.f32.mrb[0].mxu0
        %v2851 = vadd.f32 0.0, %v2850
        %2852 = vdwg.mxu0
        %v2853 = vadd.f32 %v2851, %v1593
        %vm2854 = vcmp.gt.f32.partialorder %v2769, 0.0
        %v2855 = vsel %vm2854, %v2767, %v2853
        %v2857 = vsel %vm977, %v2855, 0
        %2859 = vmatprep.subr.mxu0 0.0
        %2860 = vmatpush1.msra.mxu0 %v1584
        %2861 = vmatprep.subr.mxu0 0.0
        %2862 = vmatpush1.msra.mxu0 %v1585
        %2863 = vmatprep.subr.mxu0 0.0
        %2864 = vmatpush1.msra.mxu0 0.0
        %2865 = vmatprep.subr.mxu0 0.0
        %2866 = vmatpush1.msra.mxu0 0.0
        %2867 = vmatprep.subr.mxu0 0.0
        %2868 = vmatpush1.msra.mxu0 0.0
        %2869 = vmatprep.subr.mxu0 0.0
        %2870 = vmatpush1.msra.mxu0 0.0
        %2871 = vmatprep.subr.mxu0 0.0
        %2872 = vmatpush1.msra.mxu0 0.0
        %2873 = vmatprep.subr.mxu0 0.0
        %2874 = vmatpush1.msra.mxu0 0.0
        %2875 = vmatprep.subr.mxu0 0.0
        %2876 = vmatpush1.msra.mxu0 0.0
        %2877 = vmatprep.subr.mxu0 0.0
        %2878 = vmatpush1.msra.mxu0 0.0
        %2879 = vmatprep.subr.mxu0 0.0
        %2880 = vmatpush1.msra.mxu0 0.0
        %2881 = vmatprep.subr.mxu0 0.0
        %2882 = vmatpush1.msra.mxu0 0.0
        %2883 = vmatprep.subr.mxu0 0.0
        %2884 = vmatpush1.msra.mxu0 0.0
        %2885 = vmatprep.subr.mxu0 0.0
        %2886 = vmatpush1.msra.mxu0 0.0
        %2887 = vmatprep.subr.mxu0 0.0
        %2888 = vmatpush1.msra.mxu0 0.0
        %2889 = vmatprep.subr.mxu0 0.0
        %2890 = vmatpush1.msra.mxu0 0.0
        %2891 = vmatprep.subr.mxu0 0.0
        %2892 = vmatpush1.msra.mxu0 0.0
        %2893 = vmatprep.subr.mxu0 0.0
        %2894 = vmatpush1.msra.mxu0 0.0
        %2895 = vmatprep.subr.mxu0 0.0
        %2896 = vmatpush1.msra.mxu0 0.0
        %2897 = vmatprep.subr.mxu0 0.0
        %2898 = vmatpush1.msra.mxu0 0.0
        %2899 = vmatprep.subr.mxu0 0.0
        %2900 = vmatpush1.msra.mxu0 0.0
        %2901 = vmatprep.subr.mxu0 0.0
        %2902 = vmatpush1.msra.mxu0 0.0
        %2903 = vmatprep.subr.mxu0 0.0
        %2904 = vmatpush1.msra.mxu0 0.0
        %2905 = vmatprep.subr.mxu0 0.0
        %2906 = vmatpush1.msra.mxu0 0.0
        %2907 = vmatprep.subr.mxu0 0.0
        %2908 = vmatpush1.msra.mxu0 0.0
        %2909 = vmatprep.subr.mxu0 0.0
        %2910 = vmatpush1.msra.mxu0 0.0
        %2911 = vmatprep.subr.mxu0 0.0
        %2912 = vmatpush1.msra.mxu0 0.0
        %2913 = vmatprep.subr.mxu0 0.0
        %2914 = vmatpush1.msra.mxu0 0.0
        %2915 = vmatprep.subr.mxu0 0.0
        %2916 = vmatpush1.msra.mxu0 0.0
        %2917 = vmatprep.subr.mxu0 0.0
        %2918 = vmatpush1.msra.mxu0 0.0
        %2919 = vmatprep.subr.mxu0 0.0
        %2920 = vmatpush1.msra.mxu0 0.0
        %2921 = vmatprep.subr.mxu0 0.0
        %2922 = vmatpush1.msra.mxu0 0.0
        %2923 = vmatprep.mubr.f32.mxu0 0.0
        %2924 = vmatmul.mubr.f32.gmra.mrb[0].mxu0 %v2857
        %v2925 = vpop.f32.mrb[0].mxu0
        %v2926 = vadd.f32 %v1600, %v2925
        %v2927 = vpop.f32.mrb[0].mxu0
        %2928 = vdwg.mxu0
        %s2929 = scalar_lea.vmem [#allocation3], %s2765
        %v2930 = vld [vmem:[%s2929] sm:$0xff]
        %v2931 = vmul.f32 %v2930, %v2926
        %v2932 = vsub.f32 1.0, %v2930
        %v2933 = vmul.f32 %v2932, %v2853
        %v2934 = vadd.f32 %v2931, %v2933
        %v2935 = vsel %vm2854, %v2767, %v2934
        %s2936 = scalar_lea.vmem [#allocation4], %s2765
        %v2937 = vld [vmem:[%s2936] sm:$0xff]
        %v2939 = vsel %vm977, %v2935, 0
        %2941 = vmatprep.subr.mxu0 0.0
        %2942 = vmatpush1.msra.mxu0 %v1586
        %2943 = vmatprep.subr.mxu0 0.0
        %2944 = vmatpush1.msra.mxu0 %v1587
        %2945 = vmatprep.subr.mxu0 0.0
        %2946 = vmatpush1.msra.mxu0 0.0
        %2947 = vmatprep.subr.mxu0 0.0
        %2948 = vmatpush1.msra.mxu0 0.0
        %2949 = vmatprep.subr.mxu0 0.0
        %2950 = vmatpush1.msra.mxu0 0.0
        %2951 = vmatprep.subr.mxu0 0.0
        %2952 = vmatpush1.msra.mxu0 0.0
        %2953 = vmatprep.subr.mxu0 0.0
        %2954 = vmatpush1.msra.mxu0 0.0
        %2955 = vmatprep.subr.mxu0 0.0
        %2956 = vmatpush1.msra.mxu0 0.0
        %2957 = vmatprep.subr.mxu0 0.0
        %2958 = vmatpush1.msra.mxu0 0.0
        %2959 = vmatprep.subr.mxu0 0.0
        %2960 = vmatpush1.msra.mxu0 0.0
        %2961 = vmatprep.subr.mxu0 0.0
        %2962 = vmatpush1.msra.mxu0 0.0
        %2963 = vmatprep.subr.mxu0 0.0
        %2964 = vmatpush1.msra.mxu0 0.0
        %2965 = vmatprep.subr.mxu0 0.0
        %2966 = vmatpush1.msra.mxu0 0.0
        %2967 = vmatprep.subr.mxu0 0.0
        %2968 = vmatpush1.msra.mxu0 0.0
        %2969 = vmatprep.subr.mxu0 0.0
        %2970 = vmatpush1.msra.mxu0 0.0
        %2971 = vmatprep.subr.mxu0 0.0
        %2972 = vmatpush1.msra.mxu0 0.0
        %2973 = vmatprep.subr.mxu0 0.0
        %2974 = vmatpush1.msra.mxu0 0.0
        %2975 = vmatprep.subr.mxu0 0.0
        %2976 = vmatpush1.msra.mxu0 0.0
        %2977 = vmatprep.subr.mxu0 0.0
        %2978 = vmatpush1.msra.mxu0 0.0
        %2979 = vmatprep.subr.mxu0 0.0
        %2980 = vmatpush1.msra.mxu0 0.0
        %2981 = vmatprep.subr.mxu0 0.0
        %2982 = vmatpush1.msra.mxu0 0.0
        %2983 = vmatprep.subr.mxu0 0.0
        %2984 = vmatpush1.msra.mxu0 0.0
        %2985 = vmatprep.subr.mxu0 0.0
        %2986 = vmatpush1.msra.mxu0 0.0
        %2987 = vmatprep.subr.mxu0 0.0
        %2988 = vmatpush1.msra.mxu0 0.0
        %2989 = vmatprep.subr.mxu0 0.0
        %2990 = vmatpush1.msra.mxu0 0.0
        %2991 = vmatprep.subr.mxu0 0.0
        %2992 = vmatpush1.msra.mxu0 0.0
        %2993 = vmatprep.subr.mxu0 0.0
        %2994 = vmatpush1.msra.mxu0 0.0
        %2995 = vmatprep.subr.mxu0 0.0
        %2996 = vmatpush1.msra.mxu0 0.0
        %2997 = vmatprep.subr.mxu0 0.0
        %2998 = vmatpush1.msra.mxu0 0.0
        %2999 = vmatprep.subr.mxu0 0.0
        %3000 = vmatpush1.msra.mxu0 0.0
        %3001 = vmatprep.subr.mxu0 0.0
        %3002 = vmatpush1.msra.mxu0 0.0
        %3003 = vmatprep.subr.mxu0 0.0
        %3004 = vmatpush1.msra.mxu0 0.0
        %3005 = vmatprep.mubr.f32.mxu0 0.0
        %3006 = vmatmul.mubr.f32.gmra.mrb[0].mxu0 %v2939
        %v3007 = vpop.f32.mrb[0].mxu0
        %v3008 = vadd.f32 %v2937, %v3007
        %v3009 = vpop.f32.mrb[0].mxu0
        %3010 = vdwg.mxu0
        %v3011 = vadd.f32 %v3008, %v2849
        %v3012 = vtanh.pop %v3011
        %v3013 = vxor.u32 %v3011, 2147483648
        %v3014 = vmul.f32 %v3013, 1.442695
        %v3015 = vpow.pop %v3014
        %v3016 = vadd.f32 %v3015, 1.0
        %v3017 = vrcp.pop %v3016
        %v3018 = vmul.f32 1.0, %v3017
        %v3019 = vsel %vm1606, %v3012, %v3018
        %v3020 = vmul.f32 %v3019, %v2740
        %3022 = vrot.lane.b32.xlu0 %v3019, 64
        %v3023 = vpop.permute.xlu0 %3022
        %v3025 = vmul.f32 %v3019, %v3023
        %3027 = vrot.lane.b32.xlu0 %v3025, 32
        %v3028 = vpop.permute.xlu0 %3027
        %v3030 = vadd.f32 %v3020, %v3028
        %v3031 = vtanh.pop %v3030
        %3033 = vrot.lane.b32.xlu0 %v3031, 64
        %v3034 = vpop.permute.xlu0 %3033
        %v3036 = vmul.f32 %v3019, %v3034
        %3038 = vrot.lane.b32.xlu0 %v2853, 16
        %v3039 = vpop.permute.xlu0 %3038
        %3042 = vrot.lane.b32.xlu0 %v2926, 32
        %v3043 = vpop.permute.xlu0 %3042
        %3046 = vrot.lane.b32.xlu0 %v2934, 48
        %v3047 = vpop.permute.xlu0 %3046
        %v3049 = vsel %vm977, %v2935, %v3039
        %v3050 = vsel %vm1536, %v3049, %v3043
        %v3051 = vsel %vm1889, %v3050, %v3047
        %s3052 = scalar_lea.vmem %s934, %s2765 [#allocation19]
        %3053 = vst.msk [vmem:[%s3052] sm:$0xff] %vm1892, %v3051
        %s3054 = scalar_select %p1607, 5, 2
        %s3055 = smul.u32 %s3054, 8
        %s3056 = scalar_lea.vmem [#allocation5], %s3055
        %v3057 = vld [vmem:[%s3056] sm:$0xff]
        %s3058 = scalar_lea.vmem [#allocation8], %s3055
        %v3059 = vld [vmem:[%s3058] sm:$0xff]
        %s3060 = scalar_lea.vmem [#allocation2], %s3055
        %v3061 = vld [vmem:[%s3060] sm:$0xff]
        %3063 = vrot.lane.b32.xlu0 %v3061, 96
        %v3064 = vpop.permute.xlu0 %3063
        %v3066 = vmul.f32 %v3036, %v3064
        %3068 = vrot.lane.b32.xlu0 %v3066, 32
        %v3069 = vpop.permute.xlu0 %3068
        %v3070 = vsel %vm1536, %v3069, 0
        %3072 = vmatprep.subr.mxu0 %v1577
        %3073 = vmatpush1.msra.mxu0 %v1576
        %3074 = vmatprep.subr.mxu0 %v1579
        %3075 = vmatpush1.msra.mxu0 %v1578
        %3076 = vmatprep.subr.mxu0 %v1581
        %3077 = vmatpush1.msra.mxu0 %v1580
        %3078 = vmatprep.subr.mxu0 %v1583
        %3079 = vmatpush1.msra.mxu0 %v1582
        %3080 = vmatprep.subr.mxu0 0.0
        %3081 = vmatpush1.msra.mxu0 0.0
        %3082 = vmatprep.subr.mxu0 0.0
        %3083 = vmatpush1.msra.mxu0 0.0
        %3084 = vmatprep.subr.mxu0 0.0
        %3085 = vmatpush1.msra.mxu0 0.0
        %3086 = vmatprep.subr.mxu0 0.0
        %3087 = vmatpush1.msra.mxu0 0.0
        %3088 = vmatprep.subr.mxu0 0.0
        %3089 = vmatpush1.msra.mxu0 0.0
        %3090 = vmatprep.subr.mxu0 0.0
        %3091 = vmatpush1.msra.mxu0 0.0
        %3092 = vmatprep.subr.mxu0 0.0
        %3093 = vmatpush1.msra.mxu0 0.0
        %3094 = vmatprep.subr.mxu0 0.0
        %3095 = vmatpush1.msra.mxu0 0.0
        %3096 = vmatprep.subr.mxu0 0.0
        %3097 = vmatpush1.msra.mxu0 0.0
        %3098 = vmatprep.subr.mxu0 0.0
        %3099 = vmatpush1.msra.mxu0 0.0
        %3100 = vmatprep.subr.mxu0 0.0
        %3101 = vmatpush1.msra.mxu0 0.0
        %3102 = vmatprep.subr.mxu0 0.0
        %3103 = vmatpush1.msra.mxu0 0.0
        %3104 = vmatprep.subr.mxu0 0.0
        %3105 = vmatpush1.msra.mxu0 0.0
        %3106 = vmatprep.subr.mxu0 0.0
        %3107 = vmatpush1.msra.mxu0 0.0
        %3108 = vmatprep.subr.mxu0 0.0
        %3109 = vmatpush1.msra.mxu0 0.0
        %3110 = vmatprep.subr.mxu0 0.0
        %3111 = vmatpush1.msra.mxu0 0.0
        %3112 = vmatprep.subr.mxu0 0.0
        %3113 = vmatpush1.msra.mxu0 0.0
        %3114 = vmatprep.subr.mxu0 0.0
        %3115 = vmatpush1.msra.mxu0 0.0
        %3116 = vmatprep.subr.mxu0 0.0
        %3117 = vmatpush1.msra.mxu0 0.0
        %3118 = vmatprep.subr.mxu0 0.0
        %3119 = vmatpush1.msra.mxu0 0.0
        %3120 = vmatprep.subr.mxu0 0.0
        %3121 = vmatpush1.msra.mxu0 0.0
        %3122 = vmatprep.subr.mxu0 0.0
        %3123 = vmatpush1.msra.mxu0 0.0
        %3124 = vmatprep.subr.mxu0 0.0
        %3125 = vmatpush1.msra.mxu0 0.0
        %3126 = vmatprep.subr.mxu0 0.0
        %3127 = vmatpush1.msra.mxu0 0.0
        %3128 = vmatprep.subr.mxu0 0.0
        %3129 = vmatpush1.msra.mxu0 0.0
        %3130 = vmatprep.subr.mxu0 0.0
        %3131 = vmatpush1.msra.mxu0 0.0
        %3132 = vmatprep.subr.mxu0 0.0
        %3133 = vmatpush1.msra.mxu0 0.0
        %3134 = vmatprep.subr.mxu0 0.0
        %3135 = vmatpush1.msra.mxu0 0.0
        %3136 = vmatprep.mubr.f32.mxu0 0.0
        %3137 = vmatmul.mubr.f32.gmra.mrb[0].mxu0 %v3070
        %v3138 = vpop.f32.mrb[0].mxu0
        %v3139 = vadd.f32 0.0, %v3138
        %v3140 = vpop.f32.mrb[0].mxu0
        %v3141 = vadd.f32 0.0, %v3140
        %3142 = vdwg.mxu0
        %v3143 = vadd.f32 %v3141, %v1593
        %vm3144 = vcmp.gt.f32.partialorder %v3059, 0.0
        %v3145 = vsel %vm3144, %v3057, %v3143
        %v3147 = vsel %vm977, %v3145, 0
        %3149 = vmatprep.subr.mxu0 0.0
        %3150 = vmatpush1.msra.mxu0 %v1584
        %3151 = vmatprep.subr.mxu0 0.0
        %3152 = vmatpush1.msra.mxu0 %v1585
        %3153 = vmatprep.subr.mxu0 0.0
        %3154 = vmatpush1.msra.mxu0 0.0
        %3155 = vmatprep.subr.mxu0 0.0
        %3156 = vmatpush1.msra.mxu0 0.0
        %3157 = vmatprep.subr.mxu0 0.0
        %3158 = vmatpush1.msra.mxu0 0.0
        %3159 = vmatprep.subr.mxu0 0.0
        %3160 = vmatpush1.msra.mxu0 0.0
        %3161 = vmatprep.subr.mxu0 0.0
        %3162 = vmatpush1.msra.mxu0 0.0
        %3163 = vmatprep.subr.mxu0 0.0
        %3164 = vmatpush1.msra.mxu0 0.0
        %3165 = vmatprep.subr.mxu0 0.0
        %3166 = vmatpush1.msra.mxu0 0.0
        %3167 = vmatprep.subr.mxu0 0.0
        %3168 = vmatpush1.msra.mxu0 0.0
        %3169 = vmatprep.subr.mxu0 0.0
        %3170 = vmatpush1.msra.mxu0 0.0
        %3171 = vmatprep.subr.mxu0 0.0
        %3172 = vmatpush1.msra.mxu0 0.0
        %3173 = vmatprep.subr.mxu0 0.0
        %3174 = vmatpush1.msra.mxu0 0.0
        %3175 = vmatprep.subr.mxu0 0.0
        %3176 = vmatpush1.msra.mxu0 0.0
        %3177 = vmatprep.subr.mxu0 0.0
        %3178 = vmatpush1.msra.mxu0 0.0
        %3179 = vmatprep.subr.mxu0 0.0
        %3180 = vmatpush1.msra.mxu0 0.0
        %3181 = vmatprep.subr.mxu0 0.0
        %3182 = vmatpush1.msra.mxu0 0.0
        %3183 = vmatprep.subr.mxu0 0.0
        %3184 = vmatpush1.msra.mxu0 0.0
        %3185 = vmatprep.subr.mxu0 0.0
        %3186 = vmatpush1.msra.mxu0 0.0
        %3187 = vmatprep.subr.mxu0 0.0
        %3188 = vmatpush1.msra.mxu0 0.0
        %3189 = vmatprep.subr.mxu0 0.0
        %3190 = vmatpush1.msra.mxu0 0.0
        %3191 = vmatprep.subr.mxu0 0.0
        %3192 = vmatpush1.msra.mxu0 0.0
        %3193 = vmatprep.subr.mxu0 0.0
        %3194 = vmatpush1.msra.mxu0 0.0
        %3195 = vmatprep.subr.mxu0 0.0
        %3196 = vmatpush1.msra.mxu0 0.0
        %3197 = vmatprep.subr.mxu0 0.0
        %3198 = vmatpush1.msra.mxu0 0.0
        %3199 = vmatprep.subr.mxu0 0.0
        %3200 = vmatpush1.msra.mxu0 0.0
        %3201 = vmatprep.subr.mxu0 0.0
        %3202 = vmatpush1.msra.mxu0 0.0
        %3203 = vmatprep.subr.mxu0 0.0
        %3204 = vmatpush1.msra.mxu0 0.0
        %3205 = vmatprep.subr.mxu0 0.0
        %3206 = vmatpush1.msra.mxu0 0.0
        %3207 = vmatprep.subr.mxu0 0.0
        %3208 = vmatpush1.msra.mxu0 0.0
        %3209 = vmatprep.subr.mxu0 0.0
        %3210 = vmatpush1.msra.mxu0 0.0
        %3211 = vmatprep.subr.mxu0 0.0
        %3212 = vmatpush1.msra.mxu0 0.0
        %3213 = vmatprep.mubr.f32.mxu0 0.0
        %3214 = vmatmul.mubr.f32.gmra.mrb[0].mxu0 %v3147
        %v3215 = vpop.f32.mrb[0].mxu0
        %v3216 = vadd.f32 %v1600, %v3215
        %v3217 = vpop.f32.mrb[0].mxu0
        %3218 = vdwg.mxu0
        %s3219 = scalar_lea.vmem [#allocation3], %s3055
        %v3220 = vld [vmem:[%s3219] sm:$0xff]
        %v3221 = vmul.f32 %v3220, %v3216
        %v3222 = vsub.f32 1.0, %v3220
        %v3223 = vmul.f32 %v3222, %v3143
        %v3224 = vadd.f32 %v3221, %v3223
        %v3225 = vsel %vm3144, %v3057, %v3224
        %s3226 = scalar_lea.vmem [#allocation4], %s3055
        %v3227 = vld [vmem:[%s3226] sm:$0xff]
        %v3229 = vsel %vm977, %v3225, 0
        %3231 = vmatprep.subr.mxu0 0.0
        %3232 = vmatpush1.msra.mxu0 %v1586
        %3233 = vmatprep.subr.mxu0 0.0
        %3234 = vmatpush1.msra.mxu0 %v1587
        %3235 = vmatprep.subr.mxu0 0.0
        %3236 = vmatpush1.msra.mxu0 0.0
        %3237 = vmatprep.subr.mxu0 0.0
        %3238 = vmatpush1.msra.mxu0 0.0
        %3239 = vmatprep.subr.mxu0 0.0
        %3240 = vmatpush1.msra.mxu0 0.0
        %3241 = vmatprep.subr.mxu0 0.0
        %3242 = vmatpush1.msra.mxu0 0.0
        %3243 = vmatprep.subr.mxu0 0.0
        %3244 = vmatpush1.msra.mxu0 0.0
        %3245 = vmatprep.subr.mxu0 0.0
        %3246 = vmatpush1.msra.mxu0 0.0
        %3247 = vmatprep.subr.mxu0 0.0
        %3248 = vmatpush1.msra.mxu0 0.0
        %3249 = vmatprep.subr.mxu0 0.0
        %3250 = vmatpush1.msra.mxu0 0.0
        %3251 = vmatprep.subr.mxu0 0.0
        %3252 = vmatpush1.msra.mxu0 0.0
        %3253 = vmatprep.subr.mxu0 0.0
        %3254 = vmatpush1.msra.mxu0 0.0
        %3255 = vmatprep.subr.mxu0 0.0
        %3256 = vmatpush1.msra.mxu0 0.0
        %3257 = vmatprep.subr.mxu0 0.0
        %3258 = vmatpush1.msra.mxu0 0.0
        %3259 = vmatprep.subr.mxu0 0.0
        %3260 = vmatpush1.msra.mxu0 0.0
        %3261 = vmatprep.subr.mxu0 0.0
        %3262 = vmatpush1.msra.mxu0 0.0
        %3263 = vmatprep.subr.mxu0 0.0
        %3264 = vmatpush1.msra.mxu0 0.0
        %3265 = vmatprep.subr.mxu0 0.0
        %3266 = vmatpush1.msra.mxu0 0.0
        %3267 = vmatprep.subr.mxu0 0.0
        %3268 = vmatpush1.msra.mxu0 0.0
        %3269 = vmatprep.subr.mxu0 0.0
        %3270 = vmatpush1.msra.mxu0 0.0
        %3271 = vmatprep.subr.mxu0 0.0
        %3272 = vmatpush1.msra.mxu0 0.0
        %3273 = vmatprep.subr.mxu0 0.0
        %3274 = vmatpush1.msra.mxu0 0.0
        %3275 = vmatprep.subr.mxu0 0.0
        %3276 = vmatpush1.msra.mxu0 0.0
        %3277 = vmatprep.subr.mxu0 0.0
        %3278 = vmatpush1.msra.mxu0 0.0
        %3279 = vmatprep.subr.mxu0 0.0
        %3280 = vmatpush1.msra.mxu0 0.0
        %3281 = vmatprep.subr.mxu0 0.0
        %3282 = vmatpush1.msra.mxu0 0.0
        %3283 = vmatprep.subr.mxu0 0.0
        %3284 = vmatpush1.msra.mxu0 0.0
        %3285 = vmatprep.subr.mxu0 0.0
        %3286 = vmatpush1.msra.mxu0 0.0
        %3287 = vmatprep.subr.mxu0 0.0
        %3288 = vmatpush1.msra.mxu0 0.0
        %3289 = vmatprep.subr.mxu0 0.0
        %3290 = vmatpush1.msra.mxu0 0.0
        %3291 = vmatprep.subr.mxu0 0.0
        %3292 = vmatpush1.msra.mxu0 0.0
        %3293 = vmatprep.subr.mxu0 0.0
        %3294 = vmatpush1.msra.mxu0 0.0
        %3295 = vmatprep.mubr.f32.mxu0 0.0
        %3296 = vmatmul.mubr.f32.gmra.mrb[0].mxu0 %v3229
        %v3297 = vpop.f32.mrb[0].mxu0
        %v3298 = vadd.f32 %v3227, %v3297
        %v3299 = vpop.f32.mrb[0].mxu0
        %3300 = vdwg.mxu0
        %v3301 = vadd.f32 %v3298, %v3139
        %v3302 = vtanh.pop %v3301
        %v3303 = vxor.u32 %v3301, 2147483648
        %v3304 = vmul.f32 %v3303, 1.442695
        %v3305 = vpow.pop %v3304
        %v3306 = vadd.f32 %v3305, 1.0
        %v3307 = vrcp.pop %v3306
        %v3308 = vmul.f32 1.0, %v3307
        %v3309 = vsel %vm1606, %v3302, %v3308
        %v3310 = vmul.f32 %v3309, %v3030
        %3312 = vrot.lane.b32.xlu0 %v3309, 64
        %v3313 = vpop.permute.xlu0 %3312
        %v3315 = vmul.f32 %v3309, %v3313
        %3317 = vrot.lane.b32.xlu0 %v3315, 32
        %v3318 = vpop.permute.xlu0 %3317
        %v3320 = vadd.f32 %v3310, %v3318
        %v3321 = vtanh.pop %v3320
        %3323 = vrot.lane.b32.xlu0 %v3321, 64
        %v3324 = vpop.permute.xlu0 %3323
        %v3326 = vmul.f32 %v3309, %v3324
        %3328 = vrot.lane.b32.xlu0 %v3143, 16
        %v3329 = vpop.permute.xlu0 %3328
        %3332 = vrot.lane.b32.xlu0 %v3216, 32
        %v3333 = vpop.permute.xlu0 %3332
        %3336 = vrot.lane.b32.xlu0 %v3224, 48
        %v3337 = vpop.permute.xlu0 %3336
        %v3339 = vsel %vm977, %v3225, %v3329
        %v3340 = vsel %vm1536, %v3339, %v3333
        %v3341 = vsel %vm1889, %v3340, %v3337
        %s3342 = scalar_lea.vmem %s934, %s3055 [#allocation19]
        %3343 = vst.msk [vmem:[%s3342] sm:$0xff] %vm1892, %v3341
        %s3344 = scalar_select %p1607, 6, 1
        %s3345 = smul.u32 %s3344, 8
        %s3346 = scalar_lea.vmem [#allocation5], %s3345
        %v3347 = vld [vmem:[%s3346] sm:$0xff]
        %s3348 = scalar_lea.vmem [#allocation8], %s3345
        %v3349 = vld [vmem:[%s3348] sm:$0xff]
        %s3350 = scalar_lea.vmem [#allocation2], %s3345
        %v3351 = vld [vmem:[%s3350] sm:$0xff]
        %3353 = vrot.lane.b32.xlu0 %v3351, 96
        %v3354 = vpop.permute.xlu0 %3353
        %v3356 = vmul.f32 %v3326, %v3354
        %3358 = vrot.lane.b32.xlu0 %v3356, 32
        %v3359 = vpop.permute.xlu0 %3358
        %v3360 = vsel %vm1536, %v3359, 0
        %3362 = vmatprep.subr.mxu0 %v1577
        %3363 = vmatpush1.msra.mxu0 %v1576
        %3364 = vmatprep.subr.mxu0 %v1579
        %3365 = vmatpush1.msra.mxu0 %v1578
        %3366 = vmatprep.subr.mxu0 %v1581
        %3367 = vmatpush1.msra.mxu0 %v1580
        %3368 = vmatprep.subr.mxu0 %v1583
        %3369 = vmatpush1.msra.mxu0 %v1582
        %3370 = vmatprep.subr.mxu0 0.0
        %3371 = vmatpush1.msra.mxu0 0.0
        %3372 = vmatprep.subr.mxu0 0.0
        %3373 = vmatpush1.msra.mxu0 0.0
        %3374 = vmatprep.subr.mxu0 0.0
        %3375 = vmatpush1.msra.mxu0 0.0
        %3376 = vmatprep.subr.mxu0 0.0
        %3377 = vmatpush1.msra.mxu0 0.0
        %3378 = vmatprep.subr.mxu0 0.0
        %3379 = vmatpush1.msra.mxu0 0.0
        %3380 = vmatprep.subr.mxu0 0.0
        %3381 = vmatpush1.msra.mxu0 0.0
        %3382 = vmatprep.subr.mxu0 0.0
        %3383 = vmatpush1.msra.mxu0 0.0
        %3384 = vmatprep.subr.mxu0 0.0
        %3385 = vmatpush1.msra.mxu0 0.0
        %3386 = vmatprep.subr.mxu0 0.0
        %3387 = vmatpush1.msra.mxu0 0.0
        %3388 = vmatprep.subr.mxu0 0.0
        %3389 = vmatpush1.msra.mxu0 0.0
        %3390 = vmatprep.subr.mxu0 0.0
        %3391 = vmatpush1.msra.mxu0 0.0
        %3392 = vmatprep.subr.mxu0 0.0
        %3393 = vmatpush1.msra.mxu0 0.0
        %3394 = vmatprep.subr.mxu0 0.0
        %3395 = vmatpush1.msra.mxu0 0.0
        %3396 = vmatprep.subr.mxu0 0.0
        %3397 = vmatpush1.msra.mxu0 0.0
        %3398 = vmatprep.subr.mxu0 0.0
        %3399 = vmatpush1.msra.mxu0 0.0
        %3400 = vmatprep.subr.mxu0 0.0
        %3401 = vmatpush1.msra.mxu0 0.0
        %3402 = vmatprep.subr.mxu0 0.0
        %3403 = vmatpush1.msra.mxu0 0.0
        %3404 = vmatprep.subr.mxu0 0.0
        %3405 = vmatpush1.msra.mxu0 0.0
        %3406 = vmatprep.subr.mxu0 0.0
        %3407 = vmatpush1.msra.mxu0 0.0
        %3408 = vmatprep.subr.mxu0 0.0
        %3409 = vmatpush1.msra.mxu0 0.0
        %3410 = vmatprep.subr.mxu0 0.0
        %3411 = vmatpush1.msra.mxu0 0.0
        %3412 = vmatprep.subr.mxu0 0.0
        %3413 = vmatpush1.msra.mxu0 0.0
        %3414 = vmatprep.subr.mxu0 0.0
        %3415 = vmatpush1.msra.mxu0 0.0
        %3416 = vmatprep.subr.mxu0 0.0
        %3417 = vmatpush1.msra.mxu0 0.0
        %3418 = vmatprep.subr.mxu0 0.0
        %3419 = vmatpush1.msra.mxu0 0.0
        %3420 = vmatprep.subr.mxu0 0.0
        %3421 = vmatpush1.msra.mxu0 0.0
        %3422 = vmatprep.subr.mxu0 0.0
        %3423 = vmatpush1.msra.mxu0 0.0
        %3424 = vmatprep.subr.mxu0 0.0
        %3425 = vmatpush1.msra.mxu0 0.0
        %3426 = vmatprep.mubr.f32.mxu0 0.0
        %3427 = vmatmul.mubr.f32.gmra.mrb[0].mxu0 %v3360
        %v3428 = vpop.f32.mrb[0].mxu0
        %v3429 = vadd.f32 0.0, %v3428
        %v3430 = vpop.f32.mrb[0].mxu0
        %v3431 = vadd.f32 0.0, %v3430
        %3432 = vdwg.mxu0
        %v3433 = vadd.f32 %v3431, %v1593
        %vm3434 = vcmp.gt.f32.partialorder %v3349, 0.0
        %v3435 = vsel %vm3434, %v3347, %v3433
        %v3437 = vsel %vm977, %v3435, 0
        %3439 = vmatprep.subr.mxu0 0.0
        %3440 = vmatpush1.msra.mxu0 %v1584
        %3441 = vmatprep.subr.mxu0 0.0
        %3442 = vmatpush1.msra.mxu0 %v1585
        %3443 = vmatprep.subr.mxu0 0.0
        %3444 = vmatpush1.msra.mxu0 0.0
        %3445 = vmatprep.subr.mxu0 0.0
        %3446 = vmatpush1.msra.mxu0 0.0
        %3447 = vmatprep.subr.mxu0 0.0
        %3448 = vmatpush1.msra.mxu0 0.0
        %3449 = vmatprep.subr.mxu0 0.0
        %3450 = vmatpush1.msra.mxu0 0.0
        %3451 = vmatprep.subr.mxu0 0.0
        %3452 = vmatpush1.msra.mxu0 0.0
        %3453 = vmatprep.subr.mxu0 0.0
        %3454 = vmatpush1.msra.mxu0 0.0
        %3455 = vmatprep.subr.mxu0 0.0
        %3456 = vmatpush1.msra.mxu0 0.0
        %3457 = vmatprep.subr.mxu0 0.0
        %3458 = vmatpush1.msra.mxu0 0.0
        %3459 = vmatprep.subr.mxu0 0.0
        %3460 = vmatpush1.msra.mxu0 0.0
        %3461 = vmatprep.subr.mxu0 0.0
        %3462 = vmatpush1.msra.mxu0 0.0
        %3463 = vmatprep.subr.mxu0 0.0
        %3464 = vmatpush1.msra.mxu0 0.0
        %3465 = vmatprep.subr.mxu0 0.0
        %3466 = vmatpush1.msra.mxu0 0.0
        %3467 = vmatprep.subr.mxu0 0.0
        %3468 = vmatpush1.msra.mxu0 0.0
        %3469 = vmatprep.subr.mxu0 0.0
        %3470 = vmatpush1.msra.mxu0 0.0
        %3471 = vmatprep.subr.mxu0 0.0
        %3472 = vmatpush1.msra.mxu0 0.0
        %3473 = vmatprep.subr.mxu0 0.0
        %3474 = vmatpush1.msra.mxu0 0.0
        %3475 = vmatprep.subr.mxu0 0.0
        %3476 = vmatpush1.msra.mxu0 0.0
        %3477 = vmatprep.subr.mxu0 0.0
        %3478 = vmatpush1.msra.mxu0 0.0
        %3479 = vmatprep.subr.mxu0 0.0
        %3480 = vmatpush1.msra.mxu0 0.0
        %3481 = vmatprep.subr.mxu0 0.0
        %3482 = vmatpush1.msra.mxu0 0.0
        %3483 = vmatprep.subr.mxu0 0.0
        %3484 = vmatpush1.msra.mxu0 0.0
        %3485 = vmatprep.subr.mxu0 0.0
        %3486 = vmatpush1.msra.mxu0 0.0
        %3487 = vmatprep.subr.mxu0 0.0
        %3488 = vmatpush1.msra.mxu0 0.0
        %3489 = vmatprep.subr.mxu0 0.0
        %3490 = vmatpush1.msra.mxu0 0.0
        %3491 = vmatprep.subr.mxu0 0.0
        %3492 = vmatpush1.msra.mxu0 0.0
        %3493 = vmatprep.subr.mxu0 0.0
        %3494 = vmatpush1.msra.mxu0 0.0
        %3495 = vmatprep.subr.mxu0 0.0
        %3496 = vmatpush1.msra.mxu0 0.0
        %3497 = vmatprep.subr.mxu0 0.0
        %3498 = vmatpush1.msra.mxu0 0.0
        %3499 = vmatprep.subr.mxu0 0.0
        %3500 = vmatpush1.msra.mxu0 0.0
        %3501 = vmatprep.subr.mxu0 0.0
        %3502 = vmatpush1.msra.mxu0 0.0
        %3503 = vmatprep.mubr.f32.mxu0 0.0
        %3504 = vmatmul.mubr.f32.gmra.mrb[0].mxu0 %v3437
        %v3505 = vpop.f32.mrb[0].mxu0
        %v3506 = vadd.f32 %v1600, %v3505
        %v3507 = vpop.f32.mrb[0].mxu0
        %3508 = vdwg.mxu0
        %s3509 = scalar_lea.vmem [#allocation3], %s3345
        %v3510 = vld [vmem:[%s3509] sm:$0xff]
        %v3511 = vmul.f32 %v3510, %v3506
        %v3512 = vsub.f32 1.0, %v3510
        %v3513 = vmul.f32 %v3512, %v3433
        %v3514 = vadd.f32 %v3511, %v3513
        %v3515 = vsel %vm3434, %v3347, %v3514
        %s3516 = scalar_lea.vmem [#allocation4], %s3345
        %v3517 = vld [vmem:[%s3516] sm:$0xff]
        %v3519 = vsel %vm977, %v3515, 0
        %3521 = vmatprep.subr.mxu0 0.0
        %3522 = vmatpush1.msra.mxu0 %v1586
        %3523 = vmatprep.subr.mxu0 0.0
        %3524 = vmatpush1.msra.mxu0 %v1587
        %3525 = vmatprep.subr.mxu0 0.0
        %3526 = vmatpush1.msra.mxu0 0.0
        %3527 = vmatprep.subr.mxu0 0.0
        %3528 = vmatpush1.msra.mxu0 0.0
        %3529 = vmatprep.subr.mxu0 0.0
        %3530 = vmatpush1.msra.mxu0 0.0
        %3531 = vmatprep.subr.mxu0 0.0
        %3532 = vmatpush1.msra.mxu0 0.0
        %3533 = vmatprep.subr.mxu0 0.0
        %3534 = vmatpush1.msra.mxu0 0.0
        %3535 = vmatprep.subr.mxu0 0.0
        %3536 = vmatpush1.msra.mxu0 0.0
        %3537 = vmatprep.subr.mxu0 0.0
        %3538 = vmatpush1.msra.mxu0 0.0
        %3539 = vmatprep.subr.mxu0 0.0
        %3540 = vmatpush1.msra.mxu0 0.0
        %3541 = vmatprep.subr.mxu0 0.0
        %3542 = vmatpush1.msra.mxu0 0.0
        %3543 = vmatprep.subr.mxu0 0.0
        %3544 = vmatpush1.msra.mxu0 0.0
        %3545 = vmatprep.subr.mxu0 0.0
        %3546 = vmatpush1.msra.mxu0 0.0
        %3547 = vmatprep.subr.mxu0 0.0
        %3548 = vmatpush1.msra.mxu0 0.0
        %3549 = vmatprep.subr.mxu0 0.0
        %3550 = vmatpush1.msra.mxu0 0.0
        %3551 = vmatprep.subr.mxu0 0.0
        %3552 = vmatpush1.msra.mxu0 0.0
        %3553 = vmatprep.subr.mxu0 0.0
        %3554 = vmatpush1.msra.mxu0 0.0
        %3555 = vmatprep.subr.mxu0 0.0
        %3556 = vmatpush1.msra.mxu0 0.0
        %3557 = vmatprep.subr.mxu0 0.0
        %3558 = vmatpush1.msra.mxu0 0.0
        %3559 = vmatprep.subr.mxu0 0.0
        %3560 = vmatpush1.msra.mxu0 0.0
        %3561 = vmatprep.subr.mxu0 0.0
        %3562 = vmatpush1.msra.mxu0 0.0
        %3563 = vmatprep.subr.mxu0 0.0
        %3564 = vmatpush1.msra.mxu0 0.0
        %3565 = vmatprep.subr.mxu0 0.0
        %3566 = vmatpush1.msra.mxu0 0.0
        %3567 = vmatprep.subr.mxu0 0.0
        %3568 = vmatpush1.msra.mxu0 0.0
        %3569 = vmatprep.subr.mxu0 0.0
        %3570 = vmatpush1.msra.mxu0 0.0
        %3571 = vmatprep.subr.mxu0 0.0
        %3572 = vmatpush1.msra.mxu0 0.0
        %3573 = vmatprep.subr.mxu0 0.0
        %3574 = vmatpush1.msra.mxu0 0.0
        %3575 = vmatprep.subr.mxu0 0.0
        %3576 = vmatpush1.msra.mxu0 0.0
        %3577 = vmatprep.subr.mxu0 0.0
        %3578 = vmatpush1.msra.mxu0 0.0
        %3579 = vmatprep.subr.mxu0 0.0
        %3580 = vmatpush1.msra.mxu0 0.0
        %3581 = vmatprep.subr.mxu0 0.0
        %3582 = vmatpush1.msra.mxu0 0.0
        %3583 = vmatprep.subr.mxu0 0.0
        %3584 = vmatpush1.msra.mxu0 0.0
        %3585 = vmatprep.mubr.f32.mxu0 0.0
        %3586 = vmatmul.mubr.f32.gmra.mrb[0].mxu0 %v3519
        %v3587 = vpop.f32.mrb[0].mxu0
        %v3588 = vadd.f32 %v3517, %v3587
        %v3589 = vpop.f32.mrb[0].mxu0
        %3590 = vdwg.mxu0
        %v3591 = vadd.f32 %v3588, %v3429
        %v3592 = vtanh.pop %v3591
        %v3593 = vxor.u32 %v3591, 2147483648
        %v3594 = vmul.f32 %v3593, 1.442695
        %v3595 = vpow.pop %v3594
        %v3596 = vadd.f32 %v3595, 1.0
        %v3597 = vrcp.pop %v3596
        %v3598 = vmul.f32 1.0, %v3597
        %v3599 = vsel %vm1606, %v3592, %v3598
        %v3600 = vmul.f32 %v3599, %v3320
        %3602 = vrot.lane.b32.xlu0 %v3599, 64
        %v3603 = vpop.permute.xlu0 %3602
        %v3605 = vmul.f32 %v3599, %v3603
        %3607 = vrot.lane.b32.xlu0 %v3605, 32
        %v3608 = vpop.permute.xlu0 %3607
        %v3610 = vadd.f32 %v3600, %v3608
        %v3611 = vtanh.pop %v3610
        %3613 = vrot.lane.b32.xlu0 %v3611, 64
        %v3614 = vpop.permute.xlu0 %3613
        %v3616 = vmul.f32 %v3599, %v3614
        %3618 = vrot.lane.b32.xlu0 %v3433, 16
        %v3619 = vpop.permute.xlu0 %3618
        %3622 = vrot.lane.b32.xlu0 %v3506, 32
        %v3623 = vpop.permute.xlu0 %3622
        %3626 = vrot.lane.b32.xlu0 %v3514, 48
        %v3627 = vpop.permute.xlu0 %3626
        %v3629 = vsel %vm977, %v3515, %v3619
        %v3630 = vsel %vm1536, %v3629, %v3623
        %v3631 = vsel %vm1889, %v3630, %v3627
        %s3632 = scalar_lea.vmem %s934, %s3345 [#allocation19]
        %3633 = vst.msk [vmem:[%s3632] sm:$0xff] %vm1892, %v3631
        %s3634 = scalar_select %p1607, 7, 0
        %s3635 = smul.u32 %s3634, 8
        %s3636 = scalar_lea.vmem [#allocation5], %s3635
        %v3637 = vld [vmem:[%s3636] sm:$0xff]
        %s3638 = scalar_lea.vmem [#allocation8], %s3635
        %v3639 = vld [vmem:[%s3638] sm:$0xff]
        %s3640 = scalar_lea.vmem [#allocation2], %s3635
        %v3641 = vld [vmem:[%s3640] sm:$0xff]
        %3643 = vrot.lane.b32.xlu0 %v3641, 96
        %v3644 = vpop.permute.xlu0 %3643
        %v3646 = vmul.f32 %v3616, %v3644
        %3648 = vrot.lane.b32.xlu0 %v3646, 32
        %v3649 = vpop.permute.xlu0 %3648
        %v3650 = vsel %vm1536, %v3649, 0
        %3652 = vmatprep.subr.mxu0 %v1577
        %3653 = vmatpush1.msra.mxu0 %v1576
        %3654 = vmatprep.subr.mxu0 %v1579
        %3655 = vmatpush1.msra.mxu0 %v1578
        %3656 = vmatprep.subr.mxu0 %v1581
        %3657 = vmatpush1.msra.mxu0 %v1580
        %3658 = vmatprep.subr.mxu0 %v1583
        %3659 = vmatpush1.msra.mxu0 %v1582
        %3660 = vmatprep.subr.mxu0 0.0
        %3661 = vmatpush1.msra.mxu0 0.0
        %3662 = vmatprep.subr.mxu0 0.0
        %3663 = vmatpush1.msra.mxu0 0.0
        %3664 = vmatprep.subr.mxu0 0.0
        %3665 = vmatpush1.msra.mxu0 0.0
        %3666 = vmatprep.subr.mxu0 0.0
        %3667 = vmatpush1.msra.mxu0 0.0
        %3668 = vmatprep.subr.mxu0 0.0
        %3669 = vmatpush1.msra.mxu0 0.0
        %3670 = vmatprep.subr.mxu0 0.0
        %3671 = vmatpush1.msra.mxu0 0.0
        %3672 = vmatprep.subr.mxu0 0.0
        %3673 = vmatpush1.msra.mxu0 0.0
        %3674 = vmatprep.subr.mxu0 0.0
        %3675 = vmatpush1.msra.mxu0 0.0
        %3676 = vmatprep.subr.mxu0 0.0
        %3677 = vmatpush1.msra.mxu0 0.0
        %3678 = vmatprep.subr.mxu0 0.0
        %3679 = vmatpush1.msra.mxu0 0.0
        %3680 = vmatprep.subr.mxu0 0.0
        %3681 = vmatpush1.msra.mxu0 0.0
        %3682 = vmatprep.subr.mxu0 0.0
        %3683 = vmatpush1.msra.mxu0 0.0
        %3684 = vmatprep.subr.mxu0 0.0
        %3685 = vmatpush1.msra.mxu0 0.0
        %3686 = vmatprep.subr.mxu0 0.0
        %3687 = vmatpush1.msra.mxu0 0.0
        %3688 = vmatprep.subr.mxu0 0.0
        %3689 = vmatpush1.msra.mxu0 0.0
        %3690 = vmatprep.subr.mxu0 0.0
        %3691 = vmatpush1.msra.mxu0 0.0
        %3692 = vmatprep.subr.mxu0 0.0
        %3693 = vmatpush1.msra.mxu0 0.0
        %3694 = vmatprep.subr.mxu0 0.0
        %3695 = vmatpush1.msra.mxu0 0.0
        %3696 = vmatprep.subr.mxu0 0.0
        %3697 = vmatpush1.msra.mxu0 0.0
        %3698 = vmatprep.subr.mxu0 0.0
        %3699 = vmatpush1.msra.mxu0 0.0
        %3700 = vmatprep.subr.mxu0 0.0
        %3701 = vmatpush1.msra.mxu0 0.0
        %3702 = vmatprep.subr.mxu0 0.0
        %3703 = vmatpush1.msra.mxu0 0.0
        %3704 = vmatprep.subr.mxu0 0.0
        %3705 = vmatpush1.msra.mxu0 0.0
        %3706 = vmatprep.subr.mxu0 0.0
        %3707 = vmatpush1.msra.mxu0 0.0
        %3708 = vmatprep.subr.mxu0 0.0
        %3709 = vmatpush1.msra.mxu0 0.0
        %3710 = vmatprep.subr.mxu0 0.0
        %3711 = vmatpush1.msra.mxu0 0.0
        %3712 = vmatprep.subr.mxu0 0.0
        %3713 = vmatpush1.msra.mxu0 0.0
        %3714 = vmatprep.subr.mxu0 0.0
        %3715 = vmatpush1.msra.mxu0 0.0
        %3716 = vmatprep.mubr.f32.mxu0 0.0
        %3717 = vmatmul.mubr.f32.gmra.mrb[0].mxu0 %v3650
        %v3718 = vpop.f32.mrb[0].mxu0
        %v3719 = vpop.f32.mrb[0].mxu0
        %v3720 = vadd.f32 0.0, %v3719
        %3721 = vdwg.mxu0
        %v3722 = vadd.f32 %v3720, %v1593
        %vm3723 = vcmp.gt.f32.partialorder %v3639, 0.0
        %v3724 = vsel %vm3723, %v3637, %v3722
        %v3726 = vsel %vm977, %v3724, 0
        %3728 = vmatprep.subr.mxu0 0.0
        %3729 = vmatpush1.msra.mxu0 %v1584
        %3730 = vmatprep.subr.mxu0 0.0
        %3731 = vmatpush1.msra.mxu0 %v1585
        %3732 = vmatprep.subr.mxu0 0.0
        %3733 = vmatpush1.msra.mxu0 0.0
        %3734 = vmatprep.subr.mxu0 0.0
        %3735 = vmatpush1.msra.mxu0 0.0
        %3736 = vmatprep.subr.mxu0 0.0
        %3737 = vmatpush1.msra.mxu0 0.0
        %3738 = vmatprep.subr.mxu0 0.0
        %3739 = vmatpush1.msra.mxu0 0.0
        %3740 = vmatprep.subr.mxu0 0.0
        %3741 = vmatpush1.msra.mxu0 0.0
        %3742 = vmatprep.subr.mxu0 0.0
        %3743 = vmatpush1.msra.mxu0 0.0
        %3744 = vmatprep.subr.mxu0 0.0
        %3745 = vmatpush1.msra.mxu0 0.0
        %3746 = vmatprep.subr.mxu0 0.0
        %3747 = vmatpush1.msra.mxu0 0.0
        %3748 = vmatprep.subr.mxu0 0.0
        %3749 = vmatpush1.msra.mxu0 0.0
        %3750 = vmatprep.subr.mxu0 0.0
        %3751 = vmatpush1.msra.mxu0 0.0
        %3752 = vmatprep.subr.mxu0 0.0
        %3753 = vmatpush1.msra.mxu0 0.0
        %3754 = vmatprep.subr.mxu0 0.0
        %3755 = vmatpush1.msra.mxu0 0.0
        %3756 = vmatprep.subr.mxu0 0.0
        %3757 = vmatpush1.msra.mxu0 0.0
        %3758 = vmatprep.subr.mxu0 0.0
        %3759 = vmatpush1.msra.mxu0 0.0
        %3760 = vmatprep.subr.mxu0 0.0
        %3761 = vmatpush1.msra.mxu0 0.0
        %3762 = vmatprep.subr.mxu0 0.0
        %3763 = vmatpush1.msra.mxu0 0.0
        %3764 = vmatprep.subr.mxu0 0.0
        %3765 = vmatpush1.msra.mxu0 0.0
        %3766 = vmatprep.subr.mxu0 0.0
        %3767 = vmatpush1.msra.mxu0 0.0
        %3768 = vmatprep.subr.mxu0 0.0
        %3769 = vmatpush1.msra.mxu0 0.0
        %3770 = vmatprep.subr.mxu0 0.0
        %3771 = vmatpush1.msra.mxu0 0.0
        %3772 = vmatprep.subr.mxu0 0.0
        %3773 = vmatpush1.msra.mxu0 0.0
        %3774 = vmatprep.subr.mxu0 0.0
        %3775 = vmatpush1.msra.mxu0 0.0
        %3776 = vmatprep.subr.mxu0 0.0
        %3777 = vmatpush1.msra.mxu0 0.0
        %3778 = vmatprep.subr.mxu0 0.0
        %3779 = vmatpush1.msra.mxu0 0.0
        %3780 = vmatprep.subr.mxu0 0.0
        %3781 = vmatpush1.msra.mxu0 0.0
        %3782 = vmatprep.subr.mxu0 0.0
        %3783 = vmatpush1.msra.mxu0 0.0
        %3784 = vmatprep.subr.mxu0 0.0
        %3785 = vmatpush1.msra.mxu0 0.0
        %3786 = vmatprep.subr.mxu0 0.0
        %3787 = vmatpush1.msra.mxu0 0.0
        %3788 = vmatprep.subr.mxu0 0.0
        %3789 = vmatpush1.msra.mxu0 0.0
        %3790 = vmatprep.subr.mxu0 0.0
        %3791 = vmatpush1.msra.mxu0 0.0
        %3792 = vmatprep.mubr.f32.mxu0 0.0
        %3793 = vmatmul.mubr.f32.gmra.mrb[0].mxu0 %v3726
        %v3794 = vpop.f32.mrb[0].mxu0
        %v3795 = vadd.f32 %v1600, %v3794
        %v3796 = vpop.f32.mrb[0].mxu0
        %3797 = vdwg.mxu0
        %s3798 = scalar_lea.vmem [#allocation3], %s3635
        %v3799 = vld [vmem:[%s3798] sm:$0xff]
        %v3800 = vmul.f32 %v3799, %v3795
        %v3801 = vsub.f32 1.0, %v3799
        %v3802 = vmul.f32 %v3801, %v3722
        %v3803 = vadd.f32 %v3800, %v3802
        %v3804 = vsel %vm3723, %v3637, %v3803
        %3806 = vrot.lane.b32.xlu0 %v3722, 16
        %v3807 = vpop.permute.xlu0 %3806
        %3810 = vrot.lane.b32.xlu0 %v3795, 32
        %v3811 = vpop.permute.xlu0 %3810
        %3814 = vrot.lane.b32.xlu0 %v3803, 48
        %v3815 = vpop.permute.xlu0 %3814
        %v3817 = vsel %vm977, %v3804, %v3807
        %v3818 = vsel %vm1536, %v3817, %v3811
        %v3819 = vsel %vm1889, %v3818, %v3815
        %s3820 = scalar_lea.vmem %s934, %s3635 [#allocation19]
        %3821 = vst.msk [vmem:[%s3820] sm:$0xff] %vm1892, %v3819
        %s3822 = sand.u32 %s472, 1
        %s3823 = scalar_lea.sflag [#allocation7], %s3822
        %s3824 = sand.u32 %s472, 1
        %s3825 = smul.addr %s3824, 64
        %s3826 = scalar_lea.vmem [#allocation19], %s3825
        // Predicated region
        $region129: #{tpu_custom_call.1} parent=83 // pred_check
          %p3827 = pneg %p482
        $region130: #{tpu_custom_call.1} parent=83 // pred_check_branch
          %3829 = sbr.rel (%p3827) target = $region132
        $region131: #{tpu_custom_call.1} parent=83 // pred_region
          %s3831 = ssub.s32 1024, 1024
          %3832 = vsyncadd %s3823, %s3831
          %s3833 = smul.addr %s36, 8
          %s3834 = sadd.s32 %s37, %s3833
          %s3835 = smul.addr %s3834, 128
          %s3836 = scalar_lea.hbm %s16, %s3835
          %s3837 = sshll.u32 %s3826, 4
          %s3838 = int_to_ptr.vmem [resolvable:$true] %s3837
          %3843 = dma.vmem_to_hbm [thread:$0]  %s3838, 1024, %s3836, %s3823, 128, 128, 8
        $region132: #{tpu_custom_call.1} parent=83 // pred_fallthru
          _
      $region84: #{tpu_custom_call.1} parent=5 // pred_fallthru
        _
      %p3844 = scmp.le.s32.totalorder 2, %s27
      // Predicated region
      $region133: #{tpu_custom_call.1} parent=5 // pred_check
        %p3845 = pneg %p3844
      $region134: #{tpu_custom_call.1} parent=5 // pred_check_branch
        %3847 = sbr.rel (%p3845) target = $region136
      $region135: #{tpu_custom_call.1} parent=5 // pred_region
        %s3848 = ssub.s32 %s27, 2
        // Predicated region
        $region137: #{tpu_custom_call.1} parent=135 // pred_check
          %p3849 = pneg %p488
        $region138: #{tpu_custom_call.1} parent=135 // pred_check_branch
          %3851 = sbr.rel (%p3849) target = $region140
        $region139: #{tpu_custom_call.1} parent=135 // pred_region
          %s3852 = sand.u32 %s473, 1
          %s3853 = scalar_lea.sflag [#allocation7], %s3852
          %s3854 = sand.u32 %s473, 1
          %s3855 = smul.addr %s3854, 64
          %s3856 = scalar_lea.vmem [#allocation19], %s3855
          %3857 = dma.done %s3853, 1024
        $region140: #{tpu_custom_call.1} parent=135 // pred_fallthru
          _
      $region136: #{tpu_custom_call.1} parent=5 // pred_fallthru
        _
    $region6: #{tpu_custom_call.1} parent=1 // loop_footer
      %s31 = sadd.s32 1, %s27
    $region7: #{tpu_custom_call.1} parent=1 // loop_footer_branch
      %26 = sbr.rel target = $region3
    $region8: #{tpu_custom_call.1} parent=1 // loop_exit
      _
    %3858 = vsyncpa [#allocation6], 1
    %s3859 = scalar_lea.sflag [#allocation6], 1
    %3860 = vsyncpa %s3859, 1
    %3861 = vsyncpa [#allocation9], 1
    %3862 = vsyncpa [#allocation7], 1
    %s3863 = scalar_lea.sflag [#allocation7], 1
    %3864 = vsyncpa %s3863, 1

</llo_original>
